<compile_context>
chip_gen: v6e
topology: v6e:2x2x1
jax: 0.10.0
libtpu: 0.0.40
codegen_flags: <defaults>
</compile_context>

<pallas_src>
import functools

import numpy as np
import jax
import jax.numpy as jnp
from jax import lax
from jax.experimental import pallas as pl
from jax.experimental.pallas import tpu as pltpu

EPS = 1e-5  # torch GroupNorm default


def _silu(x):
    return x * jax.nn.sigmoid(x)


def _group_norm(h, mask, member_div_n, gamma, beta):
    """GroupNorm over the interior columns of a (C, PP) f32 tile.

    mask         : (1, PP)  1.0 at interior pixel columns, 0.0 at pad/tail cols.
    member_div_n : (C, C)   1/(H*W*cpg) where channels share a group, else 0.
    gamma, beta  : (C, 1)
    """
    hm = h * mask
    mean = jnp.sum(jnp.dot(member_div_n, hm, preferred_element_type=jnp.float32),
                   axis=1, keepdims=True)                       # (C, 1) group means
    hc = (h - mean) * mask                                      # centered, pads zeroed
    var = jnp.sum(jnp.dot(member_div_n, hc * hc, preferred_element_type=jnp.float32),
                  axis=1, keepdims=True)
    return hc * lax.rsqrt(var + EPS) * gamma + beta


def _resnet_block_kernel(x_ref, scale_ref, shift_ref, mask_ref,
                         w1_ref, b1_ref, g1_ref, be1_ref,
                         w2_ref, b2_ref, g2_ref, be2_ref,
                         wr_ref, br_ref, mem_ref,
                         o_ref,
                         col1_ref, h1w_ref, col2_ref,
                         *, offsets, m0):
    cinp = x_ref.shape[0]
    cout, PP = o_ref.shape
    w_in = h1w_ref.shape[1]
    mask = mask_ref[...]                                        # (1, PP) f32

    # ---- conv1: K-packed im2col via 9 static lane-offset slices (bf16) ------
    for t, off in enumerate(offsets):
        col1_ref[t * cinp:(t + 1) * cinp, :] = x_ref[:, m0 + off:m0 + off + PP]
    h = jnp.dot(w1_ref[...], col1_ref[...], preferred_element_type=jnp.float32)
    h = h + b1_ref[...]
    h = _group_norm(h, mask, mem_ref[...], g1_ref[...], be1_ref[...])
    h = h * scale_ref[...] + shift_ref[...]                     # scale already holds (scale+1)
    h = _silu(h) * mask                                         # zero pad/tail cols before conv2

    # ---- stage h1 (bf16) in a wider row buffer; only border strips zeroed ---
    h1w_ref[:, 0:m0] = jnp.zeros((cout, m0), jnp.bfloat16)
    h1w_ref[:, m0 + PP:w_in] = jnp.zeros((cout, w_in - m0 - PP), jnp.bfloat16)
    h1w_ref[:, m0:m0 + PP] = h.astype(jnp.bfloat16)

    # ---- conv2: same K-packed scheme on h1 -----------------------------------
    for t, off in enumerate(offsets):
        col2_ref[t * cout:(t + 1) * cout, :] = h1w_ref[:, m0 + off:m0 + off + PP]
    h2 = jnp.dot(w2_ref[...], col2_ref[...], preferred_element_type=jnp.float32)
    h2 = h2 + b2_ref[...]
    h2 = _group_norm(h2, mask, mem_ref[...], g2_ref[...], be2_ref[...])
    h2 = _silu(h2)

    # ---- 1x1 residual conv, reusing the centre tap staged in col1 ------------
    ctr = len(offsets) // 2
    x_c = col1_ref[ctr * cinp:(ctr + 1) * cinp, :]              # (CinP, PP) bf16
    res = jnp.dot(wr_ref[...], x_c, preferred_element_type=jnp.float32) + br_ref[...]

    o_ref[...] = (h2 + res).astype(o_ref.dtype)


def resnet_block_forward(x_nchw, time_emb, params, *, groups):
    B, Cin, H, W = x_nchw.shape
    Cout = params["w1"].shape[0]
    Hp, Wp = H + 2, W + 2
    P = Hp * Wp
    HW = H * W

    PP = ((P + 127) // 128) * 128              # lane-aligned working width
    M0 = 128                                   # lane offset of padded-flat position 0
    W_IN = M0 + PP + 128                       # room for +/-(Wp+1) tap shifts
    CinP = ((Cin + 15) // 16) * 16             # pad channels so bf16 stores are tile-aligned

    offsets = tuple((di - 1) * Wp + (dj - 1) for di in range(3) for dj in range(3))

    # ---- parameter packing: bf16 K-packed conv weights, (C,1) vectors --------
    def pack3x3(w, cip):                       # (Cout, Ci, 3, 3) -> (Cout, 9*cip) bf16
        co, ci = w.shape[:2]
        wt = jnp.transpose(w, (0, 2, 3, 1))    # (Cout, 3, 3, Ci)
        wt = jnp.pad(wt, ((0, 0), (0, 0), (0, 0), (0, cip - ci)))
        return wt.reshape(co, 9 * cip).astype(jnp.bfloat16)

    def col(v):                                # (C,) -> (C, 1) f32
        return jnp.asarray(v, jnp.float32).reshape(-1, 1)

    w1p = pack3x3(params["w1"], CinP)
    w2p = pack3x3(params["w2"], Cout)
    if params.get("wres") is not None:
        wrp = jnp.pad(params["wres"][:, :, 0, 0],
                      ((0, 0), (0, CinP - Cin))).astype(jnp.bfloat16)
        brc = col(params["bres"])
    else:
        # TODO(synk): identity residual (dim == dim_out) is realized as a bf16
        # identity matmul, so the skip path is rounded to bf16.
        assert Cin == Cout
        wrp = jnp.pad(jnp.eye(Cout, Cin, dtype=jnp.float32),
                      ((0, 0), (0, CinP - Cin))).astype(jnp.bfloat16)
        brc = jnp.zeros((Cout, 1), jnp.float32)

    # ---- time-embedding MLP hoisted out of the kernel; +1 folded into scale --
    t = time_emb.astype(jnp.float32)
    ss = _silu(t) @ params["wm"] + params["bm"]                 # (B, 2*Cout)
    scale_p1 = (ss[:, :Cout] + 1.0)[:, :, None]                 # (B, Cout, 1)
    shift = ss[:, Cout:][:, :, None]                            # (B, Cout, 1)

    # ---- input: channel-pad, spatial-pad, flatten, lane-pad, bf16 ------------
    x = x_nchw.astype(jnp.float32)
    xpad = jnp.pad(x, ((0, 0), (0, CinP - Cin), (1, 1), (1, 1)))   # (B, CinP, Hp, Wp)
    xw = jnp.pad(xpad.reshape(B, CinP, P),
                 ((0, 0), (0, 0), (M0, W_IN - M0 - P))).astype(jnp.bfloat16)

    # ---- interior mask and GroupNorm membership / n matrix -------------------
    m = np.zeros((Hp, Wp), np.float32)
    m[1:H + 1, 1:W + 1] = 1.0
    mask = jnp.asarray(np.pad(m.reshape(1, P), ((0, 0), (0, PP - P))))

    cpg = Cout // groups
    gidx = np.arange(Cout) // cpg
    member = jnp.asarray((gidx[:, None] == gidx[None, :]).astype(np.float32)
                         / float(HW * cpg))

    kernel = functools.partial(_resnet_block_kernel, offsets=offsets, m0=M0)
    shared = lambda b: (0, 0)
    perb = lambda b: (b, 0, 0)

    out = pl.pallas_call(
        kernel,
        out_shape=jax.ShapeDtypeStruct((B, Cout, PP), jnp.float32),
        grid=(B,),
        in_specs=[
            pl.BlockSpec((None, CinP, W_IN), perb),        # x rows (bf16, both-sides padded)
            pl.BlockSpec((None, Cout, 1), perb),           # scale + 1
            pl.BlockSpec((None, Cout, 1), perb),           # shift
            pl.BlockSpec((1, PP), shared),                 # interior mask
            pl.BlockSpec((Cout, 9 * CinP), shared),        # conv1 weight, K-packed bf16
            pl.BlockSpec((Cout, 1), shared),               # conv1 bias
            pl.BlockSpec((Cout, 1), shared),               # gn1 gamma
            pl.BlockSpec((Cout, 1), shared),               # gn1 beta
            pl.BlockSpec((Cout, 9 * Cout), shared),        # conv2 weight, K-packed bf16
            pl.BlockSpec((Cout, 1), shared),               # conv2 bias
            pl.BlockSpec((Cout, 1), shared),               # gn2 gamma
            pl.BlockSpec((Cout, 1), shared),               # gn2 beta
            pl.BlockSpec((Cout, CinP), shared),            # 1x1 residual weight (bf16)
            pl.BlockSpec((Cout, 1), shared),               # residual bias
            pl.BlockSpec((Cout, Cout), shared),            # GroupNorm membership / n
        ],
        out_specs=pl.BlockSpec((None, Cout, PP), perb),
        scratch_shapes=[
            pltpu.VMEM((9 * CinP, PP), jnp.bfloat16),      # conv1 im2col (K-packed)
            pltpu.VMEM((Cout, W_IN), jnp.bfloat16),        # h1 staging rows (bf16)
            pltpu.VMEM((9 * Cout, PP), jnp.bfloat16),      # conv2 im2col (K-packed)
        ],
        compiler_params=pltpu.CompilerParams(
            dimension_semantics=("parallel",),
        ),
    )(xw, scale_p1, shift, mask,
      w1p, col(params["b1"]), col(params["g1"]), col(params["be1"]),
      w2p, col(params["b2"]), col(params["g2"]), col(params["be2"]),
      wrp, brc, member)

    # drop the lane tail, un-flatten, drop the spatial padding -> NCHW
    return out[:, :, :P].reshape(B, Cout, Hp, Wp)[:, :, 1:H + 1, 1:W + 1]


# ----------------------- pure-JAX reference (self-check) -----------------------

def _ref_group_norm(x, groups, gamma, beta):
    B, C, H, W = x.shape
    xr = x.reshape(B, groups, C // groups, H, W)
    mean = xr.mean(axis=(2, 3, 4), keepdims=True)
    var = ((xr - mean) ** 2).mean(axis=(2, 3, 4), keepdims=True)
    xn = ((xr - mean) / jnp.sqrt(var + EPS)).reshape(B, C, H, W)
    return xn * gamma.reshape(1, C, 1, 1) + beta.reshape(1, C, 1, 1)


def _ref_forward(x, t, p, *, groups):
    dn = ("NCHW", "OIHW", "NCHW")
    Cout = p["w1"].shape[0]
    h = lax.conv_general_dilated(x, p["w1"], (1, 1), "SAME", dimension_numbers=dn)
    h = h + p["b1"].reshape(1, Cout, 1, 1)
    h = _ref_group_norm(h, groups, p["g1"], p["be1"])
    tt = t * jax.nn.sigmoid(t)
    ss = tt @ p["wm"] + p["bm"]
    scale = ss[:, :Cout].reshape(-1, Cout, 1, 1)
    shift = ss[:, Cout:].reshape(-1, Cout, 1, 1)
    h = h * (scale + 1.0) + shift
    h = h * jax.nn.sigmoid(h)
    h = lax.conv_general_dilated(h, p["w2"], (1, 1), "SAME", dimension_numbers=dn)
    h = h + p["b2"].reshape(1, Cout, 1, 1)
    h = _ref_group_norm(h, groups, p["g2"], p["be2"])
    h = h * jax.nn.sigmoid(h)
    if p.get("wres") is not None:
        res = lax.conv_general_dilated(x, p["wres"], (1, 1), "SAME", dimension_numbers=dn)
        res = res + p["bres"].reshape(1, Cout, 1, 1)
    else:
        res = x
    return h + res


if __name__ == "__main__":
    # ResnetBlock(dim=4, dim_out=16, time_emb_dim=32, groups=8); x: (2, 4, 16, 16)
    B, Cin, Cout, H, W, T, groups = 2, 4, 16, 16, 16, 32, 8

    ks = jax.random.split(jax.random.PRNGKey(0), 12)

    def bf16_storable(k, shape, s=0.1):
        # Conv weights are fed to the MXU in bf16; keep the f32 masters at
        # bf16-representable values so kernel and reference share parameters.
        w = jax.random.normal(k, shape, jnp.float32) * s
        return w.astype(jnp.bfloat16).astype(jnp.float32)

    p = {
        "w1":   bf16_storable(ks[0], (Cout, Cin, 3, 3)),
        "b1":   jax.random.normal(ks[1], (Cout,), jnp.float32) * 0.1,
        "g1":   1.0 + jax.random.normal(ks[2], (Cout,), jnp.float32) * 0.1,
        "be1":  jax.random.normal(ks[3], (Cout,), jnp.float32) * 0.1,
        "wm":   jax.random.normal(ks[4], (T, 2 * Cout), jnp.float32) * 0.1,
        "bm":   jax.random.normal(ks[5], (2 * Cout,), jnp.float32) * 0.1,
        "w2":   bf16_storable(ks[6], (Cout, Cout, 3, 3)),
        "b2":   jax.random.normal(ks[7], (Cout,), jnp.float32) * 0.1,
        "g2":   1.0 + jax.random.normal(ks[8], (Cout,), jnp.float32) * 0.1,
        "be2":  jax.random.normal(ks[9], (Cout,), jnp.float32) * 0.1,
        "wres": bf16_storable(ks[10], (Cout, Cin, 1, 1)),
        "bres": jax.random.normal(ks[11], (Cout,), jnp.float32) * 0.1,
    }

    kx, kt = jax.random.split(jax.random.PRNGKey(1))
    x = jax.random.normal(kx, (B, Cin, H, W), jnp.float32)
    t_emb = jax.random.normal(kt, (B, T), jnp.float32)

    out = jax.block_until_ready(resnet_block_forward(x, t_emb, p, groups=groups))
    ref = jax.block_until_ready(_ref_forward(x, t_emb, p, groups=groups))

    assert out.shape == (B, Cout, H, W)
    # bf16 MXU operands (f32 accumulation) vs the pure-f32 reference.
    np.testing.assert_allclose(np.asarray(out), np.asarray(ref), rtol=2e-2, atol=2e-2)
    print("KERNEL_OK")
</pallas_src>

<mosaic_0001>
module attributes {stable_mosaic.version = 11 : i64} {
  func.func @_resnet_block_kernel(%arg0: i32, %arg1: memref<1x16x640xbf16, #tpu.memory_space<vmem>>, %arg2: memref<1x16x1xf32, #tpu.memory_space<vmem>>, %arg3: memref<1x16x1xf32, #tpu.memory_space<vmem>>, %arg4: memref<1x384xf32, #tpu.memory_space<vmem>>, %arg5: memref<16x144xbf16, #tpu.memory_space<vmem>>, %arg6: memref<16x1xf32, #tpu.memory_space<vmem>>, %arg7: memref<16x1xf32, #tpu.memory_space<vmem>>, %arg8: memref<16x1xf32, #tpu.memory_space<vmem>>, %arg9: memref<16x144xbf16, #tpu.memory_space<vmem>>, %arg10: memref<16x1xf32, #tpu.memory_space<vmem>>, %arg11: memref<16x1xf32, #tpu.memory_space<vmem>>, %arg12: memref<16x1xf32, #tpu.memory_space<vmem>>, %arg13: memref<16x16xbf16, #tpu.memory_space<vmem>>, %arg14: memref<16x1xf32, #tpu.memory_space<vmem>>, %arg15: memref<16x16xf32, #tpu.memory_space<vmem>>, %arg16: memref<1x16x384xf32, #tpu.memory_space<vmem>>, %arg17: memref<144x384xbf16, #tpu.memory_space<vmem>>, %arg18: memref<16x640xbf16, #tpu.memory_space<vmem>>, %arg19: memref<144x384xbf16, #tpu.memory_space<vmem>>) attributes {dimension_semantics = [#tpu.dimension_semantics<parallel>], iteration_bounds = array<i64: 2>, scalar_prefetch = 0 : i64, scratch_operands = 3 : i64, tpu.core_type = #tpu.core_type<tc>, window_params = [{transform_indices = @transform_0, window_bounds = array<i64: 1, 16, 640>}, {transform_indices = @transform_1, window_bounds = array<i64: 1, 16, 1>}, {transform_indices = @transform_2, window_bounds = array<i64: 1, 16, 1>}, {pipeline_mode = #tpu.pipeline_mode<synchronous>, transform_indices = @transform_3, window_bounds = array<i64: 1, 384>}, {pipeline_mode = #tpu.pipeline_mode<synchronous>, transform_indices = @transform_4, window_bounds = array<i64: 16, 144>}, {pipeline_mode = #tpu.pipeline_mode<synchronous>, transform_indices = @transform_5, window_bounds = array<i64: 16, 1>}, {pipeline_mode = #tpu.pipeline_mode<synchronous>, transform_indices = @transform_6, window_bounds = array<i64: 16, 1>}, {pipeline_mode = #tpu.pipeline_mode<synchronous>, transform_indices = @transform_7, window_bounds = array<i64: 16, 1>}, {pipeline_mode = #tpu.pipeline_mode<synchronous>, transform_indices = @transform_8, window_bounds = array<i64: 16, 144>}, {pipeline_mode = #tpu.pipeline_mode<synchronous>, transform_indices = @transform_9, window_bounds = array<i64: 16, 1>}, {pipeline_mode = #tpu.pipeline_mode<synchronous>, transform_indices = @transform_10, window_bounds = array<i64: 16, 1>}, {pipeline_mode = #tpu.pipeline_mode<synchronous>, transform_indices = @transform_11, window_bounds = array<i64: 16, 1>}, {pipeline_mode = #tpu.pipeline_mode<synchronous>, transform_indices = @transform_12, window_bounds = array<i64: 16, 16>}, {pipeline_mode = #tpu.pipeline_mode<synchronous>, transform_indices = @transform_13, window_bounds = array<i64: 16, 1>}, {pipeline_mode = #tpu.pipeline_mode<synchronous>, transform_indices = @transform_14, window_bounds = array<i64: 16, 16>}, {transform_indices = @transform_15, window_bounds = array<i64: 1, 16, 384>}]} {
    %c0 = arith.constant 0 : index
    %c0_0 = arith.constant 0 : index
    %0 = vector.load %arg4[%c0, %c0_0] : memref<1x384xf32, #tpu.memory_space<vmem>>, vector<1x384xf32>
    %c0_1 = arith.constant 0 : index
    %c0_2 = arith.constant 0 : index
    %c109 = arith.constant 109 : index
    %1 = vector.load %arg1[%c0_1, %c0_2, %c109] : memref<1x16x640xbf16, #tpu.memory_space<vmem>>, vector<1x16x384xbf16>
    %2 = vector.shape_cast %1 : vector<1x16x384xbf16> to vector<16x384xbf16>
    %c0_3 = arith.constant 0 : index
    %c0_4 = arith.constant 0 : index
    %3 = vector.load %arg17[%c0_3, %c0_4] : memref<144x384xbf16, #tpu.memory_space<vmem>>, vector<16x384xbf16>
    tpu.vector_store %arg17[%c0_3, %c0_4], %2 {strides = array<i32>} : memref<144x384xbf16, #tpu.memory_space<vmem>>, vector<16x384xbf16>,
    %c0_5 = arith.constant 0 : index
    %c0_6 = arith.constant 0 : index
    %c110 = arith.constant 110 : index
    %4 = vector.load %arg1[%c0_5, %c0_6, %c110] : memref<1x16x640xbf16, #tpu.memory_space<vmem>>, vector<1x16x384xbf16>
    %5 = vector.shape_cast %4 : vector<1x16x384xbf16> to vector<16x384xbf16>
    %c16 = arith.constant 16 : index
    %c0_7 = arith.constant 0 : index
    %6 = vector.load %arg17[%c16, %c0_7] : memref<144x384xbf16, #tpu.memory_space<vmem>>, vector<16x384xbf16>
    tpu.vector_store %arg17[%c16, %c0_7], %5 {strides = array<i32>} : memref<144x384xbf16, #tpu.memory_space<vmem>>, vector<16x384xbf16>,
    %c0_8 = arith.constant 0 : index
    %c0_9 = arith.constant 0 : index
    %c111 = arith.constant 111 : index
    %7 = vector.load %arg1[%c0_8, %c0_9, %c111] : memref<1x16x640xbf16, #tpu.memory_space<vmem>>, vector<1x16x384xbf16>
    %8 = vector.shape_cast %7 : vector<1x16x384xbf16> to vector<16x384xbf16>
    %c32 = arith.constant 32 : index
    %c0_10 = arith.constant 0 : index
    %9 = vector.load %arg17[%c32, %c0_10] : memref<144x384xbf16, #tpu.memory_space<vmem>>, vector<16x384xbf16>
    tpu.vector_store %arg17[%c32, %c0_10], %8 {strides = array<i32>} : memref<144x384xbf16, #tpu.memory_space<vmem>>, vector<16x384xbf16>,
    %c0_11 = arith.constant 0 : index
    %c0_12 = arith.constant 0 : index
    %c127 = arith.constant 127 : index
    %10 = vector.load %arg1[%c0_11, %c0_12, %c127] : memref<1x16x640xbf16, #tpu.memory_space<vmem>>, vector<1x16x384xbf16>
    %11 = vector.shape_cast %10 : vector<1x16x384xbf16> to vector<16x384xbf16>
    %c48 = arith.constant 48 : index
    %c0_13 = arith.constant 0 : index
    %12 = vector.load %arg17[%c48, %c0_13] : memref<144x384xbf16, #tpu.memory_space<vmem>>, vector<16x384xbf16>
    tpu.vector_store %arg17[%c48, %c0_13], %11 {strides = array<i32>} : memref<144x384xbf16, #tpu.memory_space<vmem>>, vector<16x384xbf16>,
    %c0_14 = arith.constant 0 : index
    %c0_15 = arith.constant 0 : index
    %c128 = arith.constant 128 : index
    %13 = vector.load %arg1[%c0_14, %c0_15, %c128] : memref<1x16x640xbf16, #tpu.memory_space<vmem>>, vector<1x16x384xbf16>
    %14 = vector.shape_cast %13 : vector<1x16x384xbf16> to vector<16x384xbf16>
    %c64 = arith.constant 64 : index
    %c0_16 = arith.constant 0 : index
    %15 = vector.load %arg17[%c64, %c0_16] : memref<144x384xbf16, #tpu.memory_space<vmem>>, vector<16x384xbf16>
    tpu.vector_store %arg17[%c64, %c0_16], %14 {strides = array<i32>} : memref<144x384xbf16, #tpu.memory_space<vmem>>, vector<16x384xbf16>,
    %c0_17 = arith.constant 0 : index
    %c0_18 = arith.constant 0 : index
    %c129 = arith.constant 129 : index
    %16 = vector.load %arg1[%c0_17, %c0_18, %c129] : memref<1x16x640xbf16, #tpu.memory_space<vmem>>, vector<1x16x384xbf16>
    %17 = vector.shape_cast %16 : vector<1x16x384xbf16> to vector<16x384xbf16>
    %c80 = arith.constant 80 : index
    %c0_19 = arith.constant 0 : index
    %18 = vector.load %arg17[%c80, %c0_19] : memref<144x384xbf16, #tpu.memory_space<vmem>>, vector<16x384xbf16>
    tpu.vector_store %arg17[%c80, %c0_19], %17 {strides = array<i32>} : memref<144x384xbf16, #tpu.memory_space<vmem>>, vector<16x384xbf16>,
    %c0_20 = arith.constant 0 : index
    %c0_21 = arith.constant 0 : index
    %c145 = arith.constant 145 : index
    %19 = vector.load %arg1[%c0_20, %c0_21, %c145] : memref<1x16x640xbf16, #tpu.memory_space<vmem>>, vector<1x16x384xbf16>
    %20 = vector.shape_cast %19 : vector<1x16x384xbf16> to vector<16x384xbf16>
    %c96 = arith.constant 96 : index
    %c0_22 = arith.constant 0 : index
    %21 = vector.load %arg17[%c96, %c0_22] : memref<144x384xbf16, #tpu.memory_space<vmem>>, vector<16x384xbf16>
    tpu.vector_store %arg17[%c96, %c0_22], %20 {strides = array<i32>} : memref<144x384xbf16, #tpu.memory_space<vmem>>, vector<16x384xbf16>,
    %c0_23 = arith.constant 0 : index
    %c0_24 = arith.constant 0 : index
    %c146 = arith.constant 146 : index
    %22 = vector.load %arg1[%c0_23, %c0_24, %c146] : memref<1x16x640xbf16, #tpu.memory_space<vmem>>, vector<1x16x384xbf16>
    %23 = vector.shape_cast %22 : vector<1x16x384xbf16> to vector<16x384xbf16>
    %c112 = arith.constant 112 : index
    %c0_25 = arith.constant 0 : index
    %24 = vector.load %arg17[%c112, %c0_25] : memref<144x384xbf16, #tpu.memory_space<vmem>>, vector<16x384xbf16>
    tpu.vector_store %arg17[%c112, %c0_25], %23 {strides = array<i32>} : memref<144x384xbf16, #tpu.memory_space<vmem>>, vector<16x384xbf16>,
    %c0_26 = arith.constant 0 : index
    %c0_27 = arith.constant 0 : index
    %c147 = arith.constant 147 : index
    %25 = vector.load %arg1[%c0_26, %c0_27, %c147] : memref<1x16x640xbf16, #tpu.memory_space<vmem>>, vector<1x16x384xbf16>
    %26 = vector.shape_cast %25 : vector<1x16x384xbf16> to vector<16x384xbf16>
    %c128_28 = arith.constant 128 : index
    %c0_29 = arith.constant 0 : index
    %27 = vector.load %arg17[%c128_28, %c0_29] : memref<144x384xbf16, #tpu.memory_space<vmem>>, vector<16x384xbf16>
    tpu.vector_store %arg17[%c128_28, %c0_29], %26 {strides = array<i32>} : memref<144x384xbf16, #tpu.memory_space<vmem>>, vector<16x384xbf16>,
    %c0_30 = arith.constant 0 : index
    %c0_31 = arith.constant 0 : index
    %28 = vector.load %arg5[%c0_30, %c0_31] : memref<16x144xbf16, #tpu.memory_space<vmem>>, vector<16x144xbf16>
    %c0_32 = arith.constant 0 : index
    %c0_33 = arith.constant 0 : index
    %29 = vector.load %arg17[%c0_32, %c0_33] : memref<144x384xbf16, #tpu.memory_space<vmem>>, vector<144x384xbf16>
    %cst = arith.constant dense<0.000000e+00> : vector<16x384xf32>
    %30 = tpu.matmul %28, %29, %cst {dimension_numbers = #tpu.dot_dimension_numbers<[1], [0], [0], [1], [0, 0, 1, 1], [], []>} : vector<16x144xbf16>, vector<144x384xbf16>, vector<16x384xf32> -> vector<16x384xf32>
    %c0_34 = arith.constant 0 : index
    %c0_35 = arith.constant 0 : index
    %31 = vector.load %arg6[%c0_34, %c0_35] : memref<16x1xf32, #tpu.memory_space<vmem>>, vector<16x1xf32>
    %32 = vector.broadcast %31 : vector<16x1xf32> to vector<16x384xf32>
    %33 = arith.addf %30, %32 : vector<16x384xf32>
    %c0_36 = arith.constant 0 : index
    %c0_37 = arith.constant 0 : index
    %34 = vector.load %arg15[%c0_36, %c0_37] : memref<16x16xf32, #tpu.memory_space<vmem>>, vector<16x16xf32>
    %c0_38 = arith.constant 0 : index
    %c0_39 = arith.constant 0 : index
    %35 = vector.load %arg7[%c0_38, %c0_39] : memref<16x1xf32, #tpu.memory_space<vmem>>, vector<16x1xf32>
    %c0_40 = arith.constant 0 : index
    %c0_41 = arith.constant 0 : index
    %36 = vector.load %arg8[%c0_40, %c0_41] : memref<16x1xf32, #tpu.memory_space<vmem>>, vector<16x1xf32>
    %37 = vector.broadcast %0 : vector<1x384xf32> to vector<16x384xf32>
    %38 = arith.mulf %33, %37 : vector<16x384xf32>
    %cst_42 = arith.constant dense<0.000000e+00> : vector<16x384xf32>
    %39 = tpu.matmul %34, %38, %cst_42 {dimension_numbers = #tpu.dot_dimension_numbers<[1], [0], [0], [1], [0, 0, 1, 1], [], []>} : vector<16x16xf32>, vector<16x384xf32>, vector<16x384xf32> -> vector<16x384xf32>
    %cst_43 = arith.constant dense<0.000000e+00> : vector<16xf32>
    %40 = vector.multi_reduction <add>, %39, %cst_43 [1] : vector<16x384xf32> to vector<16xf32>
    %41 = vector.shape_cast %40 : vector<16xf32> to vector<16x1xf32>
    %42 = vector.broadcast %41 : vector<16x1xf32> to vector<16x384xf32>
    %43 = arith.subf %33, %42 : vector<16x384xf32>
    %44 = vector.broadcast %0 : vector<1x384xf32> to vector<16x384xf32>
    %45 = arith.mulf %43, %44 : vector<16x384xf32>
    %46 = arith.mulf %45, %45 : vector<16x384xf32>
    %cst_44 = arith.constant dense<0.000000e+00> : vector<16x384xf32>
    %47 = tpu.matmul %34, %46, %cst_44 {dimension_numbers = #tpu.dot_dimension_numbers<[1], [0], [0], [1], [0, 0, 1, 1], [], []>} : vector<16x16xf32>, vector<16x384xf32>, vector<16x384xf32> -> vector<16x384xf32>
    %cst_45 = arith.constant dense<0.000000e+00> : vector<16xf32>
    %48 = vector.multi_reduction <add>, %47, %cst_45 [1] : vector<16x384xf32> to vector<16xf32>
    %49 = vector.shape_cast %48 : vector<16xf32> to vector<16x1xf32>
    %cst_46 = arith.constant 9.99999974E-6 : f32
    %50 = vector.broadcast %cst_46 : f32 to vector<16x1xf32>
    %51 = arith.addf %49, %50 : vector<16x1xf32>
    %52 = math.rsqrt %51 : vector<16x1xf32>
    %53 = vector.broadcast %52 : vector<16x1xf32> to vector<16x384xf32>
    %54 = arith.mulf %45, %53 : vector<16x384xf32>
    %55 = vector.broadcast %35 : vector<16x1xf32> to vector<16x384xf32>
    %56 = arith.mulf %54, %55 : vector<16x384xf32>
    %57 = vector.broadcast %36 : vector<16x1xf32> to vector<16x384xf32>
    %58 = arith.addf %56, %57 : vector<16x384xf32>
    %c0_47 = arith.constant 0 : index
    %c0_48 = arith.constant 0 : index
    %c0_49 = arith.constant 0 : index
    %59 = vector.load %arg2[%c0_47, %c0_48, %c0_49] : memref<1x16x1xf32, #tpu.memory_space<vmem>>, vector<1x16x1xf32>
    %60 = vector.shape_cast %59 : vector<1x16x1xf32> to vector<16x1xf32>
    %61 = vector.broadcast %60 : vector<16x1xf32> to vector<16x384xf32>
    %62 = arith.mulf %58, %61 : vector<16x384xf32>
    %c0_50 = arith.constant 0 : index
    %c0_51 = arith.constant 0 : index
    %c0_52 = arith.constant 0 : index
    %63 = vector.load %arg3[%c0_50, %c0_51, %c0_52] : memref<1x16x1xf32, #tpu.memory_space<vmem>>, vector<1x16x1xf32>
    %64 = vector.shape_cast %63 : vector<1x16x1xf32> to vector<16x1xf32>
    %65 = vector.broadcast %64 : vector<16x1xf32> to vector<16x384xf32>
    %66 = arith.addf %62, %65 : vector<16x384xf32>
    %67 = arith.negf %66 : vector<16x384xf32>
    %68 = math.exp %67 : vector<16x384xf32>
    %cst_53 = arith.constant 1.000000e+00 : f32
    %69 = vector.broadcast %cst_53 : f32 to vector<16x384xf32>
    %70 = arith.addf %69, %68 : vector<16x384xf32>
    %71 = arith.divf %69, %70 : vector<16x384xf32>
    %72 = arith.mulf %66, %71 : vector<16x384xf32>
    %73 = vector.broadcast %0 : vector<1x384xf32> to vector<16x384xf32>
    %74 = arith.mulf %72, %73 : vector<16x384xf32>
    %cst_54 = arith.constant 0.000000e+00 : bf16
    %75 = vector.broadcast %cst_54 : bf16 to vector<16x128xbf16>
    %c0_55 = arith.constant 0 : index
    %c0_56 = arith.constant 0 : index
    %76 = vector.load %arg18[%c0_55, %c0_56] : memref<16x640xbf16, #tpu.memory_space<vmem>>, vector<16x128xbf16>
    tpu.vector_store %arg18[%c0_55, %c0_56], %75 {strides = array<i32>} : memref<16x640xbf16, #tpu.memory_space<vmem>>, vector<16x128xbf16>,
    %cst_57 = arith.constant 0.000000e+00 : bf16
    %77 = vector.broadcast %cst_57 : bf16 to vector<16x128xbf16>
    %c0_58 = arith.constant 0 : index
    %c512 = arith.constant 512 : index
    %78 = vector.load %arg18[%c0_58, %c512] : memref<16x640xbf16, #tpu.memory_space<vmem>>, vector<16x128xbf16>
    tpu.vector_store %arg18[%c0_58, %c512], %77 {strides = array<i32>} : memref<16x640xbf16, #tpu.memory_space<vmem>>, vector<16x128xbf16>,
    %79 = arith.truncf %74 : vector<16x384xf32> to vector<16x384xbf16>
    %c0_59 = arith.constant 0 : index
    %c128_60 = arith.constant 128 : index
    %80 = vector.load %arg18[%c0_59, %c128_60] : memref<16x640xbf16, #tpu.memory_space<vmem>>, vector<16x384xbf16>
    tpu.vector_store %arg18[%c0_59, %c128_60], %79 {strides = array<i32>} : memref<16x640xbf16, #tpu.memory_space<vmem>>, vector<16x384xbf16>,
    %c0_61 = arith.constant 0 : index
    %c109_62 = arith.constant 109 : index
    %81 = vector.load %arg18[%c0_61, %c109_62] : memref<16x640xbf16, #tpu.memory_space<vmem>>, vector<16x384xbf16>
    %c0_63 = arith.constant 0 : index
    %c0_64 = arith.constant 0 : index
    %82 = vector.load %arg19[%c0_63, %c0_64] : memref<144x384xbf16, #tpu.memory_space<vmem>>, vector<16x384xbf16>
    tpu.vector_store %arg19[%c0_63, %c0_64], %81 {strides = array<i32>} : memref<144x384xbf16, #tpu.memory_space<vmem>>, vector<16x384xbf16>,
    %c0_65 = arith.constant 0 : index
    %c110_66 = arith.constant 110 : index
    %83 = vector.load %arg18[%c0_65, %c110_66] : memref<16x640xbf16, #tpu.memory_space<vmem>>, vector<16x384xbf16>
    %c16_67 = arith.constant 16 : index
    %c0_68 = arith.constant 0 : index
    %84 = vector.load %arg19[%c16_67, %c0_68] : memref<144x384xbf16, #tpu.memory_space<vmem>>, vector<16x384xbf16>
    tpu.vector_store %arg19[%c16_67, %c0_68], %83 {strides = array<i32>} : memref<144x384xbf16, #tpu.memory_space<vmem>>, vector<16x384xbf16>,
    %c0_69 = arith.constant 0 : index
    %c111_70 = arith.constant 111 : index
    %85 = vector.load %arg18[%c0_69, %c111_70] : memref<16x640xbf16, #tpu.memory_space<vmem>>, vector<16x384xbf16>
    %c32_71 = arith.constant 32 : index
    %c0_72 = arith.constant 0 : index
    %86 = vector.load %arg19[%c32_71, %c0_72] : memref<144x384xbf16, #tpu.memory_space<vmem>>, vector<16x384xbf16>
    tpu.vector_store %arg19[%c32_71, %c0_72], %85 {strides = array<i32>} : memref<144x384xbf16, #tpu.memory_space<vmem>>, vector<16x384xbf16>,
    %c0_73 = arith.constant 0 : index
    %c127_74 = arith.constant 127 : index
    %87 = vector.load %arg18[%c0_73, %c127_74] : memref<16x640xbf16, #tpu.memory_space<vmem>>, vector<16x384xbf16>
    %c48_75 = arith.constant 48 : index
    %c0_76 = arith.constant 0 : index
    %88 = vector.load %arg19[%c48_75, %c0_76] : memref<144x384xbf16, #tpu.memory_space<vmem>>, vector<16x384xbf16>
    tpu.vector_store %arg19[%c48_75, %c0_76], %87 {strides = array<i32>} : memref<144x384xbf16, #tpu.memory_space<vmem>>, vector<16x384xbf16>,
    %c0_77 = arith.constant 0 : index
    %c128_78 = arith.constant 128 : index
    %89 = vector.load %arg18[%c0_77, %c128_78] : memref<16x640xbf16, #tpu.memory_space<vmem>>, vector<16x384xbf16>
    %c64_79 = arith.constant 64 : index
    %c0_80 = arith.constant 0 : index
    %90 = vector.load %arg19[%c64_79, %c0_80] : memref<144x384xbf16, #tpu.memory_space<vmem>>, vector<16x384xbf16>
    tpu.vector_store %arg19[%c64_79, %c0_80], %89 {strides = array<i32>} : memref<144x384xbf16, #tpu.memory_space<vmem>>, vector<16x384xbf16>,
    %c0_81 = arith.constant 0 : index
    %c129_82 = arith.constant 129 : index
    %91 = vector.load %arg18[%c0_81, %c129_82] : memref<16x640xbf16, #tpu.memory_space<vmem>>, vector<16x384xbf16>
    %c80_83 = arith.constant 80 : index
    %c0_84 = arith.constant 0 : index
    %92 = vector.load %arg19[%c80_83, %c0_84] : memref<144x384xbf16, #tpu.memory_space<vmem>>, vector<16x384xbf16>
    tpu.vector_store %arg19[%c80_83, %c0_84], %91 {strides = array<i32>} : memref<144x384xbf16, #tpu.memory_space<vmem>>, vector<16x384xbf16>,
    %c0_85 = arith.constant 0 : index
    %c145_86 = arith.constant 145 : index
    %93 = vector.load %arg18[%c0_85, %c145_86] : memref<16x640xbf16, #tpu.memory_space<vmem>>, vector<16x384xbf16>
    %c96_87 = arith.constant 96 : index
    %c0_88 = arith.constant 0 : index
    %94 = vector.load %arg19[%c96_87, %c0_88] : memref<144x384xbf16, #tpu.memory_space<vmem>>, vector<16x384xbf16>
    tpu.vector_store %arg19[%c96_87, %c0_88], %93 {strides = array<i32>} : memref<144x384xbf16, #tpu.memory_space<vmem>>, vector<16x384xbf16>,
    %c0_89 = arith.constant 0 : index
    %c146_90 = arith.constant 146 : index
    %95 = vector.load %arg18[%c0_89, %c146_90] : memref<16x640xbf16, #tpu.memory_space<vmem>>, vector<16x384xbf16>
    %c112_91 = arith.constant 112 : index
    %c0_92 = arith.constant 0 : index
    %96 = vector.load %arg19[%c112_91, %c0_92] : memref<144x384xbf16, #tpu.memory_space<vmem>>, vector<16x384xbf16>
    tpu.vector_store %arg19[%c112_91, %c0_92], %95 {strides = array<i32>} : memref<144x384xbf16, #tpu.memory_space<vmem>>, vector<16x384xbf16>,
    %c0_93 = arith.constant 0 : index
    %c147_94 = arith.constant 147 : index
    %97 = vector.load %arg18[%c0_93, %c147_94] : memref<16x640xbf16, #tpu.memory_space<vmem>>, vector<16x384xbf16>
    %c128_95 = arith.constant 128 : index
    %c0_96 = arith.constant 0 : index
    %98 = vector.load %arg19[%c128_95, %c0_96] : memref<144x384xbf16, #tpu.memory_space<vmem>>, vector<16x384xbf16>
    tpu.vector_store %arg19[%c128_95, %c0_96], %97 {strides = array<i32>} : memref<144x384xbf16, #tpu.memory_space<vmem>>, vector<16x384xbf16>,
    %c0_97 = arith.constant 0 : index
    %c0_98 = arith.constant 0 : index
    %99 = vector.load %arg9[%c0_97, %c0_98] : memref<16x144xbf16, #tpu.memory_space<vmem>>, vector<16x144xbf16>
    %c0_99 = arith.constant 0 : index
    %c0_100 = arith.constant 0 : index
    %100 = vector.load %arg19[%c0_99, %c0_100] : memref<144x384xbf16, #tpu.memory_space<vmem>>, vector<144x384xbf16>
    %cst_101 = arith.constant dense<0.000000e+00> : vector<16x384xf32>
    %101 = tpu.matmul %99, %100, %cst_101 {dimension_numbers = #tpu.dot_dimension_numbers<[1], [0], [0], [1], [0, 0, 1, 1], [], []>} : vector<16x144xbf16>, vector<144x384xbf16>, vector<16x384xf32> -> vector<16x384xf32>
    %c0_102 = arith.constant 0 : index
    %c0_103 = arith.constant 0 : index
    %102 = vector.load %arg10[%c0_102, %c0_103] : memref<16x1xf32, #tpu.memory_space<vmem>>, vector<16x1xf32>
    %103 = vector.broadcast %102 : vector<16x1xf32> to vector<16x384xf32>
    %104 = arith.addf %101, %103 : vector<16x384xf32>
    %c0_104 = arith.constant 0 : index
    %c0_105 = arith.constant 0 : index
    %105 = vector.load %arg15[%c0_104, %c0_105] : memref<16x16xf32, #tpu.memory_space<vmem>>, vector<16x16xf32>
    %c0_106 = arith.constant 0 : index
    %c0_107 = arith.constant 0 : index
    %106 = vector.load %arg11[%c0_106, %c0_107] : memref<16x1xf32, #tpu.memory_space<vmem>>, vector<16x1xf32>
    %c0_108 = arith.constant 0 : index
    %c0_109 = arith.constant 0 : index
    %107 = vector.load %arg12[%c0_108, %c0_109] : memref<16x1xf32, #tpu.memory_space<vmem>>, vector<16x1xf32>
    %108 = vector.broadcast %0 : vector<1x384xf32> to vector<16x384xf32>
    %109 = arith.mulf %104, %108 : vector<16x384xf32>
    %cst_110 = arith.constant dense<0.000000e+00> : vector<16x384xf32>
    %110 = tpu.matmul %105, %109, %cst_110 {dimension_numbers = #tpu.dot_dimension_numbers<[1], [0], [0], [1], [0, 0, 1, 1], [], []>} : vector<16x16xf32>, vector<16x384xf32>, vector<16x384xf32> -> vector<16x384xf32>
    %cst_111 = arith.constant dense<0.000000e+00> : vector<16xf32>
    %111 = vector.multi_reduction <add>, %110, %cst_111 [1] : vector<16x384xf32> to vector<16xf32>
    %112 = vector.shape_cast %111 : vector<16xf32> to vector<16x1xf32>
    %113 = vector.broadcast %112 : vector<16x1xf32> to vector<16x384xf32>
    %114 = arith.subf %104, %113 : vector<16x384xf32>
    %115 = vector.broadcast %0 : vector<1x384xf32> to vector<16x384xf32>
    %116 = arith.mulf %114, %115 : vector<16x384xf32>
    %117 = arith.mulf %116, %116 : vector<16x384xf32>
    %cst_112 = arith.constant dense<0.000000e+00> : vector<16x384xf32>
    %118 = tpu.matmul %105, %117, %cst_112 {dimension_numbers = #tpu.dot_dimension_numbers<[1], [0], [0], [1], [0, 0, 1, 1], [], []>} : vector<16x16xf32>, vector<16x384xf32>, vector<16x384xf32> -> vector<16x384xf32>
    %cst_113 = arith.constant dense<0.000000e+00> : vector<16xf32>
    %119 = vector.multi_reduction <add>, %118, %cst_113 [1] : vector<16x384xf32> to vector<16xf32>
    %120 = vector.shape_cast %119 : vector<16xf32> to vector<16x1xf32>
    %cst_114 = arith.constant 9.99999974E-6 : f32
    %121 = vector.broadcast %cst_114 : f32 to vector<16x1xf32>
    %122 = arith.addf %120, %121 : vector<16x1xf32>
    %123 = math.rsqrt %122 : vector<16x1xf32>
    %124 = vector.broadcast %123 : vector<16x1xf32> to vector<16x384xf32>
    %125 = arith.mulf %116, %124 : vector<16x384xf32>
    %126 = vector.broadcast %106 : vector<16x1xf32> to vector<16x384xf32>
    %127 = arith.mulf %125, %126 : vector<16x384xf32>
    %128 = vector.broadcast %107 : vector<16x1xf32> to vector<16x384xf32>
    %129 = arith.addf %127, %128 : vector<16x384xf32>
    %130 = arith.negf %129 : vector<16x384xf32>
    %131 = math.exp %130 : vector<16x384xf32>
    %cst_115 = arith.constant 1.000000e+00 : f32
    %132 = vector.broadcast %cst_115 : f32 to vector<16x384xf32>
    %133 = arith.addf %132, %131 : vector<16x384xf32>
    %134 = arith.divf %132, %133 : vector<16x384xf32>
    %135 = arith.mulf %129, %134 : vector<16x384xf32>
    %c64_116 = arith.constant 64 : index
    %c0_117 = arith.constant 0 : index
    %136 = vector.load %arg17[%c64_116, %c0_117] : memref<144x384xbf16, #tpu.memory_space<vmem>>, vector<16x384xbf16>
    %c0_118 = arith.constant 0 : index
    %c0_119 = arith.constant 0 : index
    %137 = vector.load %arg13[%c0_118, %c0_119] : memref<16x16xbf16, #tpu.memory_space<vmem>>, vector<16x16xbf16>
    %cst_120 = arith.constant dense<0.000000e+00> : vector<16x384xf32>
    %138 = tpu.matmul %137, %136, %cst_120 {dimension_numbers = #tpu.dot_dimension_numbers<[1], [0], [0], [1], [0, 0, 1, 1], [], []>} : vector<16x16xbf16>, vector<16x384xbf16>, vector<16x384xf32> -> vector<16x384xf32>
    %c0_121 = arith.constant 0 : index
    %c0_122 = arith.constant 0 : index
    %139 = vector.load %arg14[%c0_121, %c0_122] : memref<16x1xf32, #tpu.memory_space<vmem>>, vector<16x1xf32>
    %140 = vector.broadcast %139 : vector<16x1xf32> to vector<16x384xf32>
    %141 = arith.addf %138, %140 : vector<16x384xf32>
    %142 = arith.addf %135, %141 : vector<16x384xf32>
    %c0_123 = arith.constant 0 : index
    %c0_124 = arith.constant 0 : index
    %c0_125 = arith.constant 0 : index
    %143 = vector.load %arg16[%c0_123, %c0_124, %c0_125] : memref<1x16x384xf32, #tpu.memory_space<vmem>>, vector<1x16x384xf32>
    %144 = vector.shape_cast %143 : vector<1x16x384xf32> to vector<16x384xf32>
    %145 = vector.shape_cast %142 : vector<16x384xf32> to vector<1x16x384xf32>
    tpu.vector_store %arg16[%c0_123, %c0_124, %c0_125], %145 {strides = array<i32>} : memref<1x16x384xf32, #tpu.memory_space<vmem>>, vector<1x16x384xf32>,
    return
  }
  func.func @transform_0(%arg0: i32) -> (i32, i32, i32) {
    %c0_i32 = arith.constant 0 : i32
    %c0_i32_0 = arith.constant 0 : i32
    %c0_i32_1 = arith.constant 0 : i32
    return %arg0, %c0_i32, %c0_i32_0 : i32, i32, i32
  }
  func.func @transform_1(%arg0: i32) -> (i32, i32, i32) {
    %c0_i32 = arith.constant 0 : i32
    %c0_i32_0 = arith.constant 0 : i32
    %c0_i32_1 = arith.constant 0 : i32
    return %arg0, %c0_i32, %c0_i32_0 : i32, i32, i32
  }
  func.func @transform_2(%arg0: i32) -> (i32, i32, i32) {
    %c0_i32 = arith.constant 0 : i32
    %c0_i32_0 = arith.constant 0 : i32
    %c0_i32_1 = arith.constant 0 : i32
    return %arg0, %c0_i32, %c0_i32_0 : i32, i32, i32
  }
  func.func @transform_3(%arg0: i32) -> (i32, i32) {
    %c0_i32 = arith.constant 0 : i32
    %c0_i32_0 = arith.constant 0 : i32
    %c0_i32_1 = arith.constant 0 : i32
    return %c0_i32, %c0_i32_0 : i32, i32
  }
  func.func @transform_4(%arg0: i32) -> (i32, i32) {
    %c0_i32 = arith.constant 0 : i32
    %c0_i32_0 = arith.constant 0 : i32
    %c0_i32_1 = arith.constant 0 : i32
    return %c0_i32, %c0_i32_0 : i32, i32
  }
  func.func @transform_5(%arg0: i32) -> (i32, i32) {
    %c0_i32 = arith.constant 0 : i32
    %c0_i32_0 = arith.constant 0 : i32
    %c0_i32_1 = arith.constant 0 : i32
    return %c0_i32, %c0_i32_0 : i32, i32
  }
  func.func @transform_6(%arg0: i32) -> (i32, i32) {
    %c0_i32 = arith.constant 0 : i32
    %c0_i32_0 = arith.constant 0 : i32
    %c0_i32_1 = arith.constant 0 : i32
    return %c0_i32, %c0_i32_0 : i32, i32
  }
  func.func @transform_7(%arg0: i32) -> (i32, i32) {
    %c0_i32 = arith.constant 0 : i32
    %c0_i32_0 = arith.constant 0 : i32
    %c0_i32_1 = arith.constant 0 : i32
    return %c0_i32, %c0_i32_0 : i32, i32
  }
  func.func @transform_8(%arg0: i32) -> (i32, i32) {
    %c0_i32 = arith.constant 0 : i32
    %c0_i32_0 = arith.constant 0 : i32
    %c0_i32_1 = arith.constant 0 : i32
    return %c0_i32, %c0_i32_0 : i32, i32
  }
  func.func @transform_9(%arg0: i32) -> (i32, i32) {
    %c0_i32 = arith.constant 0 : i32
    %c0_i32_0 = arith.constant 0 : i32
    %c0_i32_1 = arith.constant 0 : i32
    return %c0_i32, %c0_i32_0 : i32, i32
  }
  func.func @transform_10(%arg0: i32) -> (i32, i32) {
    %c0_i32 = arith.constant 0 : i32
    %c0_i32_0 = arith.constant 0 : i32
    %c0_i32_1 = arith.constant 0 : i32
    return %c0_i32, %c0_i32_0 : i32, i32
  }
  func.func @transform_11(%arg0: i32) -> (i32, i32) {
    %c0_i32 = arith.constant 0 : i32
    %c0_i32_0 = arith.constant 0 : i32
    %c0_i32_1 = arith.constant 0 : i32
    return %c0_i32, %c0_i32_0 : i32, i32
  }
  func.func @transform_12(%arg0: i32) -> (i32, i32) {
    %c0_i32 = arith.constant 0 : i32
    %c0_i32_0 = arith.constant 0 : i32
    %c0_i32_1 = arith.constant 0 : i32
    return %c0_i32, %c0_i32_0 : i32, i32
  }
  func.func @transform_13(%arg0: i32) -> (i32, i32) {
    %c0_i32 = arith.constant 0 : i32
    %c0_i32_0 = arith.constant 0 : i32
    %c0_i32_1 = arith.constant 0 : i32
    return %c0_i32, %c0_i32_0 : i32, i32
  }
  func.func @transform_14(%arg0: i32) -> (i32, i32) {
    %c0_i32 = arith.constant 0 : i32
    %c0_i32_0 = arith.constant 0 : i32
    %c0_i32_1 = arith.constant 0 : i32
    return %c0_i32, %c0_i32_0 : i32, i32
  }
  func.func @transform_15(%arg0: i32) -> (i32, i32, i32) {
    %c0_i32 = arith.constant 0 : i32
    %c0_i32_0 = arith.constant 0 : i32
    %c0_i32_1 = arith.constant 0 : i32
    return %arg0, %c0_i32, %c0_i32_0 : i32, i32, i32
  }
}

</mosaic_0001>

<llo_original>
// kernel: tpu_custom_call.1
$region0: #{tpu_custom_call.1}
  #allocation0 [shape = 'u32[]', space=smem, size = 0x4, offset = 0x4, fixed_abs, tag = 'smem constant byte address 0x4 - core index']
  #allocation1 [shape = 'u32[144,128]{1,0:T(1,128)}', space=vmem, size = 0x12000, scoped, tag = 'internal scratch']
  #allocation2 [shape = 'bf16[144,384]{1,0:T(8,128)(2,1)}', space=vmem, size = 0x1b000, scoped, tag = 'scratch operand']
  #allocation3 [shape = 'bf16[16,640]{1,0:T(8,128)(2,1)}', space=vmem, size = 0x5000, scoped, tag = 'scratch operand']
  #allocation4 [shape = 'bf16[144,384]{1,0:T(8,128)(2,1)}', space=vmem, size = 0x1b000, scoped, tag = 'scratch operand']
  %s0 = inlined_call_operand.vmem [shape: bf16[2,16,640], index: 0, kind: input, shape index: {}]
  %s1 = inlined_call_operand.vmem [shape: f32[2,16,1], index: 1, kind: input, shape index: {}]
  %s2 = inlined_call_operand.vmem [shape: f32[2,16,1], index: 2, kind: input, shape index: {}]
  %s3 = inlined_call_operand.vmem [shape: f32[1,384], index: 3, kind: input, shape index: {}]
  %s4 = inlined_call_operand.vmem [shape: bf16[16,144], index: 4, kind: input, shape index: {}]
  %s5 = inlined_call_operand.vmem [shape: f32[16,1], index: 5, kind: input, shape index: {}]
  %s6 = inlined_call_operand.vmem [shape: f32[16,1], index: 6, kind: input, shape index: {}]
  %s7 = inlined_call_operand.vmem [shape: f32[16,1], index: 7, kind: input, shape index: {}]
  %s8 = inlined_call_operand.vmem [shape: bf16[16,144], index: 8, kind: input, shape index: {}]
  %s9 = inlined_call_operand.vmem [shape: f32[16,1], index: 9, kind: input, shape index: {}]
  %s10 = inlined_call_operand.vmem [shape: f32[16,1], index: 10, kind: input, shape index: {}]
  %s11 = inlined_call_operand.vmem [shape: f32[16,1], index: 11, kind: input, shape index: {}]
  %s12 = inlined_call_operand.vmem [shape: bf16[16,16], index: 12, kind: input, shape index: {}]
  %s13 = inlined_call_operand.vmem [shape: f32[16,1], index: 13, kind: input, shape index: {}]
  %s14 = inlined_call_operand.vmem [shape: f32[16,16], index: 14, kind: input, shape index: {}]
  %s15 = inlined_call_operand.hbm [shape: f32[2,16,384], index: 15, kind: output, shape index: {}]
  %s16 = sld [smem:[#allocation0]]
  $region93: #{tpu_custom_call.1} parent=0
    _
  %s18 = ssub.s32 1, %s16
  %s19 = scalar_select 0, %s18, %s16
  $region1: #{tpu_custom_call.1} parent=0
    #allocation5 [shape = 'u8[49152]{0}', space=vmem, size = 0xc000, scoped, tag = 'output window, operand 0']
    #allocation6 [shape = 's32[2]{0}', space=sflag, size = 0x8, scoped, tag = 'scoped memory for tpu_custom_call.1']
    %20 = vsyncpa [#allocation6], 0
    %s21 = scalar_lea.sflag [#allocation6], 1
    %22 = vsyncpa %s21, 0
    loop: start=0, step=1, limit=4
    $region2: #{tpu_custom_call.1} parent=1 // loop_pre_header
      _
    $region3: #{tpu_custom_call.1} parent=1 // loop_header
      %s24 = sphi 0, %s28
      %p25 = scmp.ge.s32.totalorder %s24, 4
      %s34 = sphi 0, %s36
      %s37 = sphi 0, %s34
      %s38 = sphi 0, %s37
      %s54 = sphi 0, %s38
      %s60 = sphi 0, %s62
      %s63 = sphi 0, %s60
      %s64 = sphi 0, %s63
      %s80 = sphi 0, %s64
      %s86 = sphi 0, %s88
      %s89 = sphi 0, %s86
      %s90 = sphi 0, %s89
      %s106 = sphi 0, %s90
      %s110 = sphi 0, %s110
      %s112 = sphi 0, %s110
      %s113 = sphi 0, %s112
      %s127 = sphi 0, %s113
      %s131 = sphi 0, %s131
      %s133 = sphi 0, %s131
      %s134 = sphi 0, %s133
      %s148 = sphi 0, %s134
      %s152 = sphi 0, %s152
      %s154 = sphi 0, %s152
      %s155 = sphi 0, %s154
      %s169 = sphi 0, %s155
      %s173 = sphi 0, %s173
      %s175 = sphi 0, %s173
      %s176 = sphi 0, %s175
      %s190 = sphi 0, %s176
      %s194 = sphi 0, %s194
      %s196 = sphi 0, %s194
      %s197 = sphi 0, %s196
      %s211 = sphi 0, %s197
      %s215 = sphi 0, %s215
      %s217 = sphi 0, %s215
      %s218 = sphi 0, %s217
      %s232 = sphi 0, %s218
      %s236 = sphi 0, %s236
      %s238 = sphi 0, %s236
      %s239 = sphi 0, %s238
      %s253 = sphi 0, %s239
      %s257 = sphi 0, %s257
      %s259 = sphi 0, %s257
      %s260 = sphi 0, %s259
      %s274 = sphi 0, %s260
      %s278 = sphi 0, %s278
      %s280 = sphi 0, %s278
      %s281 = sphi 0, %s280
      %s295 = sphi 0, %s281
      %s299 = sphi 0, %s299
      %s301 = sphi 0, %s299
      %s302 = sphi 0, %s301
      %s316 = sphi 0, %s302
      %s320 = sphi 0, %s320
      %s322 = sphi 0, %s320
      %s323 = sphi 0, %s322
      %s337 = sphi 0, %s323
      %s341 = sphi 0, %s341
      %s343 = sphi 0, %s341
      %s344 = sphi 0, %s343
      %s358 = sphi 0, %s344
      %s364 = sphi 0, %s366
      %s367 = sphi 0, %s364
      %s368 = sphi 0, %s367
      %s384 = sphi 0, %s368
    $region4: #{tpu_custom_call.1} parent=1 // loop_header_branch
      %27 = sbr.rel (%p25) target = $region8
    $region5: #{tpu_custom_call.1} parent=1 // loop_body
      %s29 = ssub.s32 %s24, 1
      %s30 = ssub.s32 %s24, 2
      %s31 = sadd.s32 %s24, 1
      %s32 = ssub.s32 %s24, %s31
      %p33 = scmp.eq.s32.totalorder %s32, 0
      %s35 = sadd.s32 %s34, 1
      %s36 = scalar_select %p33, %s34, %s35
      %p39 = pneg %p33
      %p40 = scmp.eq.s32.totalorder %s24, 1
      %p41 = por %p39, %p40
      %p42 = scmp.ne.s32.totalorder %s34, %s37
      %p43 = scmp.eq.s32.totalorder %s24, 0
      %p44 = por %p42, %p43
      %p45 = scmp.ne.s32.totalorder %s34, %s37
      %p46 = scmp.eq.s32.totalorder %s29, 1
      %p47 = por %p45, %p46
      %p48 = scmp.ne.s32.totalorder %s37, %s38
      %p49 = scmp.eq.s32.totalorder %s29, 0
      %p50 = por %p48, %p49
      %p51 = scmp.ne.s32.totalorder %s37, %s38
      %p52 = scmp.eq.s32.totalorder %s30, 1
      %p53 = por %p51, %p52
      %p55 = scmp.ne.s32.totalorder %s38, %s54
      %p56 = scmp.eq.s32.totalorder %s30, 0
      %p57 = por %p55, %p56
      %s58 = ssub.s32 %s24, %s31
      %p59 = scmp.eq.s32.totalorder %s58, 0
      %s61 = sadd.s32 %s60, 1
      %s62 = scalar_select %p59, %s60, %s61
      %p65 = pneg %p59
      %p66 = scmp.eq.s32.totalorder %s24, 1
      %p67 = por %p65, %p66
      %p68 = scmp.ne.s32.totalorder %s60, %s63
      %p69 = scmp.eq.s32.totalorder %s24, 0
      %p70 = por %p68, %p69
      %p71 = scmp.ne.s32.totalorder %s60, %s63
      %p72 = scmp.eq.s32.totalorder %s29, 1
      %p73 = por %p71, %p72
      %p74 = scmp.ne.s32.totalorder %s63, %s64
      %p75 = scmp.eq.s32.totalorder %s29, 0
      %p76 = por %p74, %p75
      %p77 = scmp.ne.s32.totalorder %s63, %s64
      %p78 = scmp.eq.s32.totalorder %s30, 1
      %p79 = por %p77, %p78
      %p81 = scmp.ne.s32.totalorder %s64, %s80
      %p82 = scmp.eq.s32.totalorder %s30, 0
      %p83 = por %p81, %p82
      %s84 = ssub.s32 %s24, %s31
      %p85 = scmp.eq.s32.totalorder %s84, 0
      %s87 = sadd.s32 %s86, 1
      %s88 = scalar_select %p85, %s86, %s87
      %p91 = pneg %p85
      %p92 = scmp.eq.s32.totalorder %s24, 1
      %p93 = por %p91, %p92
      %p94 = scmp.ne.s32.totalorder %s86, %s89
      %p95 = scmp.eq.s32.totalorder %s24, 0
      %p96 = por %p94, %p95
      %p97 = scmp.ne.s32.totalorder %s86, %s89
      %p98 = scmp.eq.s32.totalorder %s29, 1
      %p99 = por %p97, %p98
      %p100 = scmp.ne.s32.totalorder %s89, %s90
      %p101 = scmp.eq.s32.totalorder %s29, 0
      %p102 = por %p100, %p101
      %p103 = scmp.ne.s32.totalorder %s89, %s90
      %p104 = scmp.eq.s32.totalorder %s30, 1
      %p105 = por %p103, %p104
      %p107 = scmp.ne.s32.totalorder %s90, %s106
      %p108 = scmp.eq.s32.totalorder %s30, 0
      %p109 = por %p107, %p108
      %s111 = sadd.s32 %s110, 1
      %p114 = scmp.eq.s32.totalorder %s24, 1
      %p115 = scmp.ne.s32.totalorder %s110, %s112
      %p116 = scmp.eq.s32.totalorder %s24, 0
      %p117 = por %p115, %p116
      %p118 = scmp.ne.s32.totalorder %s110, %s112
      %p119 = scmp.eq.s32.totalorder %s29, 1
      %p120 = por %p118, %p119
      %p121 = scmp.ne.s32.totalorder %s112, %s113
      %p122 = scmp.eq.s32.totalorder %s29, 0
      %p123 = por %p121, %p122
      %p124 = scmp.ne.s32.totalorder %s112, %s113
      %p125 = scmp.eq.s32.totalorder %s30, 1
      %p126 = por %p124, %p125
      %p128 = scmp.ne.s32.totalorder %s113, %s127
      %p129 = scmp.eq.s32.totalorder %s30, 0
      %p130 = por %p128, %p129
      %s132 = sadd.s32 %s131, 1
      %p135 = scmp.eq.s32.totalorder %s24, 1
      %p136 = scmp.ne.s32.totalorder %s131, %s133
      %p137 = scmp.eq.s32.totalorder %s24, 0
      %p138 = por %p136, %p137
      %p139 = scmp.ne.s32.totalorder %s131, %s133
      %p140 = scmp.eq.s32.totalorder %s29, 1
      %p141 = por %p139, %p140
      %p142 = scmp.ne.s32.totalorder %s133, %s134
      %p143 = scmp.eq.s32.totalorder %s29, 0
      %p144 = por %p142, %p143
      %p145 = scmp.ne.s32.totalorder %s133, %s134
      %p146 = scmp.eq.s32.totalorder %s30, 1
      %p147 = por %p145, %p146
      %p149 = scmp.ne.s32.totalorder %s134, %s148
      %p150 = scmp.eq.s32.totalorder %s30, 0
      %p151 = por %p149, %p150
      %s153 = sadd.s32 %s152, 1
      %p156 = scmp.eq.s32.totalorder %s24, 1
      %p157 = scmp.ne.s32.totalorder %s152, %s154
      %p158 = scmp.eq.s32.totalorder %s24, 0
      %p159 = por %p157, %p158
      %p160 = scmp.ne.s32.totalorder %s152, %s154
      %p161 = scmp.eq.s32.totalorder %s29, 1
      %p162 = por %p160, %p161
      %p163 = scmp.ne.s32.totalorder %s154, %s155
      %p164 = scmp.eq.s32.totalorder %s29, 0
      %p165 = por %p163, %p164
      %p166 = scmp.ne.s32.totalorder %s154, %s155
      %p167 = scmp.eq.s32.totalorder %s30, 1
      %p168 = por %p166, %p167
      %p170 = scmp.ne.s32.totalorder %s155, %s169
      %p171 = scmp.eq.s32.totalorder %s30, 0
      %p172 = por %p170, %p171
      %s174 = sadd.s32 %s173, 1
      %p177 = scmp.eq.s32.totalorder %s24, 1
      %p178 = scmp.ne.s32.totalorder %s173, %s175
      %p179 = scmp.eq.s32.totalorder %s24, 0
      %p180 = por %p178, %p179
      %p181 = scmp.ne.s32.totalorder %s173, %s175
      %p182 = scmp.eq.s32.totalorder %s29, 1
      %p183 = por %p181, %p182
      %p184 = scmp.ne.s32.totalorder %s175, %s176
      %p185 = scmp.eq.s32.totalorder %s29, 0
      %p186 = por %p184, %p185
      %p187 = scmp.ne.s32.totalorder %s175, %s176
      %p188 = scmp.eq.s32.totalorder %s30, 1
      %p189 = por %p187, %p188
      %p191 = scmp.ne.s32.totalorder %s176, %s190
      %p192 = scmp.eq.s32.totalorder %s30, 0
      %p193 = por %p191, %p192
      %s195 = sadd.s32 %s194, 1
      %p198 = scmp.eq.s32.totalorder %s24, 1
      %p199 = scmp.ne.s32.totalorder %s194, %s196
      %p200 = scmp.eq.s32.totalorder %s24, 0
      %p201 = por %p199, %p200
      %p202 = scmp.ne.s32.totalorder %s194, %s196
      %p203 = scmp.eq.s32.totalorder %s29, 1
      %p204 = por %p202, %p203
      %p205 = scmp.ne.s32.totalorder %s196, %s197
      %p206 = scmp.eq.s32.totalorder %s29, 0
      %p207 = por %p205, %p206
      %p208 = scmp.ne.s32.totalorder %s196, %s197
      %p209 = scmp.eq.s32.totalorder %s30, 1
      %p210 = por %p208, %p209
      %p212 = scmp.ne.s32.totalorder %s197, %s211
      %p213 = scmp.eq.s32.totalorder %s30, 0
      %p214 = por %p212, %p213
      %s216 = sadd.s32 %s215, 1
      %p219 = scmp.eq.s32.totalorder %s24, 1
      %p220 = scmp.ne.s32.totalorder %s215, %s217
      %p221 = scmp.eq.s32.totalorder %s24, 0
      %p222 = por %p220, %p221
      %p223 = scmp.ne.s32.totalorder %s215, %s217
      %p224 = scmp.eq.s32.totalorder %s29, 1
      %p225 = por %p223, %p224
      %p226 = scmp.ne.s32.totalorder %s217, %s218
      %p227 = scmp.eq.s32.totalorder %s29, 0
      %p228 = por %p226, %p227
      %p229 = scmp.ne.s32.totalorder %s217, %s218
      %p230 = scmp.eq.s32.totalorder %s30, 1
      %p231 = por %p229, %p230
      %p233 = scmp.ne.s32.totalorder %s218, %s232
      %p234 = scmp.eq.s32.totalorder %s30, 0
      %p235 = por %p233, %p234
      %s237 = sadd.s32 %s236, 1
      %p240 = scmp.eq.s32.totalorder %s24, 1
      %p241 = scmp.ne.s32.totalorder %s236, %s238
      %p242 = scmp.eq.s32.totalorder %s24, 0
      %p243 = por %p241, %p242
      %p244 = scmp.ne.s32.totalorder %s236, %s238
      %p245 = scmp.eq.s32.totalorder %s29, 1
      %p246 = por %p244, %p245
      %p247 = scmp.ne.s32.totalorder %s238, %s239
      %p248 = scmp.eq.s32.totalorder %s29, 0
      %p249 = por %p247, %p248
      %p250 = scmp.ne.s32.totalorder %s238, %s239
      %p251 = scmp.eq.s32.totalorder %s30, 1
      %p252 = por %p250, %p251
      %p254 = scmp.ne.s32.totalorder %s239, %s253
      %p255 = scmp.eq.s32.totalorder %s30, 0
      %p256 = por %p254, %p255
      %s258 = sadd.s32 %s257, 1
      %p261 = scmp.eq.s32.totalorder %s24, 1
      %p262 = scmp.ne.s32.totalorder %s257, %s259
      %p263 = scmp.eq.s32.totalorder %s24, 0
      %p264 = por %p262, %p263
      %p265 = scmp.ne.s32.totalorder %s257, %s259
      %p266 = scmp.eq.s32.totalorder %s29, 1
      %p267 = por %p265, %p266
      %p268 = scmp.ne.s32.totalorder %s259, %s260
      %p269 = scmp.eq.s32.totalorder %s29, 0
      %p270 = por %p268, %p269
      %p271 = scmp.ne.s32.totalorder %s259, %s260
      %p272 = scmp.eq.s32.totalorder %s30, 1
      %p273 = por %p271, %p272
      %p275 = scmp.ne.s32.totalorder %s260, %s274
      %p276 = scmp.eq.s32.totalorder %s30, 0
      %p277 = por %p275, %p276
      %s279 = sadd.s32 %s278, 1
      %p282 = scmp.eq.s32.totalorder %s24, 1
      %p283 = scmp.ne.s32.totalorder %s278, %s280
      %p284 = scmp.eq.s32.totalorder %s24, 0
      %p285 = por %p283, %p284
      %p286 = scmp.ne.s32.totalorder %s278, %s280
      %p287 = scmp.eq.s32.totalorder %s29, 1
      %p288 = por %p286, %p287
      %p289 = scmp.ne.s32.totalorder %s280, %s281
      %p290 = scmp.eq.s32.totalorder %s29, 0
      %p291 = por %p289, %p290
      %p292 = scmp.ne.s32.totalorder %s280, %s281
      %p293 = scmp.eq.s32.totalorder %s30, 1
      %p294 = por %p292, %p293
      %p296 = scmp.ne.s32.totalorder %s281, %s295
      %p297 = scmp.eq.s32.totalorder %s30, 0
      %p298 = por %p296, %p297
      %s300 = sadd.s32 %s299, 1
      %p303 = scmp.eq.s32.totalorder %s24, 1
      %p304 = scmp.ne.s32.totalorder %s299, %s301
      %p305 = scmp.eq.s32.totalorder %s24, 0
      %p306 = por %p304, %p305
      %p307 = scmp.ne.s32.totalorder %s299, %s301
      %p308 = scmp.eq.s32.totalorder %s29, 1
      %p309 = por %p307, %p308
      %p310 = scmp.ne.s32.totalorder %s301, %s302
      %p311 = scmp.eq.s32.totalorder %s29, 0
      %p312 = por %p310, %p311
      %p313 = scmp.ne.s32.totalorder %s301, %s302
      %p314 = scmp.eq.s32.totalorder %s30, 1
      %p315 = por %p313, %p314
      %p317 = scmp.ne.s32.totalorder %s302, %s316
      %p318 = scmp.eq.s32.totalorder %s30, 0
      %p319 = por %p317, %p318
      %s321 = sadd.s32 %s320, 1
      %p324 = scmp.eq.s32.totalorder %s24, 1
      %p325 = scmp.ne.s32.totalorder %s320, %s322
      %p326 = scmp.eq.s32.totalorder %s24, 0
      %p327 = por %p325, %p326
      %p328 = scmp.ne.s32.totalorder %s320, %s322
      %p329 = scmp.eq.s32.totalorder %s29, 1
      %p330 = por %p328, %p329
      %p331 = scmp.ne.s32.totalorder %s322, %s323
      %p332 = scmp.eq.s32.totalorder %s29, 0
      %p333 = por %p331, %p332
      %p334 = scmp.ne.s32.totalorder %s322, %s323
      %p335 = scmp.eq.s32.totalorder %s30, 1
      %p336 = por %p334, %p335
      %p338 = scmp.ne.s32.totalorder %s323, %s337
      %p339 = scmp.eq.s32.totalorder %s30, 0
      %p340 = por %p338, %p339
      %s342 = sadd.s32 %s341, 1
      %p345 = scmp.eq.s32.totalorder %s24, 1
      %p346 = scmp.ne.s32.totalorder %s341, %s343
      %p347 = scmp.eq.s32.totalorder %s24, 0
      %p348 = por %p346, %p347
      %p349 = scmp.ne.s32.totalorder %s341, %s343
      %p350 = scmp.eq.s32.totalorder %s29, 1
      %p351 = por %p349, %p350
      %p352 = scmp.ne.s32.totalorder %s343, %s344
      %p353 = scmp.eq.s32.totalorder %s29, 0
      %p354 = por %p352, %p353
      %p355 = scmp.ne.s32.totalorder %s343, %s344
      %p356 = scmp.eq.s32.totalorder %s30, 1
      %p357 = por %p355, %p356
      %p359 = scmp.ne.s32.totalorder %s344, %s358
      %p360 = scmp.eq.s32.totalorder %s30, 0
      %p361 = por %p359, %p360
      %s362 = ssub.s32 %s24, %s31
      %p363 = scmp.eq.s32.totalorder %s362, 0
      %s365 = sadd.s32 %s364, 1
      %s366 = scalar_select %p363, %s364, %s365
      %p369 = pneg %p363
      %p370 = scmp.eq.s32.totalorder %s24, 1
      %p371 = por %p369, %p370
      %p372 = scmp.ne.s32.totalorder %s364, %s367
      %p373 = scmp.eq.s32.totalorder %s24, 0
      %p374 = por %p372, %p373
      %p375 = scmp.ne.s32.totalorder %s364, %s367
      %p376 = scmp.eq.s32.totalorder %s29, 1
      %p377 = por %p375, %p376
      %p378 = scmp.ne.s32.totalorder %s367, %s368
      %p379 = scmp.eq.s32.totalorder %s29, 0
      %p380 = por %p378, %p379
      %p381 = scmp.ne.s32.totalorder %s367, %s368
      %p382 = scmp.eq.s32.totalorder %s30, 1
      %p383 = por %p381, %p382
      %p385 = scmp.ne.s32.totalorder %s368, %s384
      %p386 = scmp.eq.s32.totalorder %s30, 0
      %p387 = por %p385, %p386
      %p388 = scmp.le.s32.totalorder 1, %s24
      %p389 = scmp.lt.s32.totalorder %s24, 3
      %p390 = pnand %p388, %p389
      %p391 = pneg %p390
      // Predicated region
      $region9: #{tpu_custom_call.1} parent=5 // pred_check
        _
      $region10: #{tpu_custom_call.1} parent=5 // pred_check_branch
        %393 = sbr.rel (%p390) target = $region12
      $region11: #{tpu_custom_call.1} parent=5 // pred_region
        %s394 = ssub.s32 %s24, 1
        // Predicated region
        $region13: #{tpu_custom_call.1} parent=11 // pred_check
          %p395 = pneg %p123
        $region14: #{tpu_custom_call.1} parent=11 // pred_check_branch
          %397 = sbr.rel (%p395) target = $region16
        $region15: #{tpu_custom_call.1} parent=11 // pred_region
          _
        $region16: #{tpu_custom_call.1} parent=11 // pred_fallthru
          _
        // Predicated region
        $region17: #{tpu_custom_call.1} parent=11 // pred_check
          %p398 = pneg %p144
        $region18: #{tpu_custom_call.1} parent=11 // pred_check_branch
          %400 = sbr.rel (%p398) target = $region20
        $region19: #{tpu_custom_call.1} parent=11 // pred_region
          _
        $region20: #{tpu_custom_call.1} parent=11 // pred_fallthru
          _
        // Predicated region
        $region21: #{tpu_custom_call.1} parent=11 // pred_check
          %p401 = pneg %p165
        $region22: #{tpu_custom_call.1} parent=11 // pred_check_branch
          %403 = sbr.rel (%p401) target = $region24
        $region23: #{tpu_custom_call.1} parent=11 // pred_region
          _
        $region24: #{tpu_custom_call.1} parent=11 // pred_fallthru
          _
        // Predicated region
        $region25: #{tpu_custom_call.1} parent=11 // pred_check
          %p404 = pneg %p186
        $region26: #{tpu_custom_call.1} parent=11 // pred_check_branch
          %406 = sbr.rel (%p404) target = $region28
        $region27: #{tpu_custom_call.1} parent=11 // pred_region
          _
        $region28: #{tpu_custom_call.1} parent=11 // pred_fallthru
          _
        // Predicated region
        $region29: #{tpu_custom_call.1} parent=11 // pred_check
          %p407 = pneg %p207
        $region30: #{tpu_custom_call.1} parent=11 // pred_check_branch
          %409 = sbr.rel (%p407) target = $region32
        $region31: #{tpu_custom_call.1} parent=11 // pred_region
          _
        $region32: #{tpu_custom_call.1} parent=11 // pred_fallthru
          _
        // Predicated region
        $region33: #{tpu_custom_call.1} parent=11 // pred_check
          %p410 = pneg %p228
        $region34: #{tpu_custom_call.1} parent=11 // pred_check_branch
          %412 = sbr.rel (%p410) target = $region36
        $region35: #{tpu_custom_call.1} parent=11 // pred_region
          _
        $region36: #{tpu_custom_call.1} parent=11 // pred_fallthru
          _
        // Predicated region
        $region37: #{tpu_custom_call.1} parent=11 // pred_check
          %p413 = pneg %p249
        $region38: #{tpu_custom_call.1} parent=11 // pred_check_branch
          %415 = sbr.rel (%p413) target = $region40
        $region39: #{tpu_custom_call.1} parent=11 // pred_region
          _
        $region40: #{tpu_custom_call.1} parent=11 // pred_fallthru
          _
        // Predicated region
        $region41: #{tpu_custom_call.1} parent=11 // pred_check
          %p416 = pneg %p270
        $region42: #{tpu_custom_call.1} parent=11 // pred_check_branch
          %418 = sbr.rel (%p416) target = $region44
        $region43: #{tpu_custom_call.1} parent=11 // pred_region
          _
        $region44: #{tpu_custom_call.1} parent=11 // pred_fallthru
          _
        // Predicated region
        $region45: #{tpu_custom_call.1} parent=11 // pred_check
          %p419 = pneg %p291
        $region46: #{tpu_custom_call.1} parent=11 // pred_check_branch
          %421 = sbr.rel (%p419) target = $region48
        $region47: #{tpu_custom_call.1} parent=11 // pred_region
          _
        $region48: #{tpu_custom_call.1} parent=11 // pred_fallthru
          _
        // Predicated region
        $region49: #{tpu_custom_call.1} parent=11 // pred_check
          %p422 = pneg %p312
        $region50: #{tpu_custom_call.1} parent=11 // pred_check_branch
          %424 = sbr.rel (%p422) target = $region52
        $region51: #{tpu_custom_call.1} parent=11 // pred_region
          _
        $region52: #{tpu_custom_call.1} parent=11 // pred_fallthru
          _
        // Predicated region
        $region53: #{tpu_custom_call.1} parent=11 // pred_check
          %p425 = pneg %p333
        $region54: #{tpu_custom_call.1} parent=11 // pred_check_branch
          %427 = sbr.rel (%p425) target = $region56
        $region55: #{tpu_custom_call.1} parent=11 // pred_region
          _
        $region56: #{tpu_custom_call.1} parent=11 // pred_fallthru
          _
        // Predicated region
        $region57: #{tpu_custom_call.1} parent=11 // pred_check
          %p428 = pneg %p354
        $region58: #{tpu_custom_call.1} parent=11 // pred_check_branch
          %430 = sbr.rel (%p428) target = $region60
        $region59: #{tpu_custom_call.1} parent=11 // pred_region
          _
        $region60: #{tpu_custom_call.1} parent=11 // pred_fallthru
          _
      $region12: #{tpu_custom_call.1} parent=5 // pred_fallthru
        _
      %p431 = scmp.lt.s32.totalorder %s24, 2
      // Predicated region
      $region61: #{tpu_custom_call.1} parent=5 // pred_check
        %p432 = pneg %p431
      $region62: #{tpu_custom_call.1} parent=5 // pred_check_branch
        %434 = sbr.rel (%p432) target = $region64
      $region63: #{tpu_custom_call.1} parent=5 // pred_region
        // Predicated region
        $region65: #{tpu_custom_call.1} parent=63 // pred_check
          %p435 = pneg %p44
        $region66: #{tpu_custom_call.1} parent=63 // pred_check_branch
          %437 = sbr.rel (%p435) target = $region68
        $region67: #{tpu_custom_call.1} parent=63 // pred_region
          %p438 = scmp.lt.s32.totalorder %s24, 1
          %s439 = scalar_select %p438, %s24, 1
          %s440 = smul.addr %s439, 10
          %s441 = smul.addr %s440, 4
          %s442 = scalar_lea.vmem %s0, %s441
        $region68: #{tpu_custom_call.1} parent=63 // pred_fallthru
          _
        // Predicated region
        $region69: #{tpu_custom_call.1} parent=63 // pred_check
          %p443 = pneg %p70
        $region70: #{tpu_custom_call.1} parent=63 // pred_check_branch
          %445 = sbr.rel (%p443) target = $region72
        $region71: #{tpu_custom_call.1} parent=63 // pred_region
          %p446 = scmp.lt.s32.totalorder %s24, 1
          %s447 = scalar_select %p446, %s24, 1
          %s448 = smul.addr %s447, 2
          %s449 = smul.addr %s448, 8
          %s450 = scalar_lea.vmem %s1, %s449
        $region72: #{tpu_custom_call.1} parent=63 // pred_fallthru
          _
        // Predicated region
        $region73: #{tpu_custom_call.1} parent=63 // pred_check
          %p451 = pneg %p96
        $region74: #{tpu_custom_call.1} parent=63 // pred_check_branch
          %453 = sbr.rel (%p451) target = $region76
        $region75: #{tpu_custom_call.1} parent=63 // pred_region
          %p454 = scmp.lt.s32.totalorder %s24, 1
          %s455 = scalar_select %p454, %s24, 1
          %s456 = smul.addr %s455, 2
          %s457 = smul.addr %s456, 8
          %s458 = scalar_lea.vmem %s2, %s457
        $region76: #{tpu_custom_call.1} parent=63 // pred_fallthru
          _
      $region64: #{tpu_custom_call.1} parent=5 // pred_fallthru
        _
      %p459 = scmp.le.s32.totalorder 1, %s24
      %p460 = scmp.lt.s32.totalorder %s24, 3
      %p461 = pnand %p459, %p460
      %p462 = pneg %p461
      // Predicated region
      $region77: #{tpu_custom_call.1} parent=5 // pred_check
        _
      $region78: #{tpu_custom_call.1} parent=5 // pred_check_branch
        %464 = sbr.rel (%p461) target = $region80
      $region79: #{tpu_custom_call.1} parent=5 // pred_region
        %s465 = ssub.s32 %s24, 1
        %p466 = scmp.lt.s32.totalorder %s29, 1
        %s467 = scalar_select %p466, %s29, 1
        %s468 = smul.addr %s467, 10
        %s469 = smul.addr %s468, 4
        %s470 = scalar_lea.vmem %s0, %s469
        %p471 = pneg %p50
        %p472 = pneg %p47
        %p473 = scmp.lt.s32.totalorder %s29, 1
        %s474 = scalar_select %p473, %s29, 1
        %s475 = smul.addr %s474, 2
        %s476 = smul.addr %s475, 8
        %s477 = scalar_lea.vmem %s1, %s476
        %p478 = pneg %p76
        %p479 = pneg %p73
        %p480 = scmp.lt.s32.totalorder %s29, 1
        %s481 = scalar_select %p480, %s29, 1
        %s482 = smul.addr %s481, 2
        %s483 = smul.addr %s482, 8
        %s484 = scalar_lea.vmem %s2, %s483
        %p485 = pneg %p102
        %p486 = pneg %p99
        %p487 = pneg %p123
        %p488 = pneg %p120
        %p489 = pneg %p144
        %p490 = pneg %p141
        %p491 = pneg %p165
        %p492 = pneg %p162
        %p493 = pneg %p186
        %p494 = pneg %p183
        %p495 = pneg %p207
        %p496 = pneg %p204
        %p497 = pneg %p228
        %p498 = pneg %p225
        %p499 = pneg %p249
        %p500 = pneg %p246
        %p501 = pneg %p270
        %p502 = pneg %p267
        %p503 = pneg %p291
        %p504 = pneg %p288
        %p505 = pneg %p312
        %p506 = pneg %p309
        %p507 = pneg %p333
        %p508 = pneg %p330
        %p509 = pneg %p354
        %p510 = pneg %p351
        %p511 = pneg %p380
        %p512 = pneg %p377
        %s513 = sand.u32 %s367, 1
        %s514 = scalar_lea.sflag [#allocation6], %s513
        %s515 = sand.u32 %s367, 1
        %s516 = smul.addr %s515, 48
        %s517 = scalar_lea.vmem [#allocation5], %s516
        %p518 = scmp.lt.s32.totalorder %s29, 1
        %s519 = scalar_select %p518, %s29, 1
        %s520 = smul.addr %s519, 10
        %s521 = smul.addr %s520, 4
        %s522 = scalar_lea.vmem %s0, %s521
        %p523 = scmp.lt.s32.totalorder %s29, 1
        %s524 = scalar_select %p523, %s29, 1
        %s525 = smul.addr %s524, 2
        %s526 = smul.addr %s525, 8
        %s527 = scalar_lea.vmem %s1, %s526
        %p528 = scmp.lt.s32.totalorder %s29, 1
        %s529 = scalar_select %p528, %s29, 1
        %s530 = smul.addr %s529, 2
        %s531 = smul.addr %s530, 8
        %s532 = scalar_lea.vmem %s2, %s531
        %v534 = vld [vmem:[%s3] sm:$0x7]
        %v535 = vld [vmem:[%s522] sm:$0xff]
        %v536 = vld [vmem:[%s522 + $0x8] sm:$0xff]
        %v537 = vld [vmem:[%s522 + $0x14] sm:$0xff]
        %v538 = vld [vmem:[%s522 + $0x1c] sm:$0xff]
        %543 = vrot.lane.b32.xlu0 %v535, 19
        %v544 = vpop.permute.xlu0 %543
        %545 = vrot.lane.b32.xlu0 %v536, 19
        %v546 = vpop.permute.xlu0 %545
        %547 = vrot.lane.b32.xlu0 %v537, 19
        %v548 = vpop.permute.xlu0 %547
        %549 = vrot.lane.b32.xlu0 %v538, 19
        %v550 = vpop.permute.xlu0 %549
        %v551 = vrot.slane %v544, 4
        %v552 = vrot.slane %v546, 4
        %v553 = vrot.slane %v548, 4
        %v554 = vrot.slane %v550, 4
        %vm555 = vcmask 1043456
        %v556 = vsel %vm555, %v551, %v552
        %vm557 = vcmask 154624
        %v558 = vsel %vm557, %v544, %v556
        %v559 = vsel %vm557, %v546, %v552
        %v560 = vsel %vm555, %v553, %v554
        %v561 = vsel %vm557, %v548, %v560
        %v562 = vsel %vm557, %v550, %v554
        %567 = vst [vmem:[#allocation2] sm:$0xff] %v558
        %568 = vst [vmem:[#allocation2 + $0x8] sm:$0xf] %v559
        %569 = vst [vmem:[#allocation2 + $0xc] sm:$0xff] %v561
        %570 = vst [vmem:[#allocation2 + $0x14] sm:$0xf] %v562
        %v571 = vld [vmem:[%s522] sm:$0xff]
        %v572 = vld [vmem:[%s522 + $0x8] sm:$0xff]
        %v573 = vld [vmem:[%s522 + $0x14] sm:$0xff]
        %v574 = vld [vmem:[%s522 + $0x1c] sm:$0xff]
        %579 = vrot.lane.b32.xlu0 %v571, 18
        %v580 = vpop.permute.xlu0 %579
        %581 = vrot.lane.b32.xlu0 %v572, 18
        %v582 = vpop.permute.xlu0 %581
        %583 = vrot.lane.b32.xlu0 %v573, 18
        %v584 = vpop.permute.xlu0 %583
        %585 = vrot.lane.b32.xlu0 %v574, 18
        %v586 = vpop.permute.xlu0 %585
        %v587 = vrot.slane %v580, 4
        %v588 = vrot.slane %v582, 4
        %v589 = vrot.slane %v584, 4
        %v590 = vrot.slane %v586, 4
        %v591 = vsel %vm555, %v587, %v588
        %vm592 = vcmask 146432
        %v593 = vsel %vm592, %v580, %v591
        %v594 = vsel %vm592, %v582, %v588
        %v595 = vsel %vm555, %v589, %v590
        %v596 = vsel %vm592, %v584, %v595
        %v597 = vsel %vm592, %v586, %v590
        %602 = vst [vmem:[#allocation2 + $0x18] sm:$0xff] %v593
        %603 = vst [vmem:[#allocation2 + $0x20] sm:$0xf] %v594
        %604 = vst [vmem:[#allocation2 + $0x24] sm:$0xff] %v596
        %605 = vst [vmem:[#allocation2 + $0x2c] sm:$0xf] %v597
        %v606 = vld [vmem:[%s522] sm:$0xff]
        %v607 = vld [vmem:[%s522 + $0x8] sm:$0xff]
        %v608 = vld [vmem:[%s522 + $0x14] sm:$0xff]
        %v609 = vld [vmem:[%s522 + $0x1c] sm:$0xff]
        %614 = vrot.lane.b32.xlu0 %v606, 17
        %v615 = vpop.permute.xlu0 %614
        %616 = vrot.lane.b32.xlu0 %v607, 17
        %v617 = vpop.permute.xlu0 %616
        %618 = vrot.lane.b32.xlu0 %v608, 17
        %v619 = vpop.permute.xlu0 %618
        %620 = vrot.lane.b32.xlu0 %v609, 17
        %v621 = vpop.permute.xlu0 %620
        %v622 = vrot.slane %v615, 4
        %v623 = vrot.slane %v617, 4
        %v624 = vrot.slane %v619, 4
        %v625 = vrot.slane %v621, 4
        %v626 = vsel %vm555, %v622, %v623
        %vm627 = vcmask 138240
        %v628 = vsel %vm627, %v615, %v626
        %v629 = vsel %vm627, %v617, %v623
        %v630 = vsel %vm555, %v624, %v625
        %v631 = vsel %vm627, %v619, %v630
        %v632 = vsel %vm627, %v621, %v625
        %637 = vst [vmem:[#allocation2 + $0x30] sm:$0xff] %v628
        %638 = vst [vmem:[#allocation2 + $0x38] sm:$0xf] %v629
        %639 = vst [vmem:[#allocation2 + $0x3c] sm:$0xff] %v631
        %640 = vst [vmem:[#allocation2 + $0x44] sm:$0xf] %v632
        %v641 = vld [vmem:[%s522] sm:$0xff]
        %v642 = vld [vmem:[%s522 + $0x8] sm:$0xff]
        %v643 = vld [vmem:[%s522 + $0x14] sm:$0xff]
        %v644 = vld [vmem:[%s522 + $0x1c] sm:$0xff]
        %649 = vrot.lane.b32.xlu0 %v641, 1
        %v650 = vpop.permute.xlu0 %649
        %651 = vrot.lane.b32.xlu0 %v642, 1
        %v652 = vpop.permute.xlu0 %651
        %653 = vrot.lane.b32.xlu0 %v643, 1
        %v654 = vpop.permute.xlu0 %653
        %655 = vrot.lane.b32.xlu0 %v644, 1
        %v656 = vpop.permute.xlu0 %655
        %v657 = vrot.slane %v650, 4
        %v658 = vrot.slane %v652, 4
        %v659 = vrot.slane %v654, 4
        %v660 = vrot.slane %v656, 4
        %v661 = vsel %vm555, %v657, %v658
        %vm662 = vcmask 7168
        %v663 = vsel %vm662, %v650, %v661
        %v664 = vsel %vm662, %v652, %v658
        %v665 = vsel %vm555, %v659, %v660
        %v666 = vsel %vm662, %v654, %v665
        %v667 = vsel %vm662, %v656, %v660
        %672 = vst [vmem:[#allocation2 + $0x48] sm:$0xff] %v663
        %673 = vst [vmem:[#allocation2 + $0x50] sm:$0xf] %v664
        %674 = vst [vmem:[#allocation2 + $0x54] sm:$0xff] %v666
        %675 = vst [vmem:[#allocation2 + $0x5c] sm:$0xf] %v667
        %v676 = vld [vmem:[%s522 + $0x4] sm:$0xff]
        %v677 = vld [vmem:[%s522 + $0xc] sm:$0xf]
        %v678 = vld [vmem:[%s522 + $0x18] sm:$0xff]
        %v679 = vld [vmem:[%s522 + $0x20] sm:$0xf]
        %680 = vst [vmem:[#allocation2 + $0x60] sm:$0xff] %v676
        %681 = vst [vmem:[#allocation2 + $0x68] sm:$0xf] %v677
        %682 = vst [vmem:[#allocation2 + $0x6c] sm:$0xff] %v678
        %683 = vst [vmem:[#allocation2 + $0x74] sm:$0xf] %v679
        %v684 = vld [vmem:[%s522 + $0x4] sm:$0xff]
        %v685 = vld [vmem:[%s522 + $0xc] sm:$0xff]
        %v686 = vld [vmem:[%s522 + $0x18] sm:$0xff]
        %v687 = vld [vmem:[%s522 + $0x20] sm:$0xff]
        %692 = vrot.lane.b32.xlu0 %v684, 127
        %v693 = vpop.permute.xlu0 %692
        %694 = vrot.lane.b32.xlu0 %v685, 127
        %v695 = vpop.permute.xlu0 %694
        %696 = vrot.lane.b32.xlu0 %v686, 127
        %v697 = vpop.permute.xlu0 %696
        %698 = vrot.lane.b32.xlu0 %v687, 127
        %v699 = vpop.permute.xlu0 %698
        %v700 = vrot.slane %v693, 4
        %v701 = vrot.slane %v695, 4
        %v702 = vrot.slane %v697, 4
        %v703 = vrot.slane %v699, 4
        %v704 = vsel %vm555, %v700, %v701
        %vm705 = vcmask 1039360
        %v706 = vsel %vm705, %v693, %v704
        %v707 = vsel %vm705, %v695, %v701
        %v708 = vsel %vm555, %v702, %v703
        %v709 = vsel %vm705, %v697, %v708
        %v710 = vsel %vm705, %v699, %v703
        %715 = vst [vmem:[#allocation2 + $0x78] sm:$0xff] %v706
        %716 = vst [vmem:[#allocation2 + $0x80] sm:$0xf] %v707
        %717 = vst [vmem:[#allocation2 + $0x84] sm:$0xff] %v709
        %718 = vst [vmem:[#allocation2 + $0x8c] sm:$0xf] %v710
        %v719 = vld [vmem:[%s522 + $0x4] sm:$0xff]
        %v720 = vld [vmem:[%s522 + $0xc] sm:$0xff]
        %v721 = vld [vmem:[%s522 + $0x18] sm:$0xff]
        %v722 = vld [vmem:[%s522 + $0x20] sm:$0xff]
        %727 = vrot.lane.b32.xlu0 %v719, 111
        %v728 = vpop.permute.xlu0 %727
        %729 = vrot.lane.b32.xlu0 %v720, 111
        %v730 = vpop.permute.xlu0 %729
        %731 = vrot.lane.b32.xlu0 %v721, 111
        %v732 = vpop.permute.xlu0 %731
        %733 = vrot.lane.b32.xlu0 %v722, 111
        %v734 = vpop.permute.xlu0 %733
        %v735 = vrot.slane %v728, 4
        %v736 = vrot.slane %v730, 4
        %v737 = vrot.slane %v732, 4
        %v738 = vrot.slane %v734, 4
        %v739 = vsel %vm555, %v735, %v736
        %vm740 = vcmask 908288
        %v741 = vsel %vm740, %v728, %v739
        %v742 = vsel %vm740, %v730, %v736
        %v743 = vsel %vm555, %v737, %v738
        %v744 = vsel %vm740, %v732, %v743
        %v745 = vsel %vm740, %v734, %v738
        %750 = vst [vmem:[#allocation2 + $0x90] sm:$0xff] %v741
        %751 = vst [vmem:[#allocation2 + $0x98] sm:$0xf] %v742
        %752 = vst [vmem:[#allocation2 + $0x9c] sm:$0xff] %v744
        %753 = vst [vmem:[#allocation2 + $0xa4] sm:$0xf] %v745
        %v754 = vld [vmem:[%s522 + $0x4] sm:$0xff]
        %v755 = vld [vmem:[%s522 + $0xc] sm:$0xff]
        %v756 = vld [vmem:[%s522 + $0x18] sm:$0xff]
        %v757 = vld [vmem:[%s522 + $0x20] sm:$0xff]
        %762 = vrot.lane.b32.xlu0 %v754, 110
        %v763 = vpop.permute.xlu0 %762
        %764 = vrot.lane.b32.xlu0 %v755, 110
        %v765 = vpop.permute.xlu0 %764
        %766 = vrot.lane.b32.xlu0 %v756, 110
        %v767 = vpop.permute.xlu0 %766
        %768 = vrot.lane.b32.xlu0 %v757, 110
        %v769 = vpop.permute.xlu0 %768
        %v770 = vrot.slane %v763, 4
        %v771 = vrot.slane %v765, 4
        %v772 = vrot.slane %v767, 4
        %v773 = vrot.slane %v769, 4
        %v774 = vsel %vm555, %v770, %v771
        %vm775 = vcmask 900096
        %v776 = vsel %vm775, %v763, %v774
        %v777 = vsel %vm775, %v765, %v771
        %v778 = vsel %vm555, %v772, %v773
        %v779 = vsel %vm775, %v767, %v778
        %v780 = vsel %vm775, %v769, %v773
        %785 = vst [vmem:[#allocation2 + $0xa8] sm:$0xff] %v776
        %786 = vst [vmem:[#allocation2 + $0xb0] sm:$0xf] %v777
        %787 = vst [vmem:[#allocation2 + $0xb4] sm:$0xff] %v779
        %788 = vst [vmem:[#allocation2 + $0xbc] sm:$0xf] %v780
        %v789 = vld [vmem:[%s522 + $0x4] sm:$0xff]
        %v790 = vld [vmem:[%s522 + $0xc] sm:$0xff]
        %v791 = vld [vmem:[%s522 + $0x18] sm:$0xff]
        %v792 = vld [vmem:[%s522 + $0x20] sm:$0xff]
        %797 = vrot.lane.b32.xlu0 %v789, 109
        %v798 = vpop.permute.xlu0 %797
        %799 = vrot.lane.b32.xlu0 %v790, 109
        %v800 = vpop.permute.xlu0 %799
        %801 = vrot.lane.b32.xlu0 %v791, 109
        %v802 = vpop.permute.xlu0 %801
        %803 = vrot.lane.b32.xlu0 %v792, 109
        %v804 = vpop.permute.xlu0 %803
        %v805 = vrot.slane %v798, 4
        %v806 = vrot.slane %v800, 4
        %v807 = vrot.slane %v802, 4
        %v808 = vrot.slane %v804, 4
        %v809 = vsel %vm555, %v805, %v806
        %vm810 = vcmask 891904
        %v811 = vsel %vm810, %v798, %v809
        %v812 = vsel %vm810, %v800, %v806
        %v813 = vsel %vm555, %v807, %v808
        %v814 = vsel %vm810, %v802, %v813
        %v815 = vsel %vm810, %v804, %v808
        %820 = vst [vmem:[#allocation2 + $0xc0] sm:$0xff] %v811
        %821 = vst [vmem:[#allocation2 + $0xc8] sm:$0xf] %v812
        %822 = vst [vmem:[#allocation2 + $0xcc] sm:$0xff] %v814
        %823 = vst [vmem:[#allocation2 + $0xd4] sm:$0xf] %v815
        %v824 = vld [vmem:[%s4] sm:$0xff]
        %v825 = vld [vmem:[%s4 + $0x8] sm:$0xff]
        %v826 = vld [vmem:[#allocation2] sm:$0xff]
        %v827 = vld [vmem:[#allocation2 + $0x8] sm:$0xf]
        %v828 = vld [vmem:[#allocation2 + $0xc] sm:$0xff]
        %v829 = vld [vmem:[#allocation2 + $0x14] sm:$0xf]
        %v830 = vld [vmem:[#allocation2 + $0x18] sm:$0xff]
        %v831 = vld [vmem:[#allocation2 + $0x20] sm:$0xf]
        %v832 = vld [vmem:[#allocation2 + $0x24] sm:$0xff]
        %v833 = vld [vmem:[#allocation2 + $0x2c] sm:$0xf]
        %v834 = vld [vmem:[#allocation2 + $0x30] sm:$0xff]
        %v835 = vld [vmem:[#allocation2 + $0x38] sm:$0xf]
        %v836 = vld [vmem:[#allocation2 + $0x3c] sm:$0xff]
        %v837 = vld [vmem:[#allocation2 + $0x44] sm:$0xf]
        %v838 = vld [vmem:[#allocation2 + $0x48] sm:$0xff]
        %v839 = vld [vmem:[#allocation2 + $0x50] sm:$0xf]
        %v840 = vld [vmem:[#allocation2 + $0x54] sm:$0xff]
        %v841 = vld [vmem:[#allocation2 + $0x5c] sm:$0xf]
        %v842 = vld [vmem:[#allocation2 + $0x60] sm:$0xff]
        %v843 = vld [vmem:[#allocation2 + $0x68] sm:$0xf]
        %v844 = vld [vmem:[#allocation2 + $0x6c] sm:$0xff]
        %v845 = vld [vmem:[#allocation2 + $0x74] sm:$0xf]
        %v846 = vld [vmem:[#allocation2 + $0x78] sm:$0xff]
        %v847 = vld [vmem:[#allocation2 + $0x80] sm:$0xf]
        %v848 = vld [vmem:[#allocation2 + $0x84] sm:$0xff]
        %v849 = vld [vmem:[#allocation2 + $0x8c] sm:$0xf]
        %v850 = vld [vmem:[#allocation2 + $0x90] sm:$0xff]
        %v851 = vld [vmem:[#allocation2 + $0x98] sm:$0xf]
        %v852 = vld [vmem:[#allocation2 + $0x9c] sm:$0xff]
        %v853 = vld [vmem:[#allocation2 + $0xa4] sm:$0xf]
        %v854 = vld [vmem:[#allocation2 + $0xa8] sm:$0xff]
        %v855 = vld [vmem:[#allocation2 + $0xb0] sm:$0xf]
        %v856 = vld [vmem:[#allocation2 + $0xb4] sm:$0xff]
        %v857 = vld [vmem:[#allocation2 + $0xbc] sm:$0xf]
        %v858 = vld [vmem:[#allocation2 + $0xc0] sm:$0xff]
        %v859 = vld [vmem:[#allocation2 + $0xc8] sm:$0xf]
        %v860 = vld [vmem:[#allocation2 + $0xcc] sm:$0xff]
        %v861 = vld [vmem:[#allocation2 + $0xd4] sm:$0xf]
        %v862 = vld [vmem:[%s5] sm:$0xff]
        %v863 = vld [vmem:[%s5 + $0x8] sm:$0xff]
        %865 = vset.pattern.permute.xlu0 0
        %866 = vperm.xlu0 %865, %v862
        %v867 = vpop.permute.xlu0 %866
        %870 = vset.pattern.permute.xlu0 0
        %871 = vperm.xlu0 %870, %v863
        %v872 = vpop.permute.xlu0 %871
        %v876 = vunpack.c.l.b16 %v824
        %v877 = vunpack.c.h.b16 %v824
        %v878 = vunpack.c.l.b16 %v825
        %v879 = vunpack.c.h.b16 %v825
        %v880 = vpack.c.b16 %v878, %v876
        %v881 = vpack.c.b16 %v879, %v877
        %v919 = vunpack.c.l.b16 %v826
        %v920 = vunpack.c.h.b16 %v826
        %v921 = vunpack.c.l.b16 %v827
        %v922 = vunpack.c.l.b16 %v828
        %v923 = vunpack.c.h.b16 %v828
        %v924 = vunpack.c.l.b16 %v829
        %v925 = vunpack.c.l.b16 %v830
        %v926 = vunpack.c.h.b16 %v830
        %v927 = vunpack.c.l.b16 %v831
        %v928 = vunpack.c.l.b16 %v832
        %v929 = vunpack.c.h.b16 %v832
        %v930 = vunpack.c.l.b16 %v833
        %v931 = vunpack.c.l.b16 %v834
        %v932 = vunpack.c.h.b16 %v834
        %v933 = vunpack.c.l.b16 %v835
        %v934 = vunpack.c.l.b16 %v836
        %v935 = vunpack.c.h.b16 %v836
        %v936 = vunpack.c.l.b16 %v837
        %v937 = vunpack.c.l.b16 %v838
        %v938 = vunpack.c.h.b16 %v838
        %v939 = vunpack.c.l.b16 %v839
        %v940 = vunpack.c.l.b16 %v840
        %v941 = vunpack.c.h.b16 %v840
        %v942 = vunpack.c.l.b16 %v841
        %v943 = vunpack.c.l.b16 %v842
        %v944 = vunpack.c.h.b16 %v842
        %v945 = vunpack.c.l.b16 %v843
        %v946 = vunpack.c.l.b16 %v844
        %v947 = vunpack.c.h.b16 %v844
        %v948 = vunpack.c.l.b16 %v845
        %v949 = vunpack.c.l.b16 %v846
        %v950 = vunpack.c.h.b16 %v846
        %v951 = vunpack.c.l.b16 %v847
        %v952 = vunpack.c.l.b16 %v848
        %v953 = vunpack.c.h.b16 %v848
        %v954 = vunpack.c.l.b16 %v849
        %v955 = vunpack.c.l.b16 %v850
        %v956 = vunpack.c.h.b16 %v850
        %v957 = vunpack.c.l.b16 %v851
        %v958 = vunpack.c.l.b16 %v852
        %v959 = vunpack.c.h.b16 %v852
        %v960 = vunpack.c.l.b16 %v853
        %v961 = vunpack.c.l.b16 %v854
        %v962 = vunpack.c.h.b16 %v854
        %v963 = vunpack.c.l.b16 %v855
        %v964 = vunpack.c.l.b16 %v856
        %v965 = vunpack.c.h.b16 %v856
        %v966 = vunpack.c.l.b16 %v857
        %v967 = vunpack.c.l.b16 %v858
        %v968 = vunpack.c.h.b16 %v858
        %v969 = vunpack.c.l.b16 %v859
        %v970 = vunpack.c.l.b16 %v860
        %v971 = vunpack.c.h.b16 %v860
        %v972 = vunpack.c.l.b16 %v861
        %v973 = vpack.c.b16 %v922, %v919
        %v974 = vpack.c.b16 %v923, %v920
        %v975 = vpack.c.b16 %v924, %v921
        %v976 = vpack.c.b16 %v928, %v925
        %v977 = vpack.c.b16 %v929, %v926
        %v978 = vpack.c.b16 %v930, %v927
        %v979 = vpack.c.b16 %v934, %v931
        %v980 = vpack.c.b16 %v935, %v932
        %v981 = vpack.c.b16 %v936, %v933
        %v982 = vpack.c.b16 %v940, %v937
        %v983 = vpack.c.b16 %v941, %v938
        %v984 = vpack.c.b16 %v942, %v939
        %v985 = vpack.c.b16 %v946, %v943
        %v986 = vpack.c.b16 %v947, %v944
        %v987 = vpack.c.b16 %v948, %v945
        %v988 = vpack.c.b16 %v952, %v949
        %v989 = vpack.c.b16 %v953, %v950
        %v990 = vpack.c.b16 %v954, %v951
        %v991 = vpack.c.b16 %v958, %v955
        %v992 = vpack.c.b16 %v959, %v956
        %v993 = vpack.c.b16 %v960, %v957
        %v994 = vpack.c.b16 %v964, %v961
        %v995 = vpack.c.b16 %v965, %v962
        %v996 = vpack.c.b16 %v966, %v963
        %v997 = vpack.c.b16 %v970, %v967
        %v998 = vpack.c.b16 %v971, %v968
        %v999 = vpack.c.b16 %v972, %v969
        %vm1027 = vcmask 130048
        %v1029 = vsel %vm1027, %v881, 0
        %1031 = vmatprep.subr.bf16.mxu0 %v995
        %1032 = vmatpush1.bf16.msra.mxu0 %v994
        %1033 = vmatprep.subr.bf16.mxu0 %v992
        %1034 = vmatpush1.bf16.msra.mxu0 %v991
        %1035 = vmatprep.subr.bf16.mxu0 %v989
        %1036 = vmatpush1.bf16.msra.mxu0 %v988
        %1037 = vmatprep.subr.bf16.mxu0 %v986
        %1038 = vmatpush1.bf16.msra.mxu0 %v985
        %1039 = vmatprep.subr.bf16.mxu0 %v983
        %1040 = vmatpush1.bf16.msra.mxu0 %v982
        %1041 = vmatprep.subr.bf16.mxu0 %v980
        %1042 = vmatpush1.bf16.msra.mxu0 %v979
        %1043 = vmatprep.subr.bf16.mxu0 %v977
        %1044 = vmatpush1.bf16.msra.mxu0 %v976
        %1045 = vmatprep.subr.bf16.mxu0 %v974
        %1046 = vmatpush1.bf16.msra.mxu0 %v973
        %1047 = vmatprep.subr.bf16.mxu0 0
        %1048 = vmatpush2.bf16.msra.mxu0 0
        %1049 = vmatprep.subr.bf16.mxu0 0
        %1050 = vmatpush2.bf16.msra.mxu0 0
        %1051 = vmatprep.subr.bf16.mxu0 0
        %1052 = vmatpush2.bf16.msra.mxu0 0
        %1053 = vmatprep.subr.bf16.mxu0 0
        %1054 = vmatpush2.bf16.msra.mxu0 0
        %1055 = vmatprep.subr.bf16.mxu0 0
        %1056 = vmatpush2.bf16.msra.mxu0 0
        %1057 = vmatprep.subr.bf16.mxu0 0
        %1058 = vmatpush2.bf16.msra.mxu0 0
        %1059 = vmatprep.subr.bf16.mxu0 0
        %1060 = vmatpush2.bf16.msra.mxu0 0
        %1061 = vmatprep.subr.bf16.mxu0 %v998
        %1062 = vmatpush2.bf16.msra.mxu0 %v997
        %1063 = vmatprep.mubr.bf16.mxu0 %v1029
        %1064 = vmatmul.mubr.bf16.gmra.mxu0 %v880
        %v1065 = vpop.f32.mrf.mxu0
        %v1066 = vadd.f32 %v867, %v1065
        %v1067 = vpop.f32.mrf.mxu0
        %v1068 = vadd.f32 %v867, %v1067
        %v1069 = vpop.f32.mrf.mxu0
        %v1070 = vadd.f32 %v872, %v1069
        %v1071 = vpop.f32.mrf.mxu0
        %v1072 = vadd.f32 %v872, %v1071
        %1073 = vdwg.mxu0
        %1074 = vmatprep.subr.bf16.mxu0 0
        %1075 = vmatpush1.bf16.msra.mxu0 %v996
        %1076 = vmatprep.subr.bf16.mxu0 0
        %1077 = vmatpush1.bf16.msra.mxu0 %v993
        %1078 = vmatprep.subr.bf16.mxu0 0
        %1079 = vmatpush1.bf16.msra.mxu0 %v990
        %1080 = vmatprep.subr.bf16.mxu0 0
        %1081 = vmatpush1.bf16.msra.mxu0 %v987
        %1082 = vmatprep.subr.bf16.mxu0 0
        %1083 = vmatpush1.bf16.msra.mxu0 %v984
        %1084 = vmatprep.subr.bf16.mxu0 0
        %1085 = vmatpush1.bf16.msra.mxu0 %v981
        %1086 = vmatprep.subr.bf16.mxu0 0
        %1087 = vmatpush1.bf16.msra.mxu0 %v978
        %1088 = vmatprep.subr.bf16.mxu0 0
        %1089 = vmatpush1.bf16.msra.mxu0 %v975
        %1090 = vmatprep.subr.bf16.mxu0 0
        %1091 = vmatpush2.bf16.msra.mxu0 0
        %1092 = vmatprep.subr.bf16.mxu0 0
        %1093 = vmatpush2.bf16.msra.mxu0 0
        %1094 = vmatprep.subr.bf16.mxu0 0
        %1095 = vmatpush2.bf16.msra.mxu0 0
        %1096 = vmatprep.subr.bf16.mxu0 0
        %1097 = vmatpush2.bf16.msra.mxu0 0
        %1098 = vmatprep.subr.bf16.mxu0 0
        %1099 = vmatpush2.bf16.msra.mxu0 0
        %1100 = vmatprep.subr.bf16.mxu0 0
        %1101 = vmatpush2.bf16.msra.mxu0 0
        %1102 = vmatprep.subr.bf16.mxu0 0
        %1103 = vmatpush2.bf16.msra.mxu0 0
        %1104 = vmatprep.subr.bf16.mxu0 0
        %1105 = vmatpush2.bf16.msra.mxu0 %v999
        %1106 = vmatprep.mubr.bf16.mxu0 %v1029
        %1107 = vmatmul.mubr.bf16.gmra.mxu0 %v880
        %v1108 = vpop.f32.mrf.mxu0
        %v1109 = vadd.f32 %v867, %v1108
        %v1110 = vpop.f32.mrf.mxu0
        %v1111 = vpop.f32.mrf.mxu0
        %v1112 = vadd.f32 %v872, %v1111
        %v1113 = vpop.f32.mrf.mxu0
        %1114 = vdwg.mxu0
        %v1115 = vld [vmem:[%s14] sm:$0xff]
        %v1116 = vld [vmem:[%s14 + $0x8] sm:$0xff]
        %v1117 = vld [vmem:[%s6] sm:$0xff]
        %v1118 = vld [vmem:[%s6 + $0x8] sm:$0xff]
        %v1119 = vld [vmem:[%s7] sm:$0xff]
        %v1120 = vld [vmem:[%s7 + $0x8] sm:$0xff]
        %v1122 = vlaneseq
        %v1123 = vshrl.u32 %v1122, 7
        %v1124 = vsub.s32 0, %v1123
        %v1125 = vrot.slane %v534, %v1124
        %v1126 = vlaneseq
        %v1127 = vshrl.u32 %v1126, 7
        %v1128 = vsub.s32 1, %v1127
        %v1129 = vrot.slane %v534, %v1128
        %v1130 = vlaneseq
        %v1131 = vshrl.u32 %v1130, 7
        %v1132 = vsub.s32 2, %v1131
        %v1133 = vrot.slane %v534, %v1132
        %v1137 = vmul.f32 %v1066, %v1125
        %v1138 = vmul.f32 %v1068, %v1129
        %v1139 = vmul.f32 %v1109, %v1133
        %v1140 = vmul.f32 %v1070, %v1125
        %v1141 = vmul.f32 %v1072, %v1129
        %v1142 = vmul.f32 %v1112, %v1133
        %v1144 = vsel %vm1027, %v1115, 0
        %v1147 = vsel %vm1027, %v1116, 0
        %1149 = vmatprep.subr.mxu0 0.0
        %1150 = vmatpush1.msra.mxu0 0.0
        %1151 = vmatprep.subr.mxu0 0.0
        %1152 = vmatpush1.msra.mxu0 0.0
        %1153 = vmatprep.subr.mxu0 0.0
        %1154 = vmatpush1.msra.mxu0 0.0
        %1155 = vmatprep.subr.mxu0 0.0
        %1156 = vmatpush1.msra.mxu0 0.0
        %1157 = vmatprep.subr.mxu0 0.0
        %1158 = vmatpush1.msra.mxu0 0.0
        %1159 = vmatprep.subr.mxu0 0.0
        %1160 = vmatpush1.msra.mxu0 0.0
        %1161 = vmatprep.subr.mxu0 0.0
        %1162 = vmatpush1.msra.mxu0 0.0
        %1163 = vmatprep.subr.mxu0 0.0
        %1164 = vmatpush1.msra.mxu0 0.0
        %1165 = vmatprep.subr.mxu0 0.0
        %1166 = vmatpush1.msra.mxu0 0.0
        %1167 = vmatprep.subr.mxu0 0.0
        %1168 = vmatpush1.msra.mxu0 0.0
        %1169 = vmatprep.subr.mxu0 0.0
        %1170 = vmatpush1.msra.mxu0 0.0
        %1171 = vmatprep.subr.mxu0 0.0
        %1172 = vmatpush1.msra.mxu0 0.0
        %1173 = vmatprep.subr.mxu0 0.0
        %1174 = vmatpush1.msra.mxu0 0.0
        %1175 = vmatprep.subr.mxu0 0.0
        %1176 = vmatpush1.msra.mxu0 0.0
        %1177 = vmatprep.subr.mxu0 %v1141
        %1178 = vmatpush1.msra.mxu0 %v1140
        %1179 = vmatprep.subr.mxu0 %v1138
        %1180 = vmatpush1.msra.mxu0 %v1137
        %1181 = vmatprep.subr.mxu0 0.0
        %1182 = vmatpush2.msra.mxu0 0.0
        %1183 = vmatprep.subr.mxu0 0.0
        %1184 = vmatpush2.msra.mxu0 0.0
        %1185 = vmatprep.subr.mxu0 0.0
        %1186 = vmatpush2.msra.mxu0 0.0
        %1187 = vmatprep.subr.mxu0 0.0
        %1188 = vmatpush2.msra.mxu0 0.0
        %1189 = vmatprep.subr.mxu0 0.0
        %1190 = vmatpush2.msra.mxu0 0.0
        %1191 = vmatprep.subr.mxu0 0.0
        %1192 = vmatpush2.msra.mxu0 0.0
        %1193 = vmatprep.subr.mxu0 0.0
        %1194 = vmatpush2.msra.mxu0 0.0
        %1195 = vmatprep.subr.mxu0 0.0
        %1196 = vmatpush2.msra.mxu0 0.0
        %1197 = vmatprep.subr.mxu0 0.0
        %1198 = vmatpush2.msra.mxu0 0.0
        %1199 = vmatprep.subr.mxu0 0.0
        %1200 = vmatpush2.msra.mxu0 0.0
        %1201 = vmatprep.subr.mxu0 0.0
        %1202 = vmatpush2.msra.mxu0 0.0
        %1203 = vmatprep.subr.mxu0 0.0
        %1204 = vmatpush2.msra.mxu0 0.0
        %1205 = vmatprep.subr.mxu0 0.0
        %1206 = vmatpush2.msra.mxu0 0.0
        %1207 = vmatprep.subr.mxu0 0.0
        %1208 = vmatpush2.msra.mxu0 0.0
        %1209 = vmatprep.subr.mxu0 0.0
        %1210 = vmatpush2.msra.mxu0 0.0
        %1211 = vmatprep.subr.mxu0 0.0
        %1212 = vmatpush2.msra.mxu0 0.0
        %1213 = vmatprep.mubr.f32.mxu0 0.0
        %1214 = vmatmul.mubr.f32.gmra.mxu0 %v1144
        %v1215 = vpop.f32.mrf.mxu0
        %v1216 = vadd.f32 0.0, %v1215
        %v1217 = vpop.f32.mrf.mxu0
        %v1218 = vadd.f32 0.0, %v1217
        %1219 = vmatprep.mubr.f32.mxu0 0.0
        %1220 = vmatmul.mubr.f32.gmra.mxu0 %v1147
        %v1221 = vpop.f32.mrf.mxu0
        %v1222 = vadd.f32 0.0, %v1221
        %v1223 = vpop.f32.mrf.mxu0
        %v1224 = vadd.f32 0.0, %v1223
        %1225 = vdwg.mxu0
        %1226 = vmatprep.subr.mxu0 0.0
        %1227 = vmatpush1.msra.mxu0 0.0
        %1228 = vmatprep.subr.mxu0 0.0
        %1229 = vmatpush1.msra.mxu0 0.0
        %1230 = vmatprep.subr.mxu0 0.0
        %1231 = vmatpush1.msra.mxu0 0.0
        %1232 = vmatprep.subr.mxu0 0.0
        %1233 = vmatpush1.msra.mxu0 0.0
        %1234 = vmatprep.subr.mxu0 0.0
        %1235 = vmatpush1.msra.mxu0 0.0
        %1236 = vmatprep.subr.mxu0 0.0
        %1237 = vmatpush1.msra.mxu0 0.0
        %1238 = vmatprep.subr.mxu0 0.0
        %1239 = vmatpush1.msra.mxu0 0.0
        %1240 = vmatprep.subr.mxu0 0.0
        %1241 = vmatpush1.msra.mxu0 0.0
        %1242 = vmatprep.subr.mxu0 0.0
        %1243 = vmatpush1.msra.mxu0 0.0
        %1244 = vmatprep.subr.mxu0 0.0
        %1245 = vmatpush1.msra.mxu0 0.0
        %1246 = vmatprep.subr.mxu0 0.0
        %1247 = vmatpush1.msra.mxu0 0.0
        %1248 = vmatprep.subr.mxu0 0.0
        %1249 = vmatpush1.msra.mxu0 0.0
        %1250 = vmatprep.subr.mxu0 0.0
        %1251 = vmatpush1.msra.mxu0 0.0
        %1252 = vmatprep.subr.mxu0 0.0
        %1253 = vmatpush1.msra.mxu0 0.0
        %1254 = vmatprep.subr.mxu0 0.0
        %1255 = vmatpush1.msra.mxu0 %v1142
        %1256 = vmatprep.subr.mxu0 0.0
        %1257 = vmatpush1.msra.mxu0 %v1139
        %1258 = vmatprep.subr.mxu0 0.0
        %1259 = vmatpush2.msra.mxu0 0.0
        %1260 = vmatprep.subr.mxu0 0.0
        %1261 = vmatpush2.msra.mxu0 0.0
        %1262 = vmatprep.subr.mxu0 0.0
        %1263 = vmatpush2.msra.mxu0 0.0
        %1264 = vmatprep.subr.mxu0 0.0
        %1265 = vmatpush2.msra.mxu0 0.0
        %1266 = vmatprep.subr.mxu0 0.0
        %1267 = vmatpush2.msra.mxu0 0.0
        %1268 = vmatprep.subr.mxu0 0.0
        %1269 = vmatpush2.msra.mxu0 0.0
        %1270 = vmatprep.subr.mxu0 0.0
        %1271 = vmatpush2.msra.mxu0 0.0
        %1272 = vmatprep.subr.mxu0 0.0
        %1273 = vmatpush2.msra.mxu0 0.0
        %1274 = vmatprep.subr.mxu0 0.0
        %1275 = vmatpush2.msra.mxu0 0.0
        %1276 = vmatprep.subr.mxu0 0.0
        %1277 = vmatpush2.msra.mxu0 0.0
        %1278 = vmatprep.subr.mxu0 0.0
        %1279 = vmatpush2.msra.mxu0 0.0
        %1280 = vmatprep.subr.mxu0 0.0
        %1281 = vmatpush2.msra.mxu0 0.0
        %1282 = vmatprep.subr.mxu0 0.0
        %1283 = vmatpush2.msra.mxu0 0.0
        %1284 = vmatprep.subr.mxu0 0.0
        %1285 = vmatpush2.msra.mxu0 0.0
        %1286 = vmatprep.subr.mxu0 0.0
        %1287 = vmatpush2.msra.mxu0 0.0
        %1288 = vmatprep.subr.mxu0 0.0
        %1289 = vmatpush2.msra.mxu0 0.0
        %1290 = vmatprep.mubr.f32.mxu0 0.0
        %1291 = vmatmul.mubr.f32.gmra.mxu0 %v1144
        %v1292 = vpop.f32.mrf.mxu0
        %v1293 = vadd.f32 0.0, %v1292
        %v1294 = vpop.f32.mrf.mxu0
        %1295 = vmatprep.mubr.f32.mxu0 0.0
        %1296 = vmatmul.mubr.f32.gmra.mxu0 %v1147
        %v1297 = vpop.f32.mrf.mxu0
        %v1298 = vadd.f32 0.0, %v1297
        %v1299 = vpop.f32.mrf.mxu0
        %1300 = vdwg.mxu0
        %v1301 = vadd.f32 %v1216, %v1218
        %v1302 = vadd.f32 %v1301, %v1293
        %1303 = vadd.xlane.f32.xlu0 %v1302
        %v1304 = vpop.xlane.xlu0 %1303
        %v1305 = vadd.f32 %v1222, %v1224
        %v1306 = vadd.f32 %v1305, %v1298
        %1307 = vadd.xlane.f32.xlu0 %v1306
        %v1308 = vpop.xlane.xlu0 %1307
        %v1309 = vsub.f32 %v1066, %v1304
        %v1310 = vsub.f32 %v1068, %v1304
        %v1311 = vsub.f32 %v1109, %v1304
        %v1312 = vsub.f32 %v1070, %v1308
        %v1313 = vsub.f32 %v1072, %v1308
        %v1314 = vsub.f32 %v1112, %v1308
        %v1315 = vmul.f32 %v1309, %v1125
        %v1316 = vmul.f32 %v1310, %v1129
        %v1317 = vmul.f32 %v1311, %v1133
        %v1318 = vmul.f32 %v1312, %v1125
        %v1319 = vmul.f32 %v1313, %v1129
        %v1320 = vmul.f32 %v1314, %v1133
        %v1321 = vmul.f32 %v1315, %v1315
        %v1322 = vmul.f32 %v1316, %v1316
        %v1323 = vmul.f32 %v1317, %v1317
        %v1324 = vmul.f32 %v1318, %v1318
        %v1325 = vmul.f32 %v1319, %v1319
        %v1326 = vmul.f32 %v1320, %v1320
        %1327 = vmatprep.subr.mxu0 0.0
        %1328 = vmatpush1.msra.mxu0 0.0
        %1329 = vmatprep.subr.mxu0 0.0
        %1330 = vmatpush1.msra.mxu0 0.0
        %1331 = vmatprep.subr.mxu0 0.0
        %1332 = vmatpush1.msra.mxu0 0.0
        %1333 = vmatprep.subr.mxu0 0.0
        %1334 = vmatpush1.msra.mxu0 0.0
        %1335 = vmatprep.subr.mxu0 0.0
        %1336 = vmatpush1.msra.mxu0 0.0
        %1337 = vmatprep.subr.mxu0 0.0
        %1338 = vmatpush1.msra.mxu0 0.0
        %1339 = vmatprep.subr.mxu0 0.0
        %1340 = vmatpush1.msra.mxu0 0.0
        %1341 = vmatprep.subr.mxu0 0.0
        %1342 = vmatpush1.msra.mxu0 0.0
        %1343 = vmatprep.subr.mxu0 0.0
        %1344 = vmatpush1.msra.mxu0 0.0
        %1345 = vmatprep.subr.mxu0 0.0
        %1346 = vmatpush1.msra.mxu0 0.0
        %1347 = vmatprep.subr.mxu0 0.0
        %1348 = vmatpush1.msra.mxu0 0.0
        %1349 = vmatprep.subr.mxu0 0.0
        %1350 = vmatpush1.msra.mxu0 0.0
        %1351 = vmatprep.subr.mxu0 0.0
        %1352 = vmatpush1.msra.mxu0 0.0
        %1353 = vmatprep.subr.mxu0 0.0
        %1354 = vmatpush1.msra.mxu0 0.0
        %1355 = vmatprep.subr.mxu0 %v1325
        %1356 = vmatpush1.msra.mxu0 %v1324
        %1357 = vmatprep.subr.mxu0 %v1322
        %1358 = vmatpush1.msra.mxu0 %v1321
        %1359 = vmatprep.subr.mxu0 0.0
        %1360 = vmatpush2.msra.mxu0 0.0
        %1361 = vmatprep.subr.mxu0 0.0
        %1362 = vmatpush2.msra.mxu0 0.0
        %1363 = vmatprep.subr.mxu0 0.0
        %1364 = vmatpush2.msra.mxu0 0.0
        %1365 = vmatprep.subr.mxu0 0.0
        %1366 = vmatpush2.msra.mxu0 0.0
        %1367 = vmatprep.subr.mxu0 0.0
        %1368 = vmatpush2.msra.mxu0 0.0
        %1369 = vmatprep.subr.mxu0 0.0
        %1370 = vmatpush2.msra.mxu0 0.0
        %1371 = vmatprep.subr.mxu0 0.0
        %1372 = vmatpush2.msra.mxu0 0.0
        %1373 = vmatprep.subr.mxu0 0.0
        %1374 = vmatpush2.msra.mxu0 0.0
        %1375 = vmatprep.subr.mxu0 0.0
        %1376 = vmatpush2.msra.mxu0 0.0
        %1377 = vmatprep.subr.mxu0 0.0
        %1378 = vmatpush2.msra.mxu0 0.0
        %1379 = vmatprep.subr.mxu0 0.0
        %1380 = vmatpush2.msra.mxu0 0.0
        %1381 = vmatprep.subr.mxu0 0.0
        %1382 = vmatpush2.msra.mxu0 0.0
        %1383 = vmatprep.subr.mxu0 0.0
        %1384 = vmatpush2.msra.mxu0 0.0
        %1385 = vmatprep.subr.mxu0 0.0
        %1386 = vmatpush2.msra.mxu0 0.0
        %1387 = vmatprep.subr.mxu0 0.0
        %1388 = vmatpush2.msra.mxu0 0.0
        %1389 = vmatprep.subr.mxu0 0.0
        %1390 = vmatpush2.msra.mxu0 0.0
        %1391 = vmatprep.mubr.f32.mxu0 0.0
        %1392 = vmatmul.mubr.f32.gmra.mxu0 %v1144
        %v1393 = vpop.f32.mrf.mxu0
        %v1394 = vadd.f32 0.0, %v1393
        %v1395 = vpop.f32.mrf.mxu0
        %v1396 = vadd.f32 0.0, %v1395
        %1397 = vmatprep.mubr.f32.mxu0 0.0
        %1398 = vmatmul.mubr.f32.gmra.mxu0 %v1147
        %v1399 = vpop.f32.mrf.mxu0
        %v1400 = vadd.f32 0.0, %v1399
        %v1401 = vpop.f32.mrf.mxu0
        %v1402 = vadd.f32 0.0, %v1401
        %1403 = vdwg.mxu0
        %1404 = vmatprep.subr.mxu0 0.0
        %1405 = vmatpush1.msra.mxu0 0.0
        %1406 = vmatprep.subr.mxu0 0.0
        %1407 = vmatpush1.msra.mxu0 0.0
        %1408 = vmatprep.subr.mxu0 0.0
        %1409 = vmatpush1.msra.mxu0 0.0
        %1410 = vmatprep.subr.mxu0 0.0
        %1411 = vmatpush1.msra.mxu0 0.0
        %1412 = vmatprep.subr.mxu0 0.0
        %1413 = vmatpush1.msra.mxu0 0.0
        %1414 = vmatprep.subr.mxu0 0.0
        %1415 = vmatpush1.msra.mxu0 0.0
        %1416 = vmatprep.subr.mxu0 0.0
        %1417 = vmatpush1.msra.mxu0 0.0
        %1418 = vmatprep.subr.mxu0 0.0
        %1419 = vmatpush1.msra.mxu0 0.0
        %1420 = vmatprep.subr.mxu0 0.0
        %1421 = vmatpush1.msra.mxu0 0.0
        %1422 = vmatprep.subr.mxu0 0.0
        %1423 = vmatpush1.msra.mxu0 0.0
        %1424 = vmatprep.subr.mxu0 0.0
        %1425 = vmatpush1.msra.mxu0 0.0
        %1426 = vmatprep.subr.mxu0 0.0
        %1427 = vmatpush1.msra.mxu0 0.0
        %1428 = vmatprep.subr.mxu0 0.0
        %1429 = vmatpush1.msra.mxu0 0.0
        %1430 = vmatprep.subr.mxu0 0.0
        %1431 = vmatpush1.msra.mxu0 0.0
        %1432 = vmatprep.subr.mxu0 0.0
        %1433 = vmatpush1.msra.mxu0 %v1326
        %1434 = vmatprep.subr.mxu0 0.0
        %1435 = vmatpush1.msra.mxu0 %v1323
        %1436 = vmatprep.subr.mxu0 0.0
        %1437 = vmatpush2.msra.mxu0 0.0
        %1438 = vmatprep.subr.mxu0 0.0
        %1439 = vmatpush2.msra.mxu0 0.0
        %1440 = vmatprep.subr.mxu0 0.0
        %1441 = vmatpush2.msra.mxu0 0.0
        %1442 = vmatprep.subr.mxu0 0.0
        %1443 = vmatpush2.msra.mxu0 0.0
        %1444 = vmatprep.subr.mxu0 0.0
        %1445 = vmatpush2.msra.mxu0 0.0
        %1446 = vmatprep.subr.mxu0 0.0
        %1447 = vmatpush2.msra.mxu0 0.0
        %1448 = vmatprep.subr.mxu0 0.0
        %1449 = vmatpush2.msra.mxu0 0.0
        %1450 = vmatprep.subr.mxu0 0.0
        %1451 = vmatpush2.msra.mxu0 0.0
        %1452 = vmatprep.subr.mxu0 0.0
        %1453 = vmatpush2.msra.mxu0 0.0
        %1454 = vmatprep.subr.mxu0 0.0
        %1455 = vmatpush2.msra.mxu0 0.0
        %1456 = vmatprep.subr.mxu0 0.0
        %1457 = vmatpush2.msra.mxu0 0.0
        %1458 = vmatprep.subr.mxu0 0.0
        %1459 = vmatpush2.msra.mxu0 0.0
        %1460 = vmatprep.subr.mxu0 0.0
        %1461 = vmatpush2.msra.mxu0 0.0
        %1462 = vmatprep.subr.mxu0 0.0
        %1463 = vmatpush2.msra.mxu0 0.0
        %1464 = vmatprep.subr.mxu0 0.0
        %1465 = vmatpush2.msra.mxu0 0.0
        %1466 = vmatprep.subr.mxu0 0.0
        %1467 = vmatpush2.msra.mxu0 0.0
        %1468 = vmatprep.mubr.f32.mxu0 0.0
        %1469 = vmatmul.mubr.f32.gmra.mxu0 %v1144
        %v1470 = vpop.f32.mrf.mxu0
        %v1471 = vadd.f32 0.0, %v1470
        %v1472 = vpop.f32.mrf.mxu0
        %1473 = vmatprep.mubr.f32.mxu0 0.0
        %1474 = vmatmul.mubr.f32.gmra.mxu0 %v1147
        %v1475 = vpop.f32.mrf.mxu0
        %v1476 = vadd.f32 0.0, %v1475
        %v1477 = vpop.f32.mrf.mxu0
        %1478 = vdwg.mxu0
        %v1479 = vadd.f32 %v1394, %v1396
        %v1480 = vadd.f32 %v1479, %v1471
        %1481 = vadd.xlane.f32.xlu0 %v1480
        %v1482 = vpop.xlane.xlu0 %1481
        %v1483 = vadd.f32 %v1400, %v1402
        %v1484 = vadd.f32 %v1483, %v1476
        %1485 = vadd.xlane.f32.xlu0 %v1484
        %v1486 = vpop.xlane.xlu0 %1485
        %v1487 = vadd.f32 %v1482, 1e-05
        %v1488 = vadd.f32 %v1486, 1e-05
        %v1489 = vrsqrt.pop %v1487
        %v1490 = vrsqrt.pop %v1488
        %v1491 = vmul.f32 %v1315, %v1489
        %v1492 = vmul.f32 %v1316, %v1489
        %v1493 = vmul.f32 %v1317, %v1489
        %v1494 = vmul.f32 %v1318, %v1490
        %v1495 = vmul.f32 %v1319, %v1490
        %v1496 = vmul.f32 %v1320, %v1490
        %1498 = vset.pattern.permute.xlu0 0
        %1499 = vperm.xlu0 %1498, %v1117
        %v1500 = vpop.permute.xlu0 %1499
        %1503 = vset.pattern.permute.xlu0 0
        %1504 = vperm.xlu0 %1503, %v1118
        %v1505 = vpop.permute.xlu0 %1504
        %v1507 = vmul.f32 %v1491, %v1500
        %v1508 = vmul.f32 %v1492, %v1500
        %v1509 = vmul.f32 %v1493, %v1500
        %v1510 = vmul.f32 %v1494, %v1505
        %v1511 = vmul.f32 %v1495, %v1505
        %v1512 = vmul.f32 %v1496, %v1505
        %1514 = vset.pattern.permute.xlu0 0
        %1515 = vperm.xlu0 %1514, %v1119
        %v1516 = vpop.permute.xlu0 %1515
        %1519 = vset.pattern.permute.xlu0 0
        %1520 = vperm.xlu0 %1519, %v1120
        %v1521 = vpop.permute.xlu0 %1520
        %v1523 = vadd.f32 %v1507, %v1516
        %v1524 = vadd.f32 %v1508, %v1516
        %v1525 = vadd.f32 %v1509, %v1516
        %v1526 = vadd.f32 %v1510, %v1521
        %v1527 = vadd.f32 %v1511, %v1521
        %v1528 = vadd.f32 %v1512, %v1521
        %v1529 = vld [vmem:[%s527] sm:$0xff]
        %v1530 = vld [vmem:[%s527 + $0x8] sm:$0xff]
        %1532 = vset.pattern.permute.xlu0 0
        %1533 = vperm.xlu0 %1532, %v1529
        %v1534 = vpop.permute.xlu0 %1533
        %1537 = vset.pattern.permute.xlu0 0
        %1538 = vperm.xlu0 %1537, %v1530
        %v1539 = vpop.permute.xlu0 %1538
        %v1541 = vmul.f32 %v1523, %v1534
        %v1542 = vmul.f32 %v1524, %v1534
        %v1543 = vmul.f32 %v1525, %v1534
        %v1544 = vmul.f32 %v1526, %v1539
        %v1545 = vmul.f32 %v1527, %v1539
        %v1546 = vmul.f32 %v1528, %v1539
        %v1547 = vld [vmem:[%s532] sm:$0xff]
        %v1548 = vld [vmem:[%s532 + $0x8] sm:$0xff]
        %1550 = vset.pattern.permute.xlu0 0
        %1551 = vperm.xlu0 %1550, %v1547
        %v1552 = vpop.permute.xlu0 %1551
        %1555 = vset.pattern.permute.xlu0 0
        %1556 = vperm.xlu0 %1555, %v1548
        %v1557 = vpop.permute.xlu0 %1556
        %v1559 = vadd.f32 %v1541, %v1552
        %v1560 = vadd.f32 %v1542, %v1552
        %v1561 = vadd.f32 %v1543, %v1552
        %v1562 = vadd.f32 %v1544, %v1557
        %v1563 = vadd.f32 %v1545, %v1557
        %v1564 = vadd.f32 %v1546, %v1557
        %v1565 = vxor.u32 %v1559, 2147483648
        %v1566 = vxor.u32 %v1560, 2147483648
        %v1567 = vxor.u32 %v1561, 2147483648
        %v1568 = vxor.u32 %v1562, 2147483648
        %v1569 = vxor.u32 %v1563, 2147483648
        %v1570 = vxor.u32 %v1564, 2147483648
        %v1571 = vmul.f32 %v1565, 1.442695
        %v1572 = vpow.pop %v1571
        %v1573 = vmul.f32 %v1566, 1.442695
        %v1574 = vpow.pop %v1573
        %v1575 = vmul.f32 %v1567, 1.442695
        %v1576 = vpow.pop %v1575
        %v1577 = vmul.f32 %v1568, 1.442695
        %v1578 = vpow.pop %v1577
        %v1579 = vmul.f32 %v1569, 1.442695
        %v1580 = vpow.pop %v1579
        %v1581 = vmul.f32 %v1570, 1.442695
        %v1582 = vpow.pop %v1581
        %v1583 = vadd.f32 %v1572, 1.0
        %v1584 = vadd.f32 %v1574, 1.0
        %v1585 = vadd.f32 %v1576, 1.0
        %v1586 = vadd.f32 %v1578, 1.0
        %v1587 = vadd.f32 %v1580, 1.0
        %v1588 = vadd.f32 %v1582, 1.0
        %v1589 = vrcp.pop %v1583
        %v1590 = vmul.f32 1.0, %v1589
        %v1591 = vrcp.pop %v1584
        %v1592 = vmul.f32 1.0, %v1591
        %v1593 = vrcp.pop %v1585
        %v1594 = vmul.f32 1.0, %v1593
        %v1595 = vrcp.pop %v1586
        %v1596 = vmul.f32 1.0, %v1595
        %v1597 = vrcp.pop %v1587
        %v1598 = vmul.f32 1.0, %v1597
        %v1599 = vrcp.pop %v1588
        %v1600 = vmul.f32 1.0, %v1599
        %v1601 = vmul.f32 %v1559, %v1590
        %v1602 = vmul.f32 %v1560, %v1592
        %v1603 = vmul.f32 %v1561, %v1594
        %v1604 = vmul.f32 %v1562, %v1596
        %v1605 = vmul.f32 %v1563, %v1598
        %v1606 = vmul.f32 %v1564, %v1600
        %v1607 = vmul.f32 %v1601, %v1125
        %v1608 = vmul.f32 %v1602, %v1129
        %v1609 = vmul.f32 %v1603, %v1133
        %v1610 = vmul.f32 %v1604, %v1125
        %v1611 = vmul.f32 %v1605, %v1129
        %v1612 = vmul.f32 %v1606, %v1133
        %1613 = vst [vmem:[#allocation3] sm:$0xf] 0
        %1614 = vst [vmem:[#allocation3 + $0x14] sm:$0xf] 0
        %1615 = vst [vmem:[#allocation3 + $0x10] sm:$0xf] 0
        %1616 = vst [vmem:[#allocation3 + $0x24] sm:$0xf] 0
        %v1617 = vpack.c.bf16 %v1610, %v1607
        %v1618 = vpack.c.bf16 %v1611, %v1608
        %v1619 = vpack.c.bf16 %v1612, %v1609
        %v1623 = vunpack.c.l.b16 %v1617
        %v1624 = vunpack.c.l.b16 %v1618
        %v1625 = vunpack.c.l.b16 %v1619
        %v1626 = vunpack.c.h.b16 %v1617
        %v1627 = vunpack.c.h.b16 %v1618
        %v1628 = vunpack.c.h.b16 %v1619
        %v1629 = vpack.c.b16 %v1624, %v1623
        %v1630 = vpack.c.b16 %v1625, %v1625
        %v1631 = vpack.c.b16 %v1627, %v1626
        %v1632 = vpack.c.b16 %v1628, %v1628
        %1637 = vst [vmem:[#allocation3 + $0x4] sm:$0xff] %v1629
        %1638 = vst [vmem:[#allocation3 + $0xc] sm:$0xf] %v1630
        %1639 = vst [vmem:[#allocation3 + $0x18] sm:$0xff] %v1631
        %1640 = vst [vmem:[#allocation3 + $0x20] sm:$0xf] %v1632
        %v1641 = vld [vmem:[#allocation3] sm:$0xff]
        %v1642 = vld [vmem:[#allocation3 + $0x8] sm:$0xff]
        %v1643 = vld [vmem:[#allocation3 + $0x14] sm:$0xff]
        %v1644 = vld [vmem:[#allocation3 + $0x1c] sm:$0xff]
        %1649 = vrot.lane.b32.xlu0 %v1641, 19
        %v1650 = vpop.permute.xlu0 %1649
        %1651 = vrot.lane.b32.xlu0 %v1642, 19
        %v1652 = vpop.permute.xlu0 %1651
        %1653 = vrot.lane.b32.xlu0 %v1643, 19
        %v1654 = vpop.permute.xlu0 %1653
        %1655 = vrot.lane.b32.xlu0 %v1644, 19
        %v1656 = vpop.permute.xlu0 %1655
        %v1657 = vrot.slane %v1650, 4
        %v1658 = vrot.slane %v1652, 4
        %v1659 = vrot.slane %v1654, 4
        %v1660 = vrot.slane %v1656, 4
        %v1661 = vsel %vm555, %v1657, %v1658
        %v1662 = vsel %vm557, %v1650, %v1661
        %v1663 = vsel %vm557, %v1652, %v1658
        %v1664 = vsel %vm555, %v1659, %v1660
        %v1665 = vsel %vm557, %v1654, %v1664
        %v1666 = vsel %vm557, %v1656, %v1660
        %1671 = vst [vmem:[#allocation4] sm:$0xff] %v1662
        %1672 = vst [vmem:[#allocation4 + $0x8] sm:$0xf] %v1663
        %1673 = vst [vmem:[#allocation4 + $0xc] sm:$0xff] %v1665
        %1674 = vst [vmem:[#allocation4 + $0x14] sm:$0xf] %v1666
        %v1675 = vld [vmem:[#allocation3] sm:$0xff]
        %v1676 = vld [vmem:[#allocation3 + $0x8] sm:$0xff]
        %v1677 = vld [vmem:[#allocation3 + $0x14] sm:$0xff]
        %v1678 = vld [vmem:[#allocation3 + $0x1c] sm:$0xff]
        %1683 = vrot.lane.b32.xlu0 %v1675, 18
        %v1684 = vpop.permute.xlu0 %1683
        %1685 = vrot.lane.b32.xlu0 %v1676, 18
        %v1686 = vpop.permute.xlu0 %1685
        %1687 = vrot.lane.b32.xlu0 %v1677, 18
        %v1688 = vpop.permute.xlu0 %1687
        %1689 = vrot.lane.b32.xlu0 %v1678, 18
        %v1690 = vpop.permute.xlu0 %1689
        %v1691 = vrot.slane %v1684, 4
        %v1692 = vrot.slane %v1686, 4
        %v1693 = vrot.slane %v1688, 4
        %v1694 = vrot.slane %v1690, 4
        %v1695 = vsel %vm555, %v1691, %v1692
        %v1696 = vsel %vm592, %v1684, %v1695
        %v1697 = vsel %vm592, %v1686, %v1692
        %v1698 = vsel %vm555, %v1693, %v1694
        %v1699 = vsel %vm592, %v1688, %v1698
        %v1700 = vsel %vm592, %v1690, %v1694
        %1705 = vst [vmem:[#allocation4 + $0x18] sm:$0xff] %v1696
        %1706 = vst [vmem:[#allocation4 + $0x20] sm:$0xf] %v1697
        %1707 = vst [vmem:[#allocation4 + $0x24] sm:$0xff] %v1699
        %1708 = vst [vmem:[#allocation4 + $0x2c] sm:$0xf] %v1700
        %v1709 = vld [vmem:[#allocation3] sm:$0xff]
        %v1710 = vld [vmem:[#allocation3 + $0x8] sm:$0xff]
        %v1711 = vld [vmem:[#allocation3 + $0x14] sm:$0xff]
        %v1712 = vld [vmem:[#allocation3 + $0x1c] sm:$0xff]
        %1717 = vrot.lane.b32.xlu0 %v1709, 17
        %v1718 = vpop.permute.xlu0 %1717
        %1719 = vrot.lane.b32.xlu0 %v1710, 17
        %v1720 = vpop.permute.xlu0 %1719
        %1721 = vrot.lane.b32.xlu0 %v1711, 17
        %v1722 = vpop.permute.xlu0 %1721
        %1723 = vrot.lane.b32.xlu0 %v1712, 17
        %v1724 = vpop.permute.xlu0 %1723
        %v1725 = vrot.slane %v1718, 4
        %v1726 = vrot.slane %v1720, 4
        %v1727 = vrot.slane %v1722, 4
        %v1728 = vrot.slane %v1724, 4
        %v1729 = vsel %vm555, %v1725, %v1726
        %v1730 = vsel %vm627, %v1718, %v1729
        %v1731 = vsel %vm627, %v1720, %v1726
        %v1732 = vsel %vm555, %v1727, %v1728
        %v1733 = vsel %vm627, %v1722, %v1732
        %v1734 = vsel %vm627, %v1724, %v1728
        %1739 = vst [vmem:[#allocation4 + $0x30] sm:$0xff] %v1730
        %1740 = vst [vmem:[#allocation4 + $0x38] sm:$0xf] %v1731
        %1741 = vst [vmem:[#allocation4 + $0x3c] sm:$0xff] %v1733
        %1742 = vst [vmem:[#allocation4 + $0x44] sm:$0xf] %v1734
        %v1743 = vld [vmem:[#allocation3] sm:$0xff]
        %v1744 = vld [vmem:[#allocation3 + $0x8] sm:$0xff]
        %v1745 = vld [vmem:[#allocation3 + $0x14] sm:$0xff]
        %v1746 = vld [vmem:[#allocation3 + $0x1c] sm:$0xff]
        %1751 = vrot.lane.b32.xlu0 %v1743, 1
        %v1752 = vpop.permute.xlu0 %1751
        %1753 = vrot.lane.b32.xlu0 %v1744, 1
        %v1754 = vpop.permute.xlu0 %1753
        %1755 = vrot.lane.b32.xlu0 %v1745, 1
        %v1756 = vpop.permute.xlu0 %1755
        %1757 = vrot.lane.b32.xlu0 %v1746, 1
        %v1758 = vpop.permute.xlu0 %1757
        %v1759 = vrot.slane %v1752, 4
        %v1760 = vrot.slane %v1754, 4
        %v1761 = vrot.slane %v1756, 4
        %v1762 = vrot.slane %v1758, 4
        %v1763 = vsel %vm555, %v1759, %v1760
        %v1764 = vsel %vm662, %v1752, %v1763
        %v1765 = vsel %vm662, %v1754, %v1760
        %v1766 = vsel %vm555, %v1761, %v1762
        %v1767 = vsel %vm662, %v1756, %v1766
        %v1768 = vsel %vm662, %v1758, %v1762
        %1773 = vst [vmem:[#allocation4 + $0x48] sm:$0xff] %v1764
        %1774 = vst [vmem:[#allocation4 + $0x50] sm:$0xf] %v1765
        %1775 = vst [vmem:[#allocation4 + $0x54] sm:$0xff] %v1767
        %1776 = vst [vmem:[#allocation4 + $0x5c] sm:$0xf] %v1768
        %v1777 = vld [vmem:[#allocation3 + $0x4] sm:$0xff]
        %v1778 = vld [vmem:[#allocation3 + $0xc] sm:$0xf]
        %v1779 = vld [vmem:[#allocation3 + $0x18] sm:$0xff]
        %v1780 = vld [vmem:[#allocation3 + $0x20] sm:$0xf]
        %1781 = vst [vmem:[#allocation4 + $0x60] sm:$0xff] %v1777
        %1782 = vst [vmem:[#allocation4 + $0x68] sm:$0xf] %v1778
        %1783 = vst [vmem:[#allocation4 + $0x6c] sm:$0xff] %v1779
        %1784 = vst [vmem:[#allocation4 + $0x74] sm:$0xf] %v1780
        %v1785 = vld [vmem:[#allocation3 + $0x4] sm:$0xff]
        %v1786 = vld [vmem:[#allocation3 + $0xc] sm:$0xff]
        %v1787 = vld [vmem:[#allocation3 + $0x18] sm:$0xff]
        %v1788 = vld [vmem:[#allocation3 + $0x20] sm:$0xff]
        %1793 = vrot.lane.b32.xlu0 %v1785, 127
        %v1794 = vpop.permute.xlu0 %1793
        %1795 = vrot.lane.b32.xlu0 %v1786, 127
        %v1796 = vpop.permute.xlu0 %1795
        %1797 = vrot.lane.b32.xlu0 %v1787, 127
        %v1798 = vpop.permute.xlu0 %1797
        %1799 = vrot.lane.b32.xlu0 %v1788, 127
        %v1800 = vpop.permute.xlu0 %1799
        %v1801 = vrot.slane %v1794, 4
        %v1802 = vrot.slane %v1796, 4
        %v1803 = vrot.slane %v1798, 4
        %v1804 = vrot.slane %v1800, 4
        %v1805 = vsel %vm555, %v1801, %v1802
        %v1806 = vsel %vm705, %v1794, %v1805
        %v1807 = vsel %vm705, %v1796, %v1802
        %v1808 = vsel %vm555, %v1803, %v1804
        %v1809 = vsel %vm705, %v1798, %v1808
        %v1810 = vsel %vm705, %v1800, %v1804
        %1815 = vst [vmem:[#allocation4 + $0x78] sm:$0xff] %v1806
        %1816 = vst [vmem:[#allocation4 + $0x80] sm:$0xf] %v1807
        %1817 = vst [vmem:[#allocation4 + $0x84] sm:$0xff] %v1809
        %1818 = vst [vmem:[#allocation4 + $0x8c] sm:$0xf] %v1810
        %v1819 = vld [vmem:[#allocation3 + $0x4] sm:$0xff]
        %v1820 = vld [vmem:[#allocation3 + $0xc] sm:$0xff]
        %v1821 = vld [vmem:[#allocation3 + $0x18] sm:$0xff]
        %v1822 = vld [vmem:[#allocation3 + $0x20] sm:$0xff]
        %1827 = vrot.lane.b32.xlu0 %v1819, 111
        %v1828 = vpop.permute.xlu0 %1827
        %1829 = vrot.lane.b32.xlu0 %v1820, 111
        %v1830 = vpop.permute.xlu0 %1829
        %1831 = vrot.lane.b32.xlu0 %v1821, 111
        %v1832 = vpop.permute.xlu0 %1831
        %1833 = vrot.lane.b32.xlu0 %v1822, 111
        %v1834 = vpop.permute.xlu0 %1833
        %v1835 = vrot.slane %v1828, 4
        %v1836 = vrot.slane %v1830, 4
        %v1837 = vrot.slane %v1832, 4
        %v1838 = vrot.slane %v1834, 4
        %v1839 = vsel %vm555, %v1835, %v1836
        %v1840 = vsel %vm740, %v1828, %v1839
        %v1841 = vsel %vm740, %v1830, %v1836
        %v1842 = vsel %vm555, %v1837, %v1838
        %v1843 = vsel %vm740, %v1832, %v1842
        %v1844 = vsel %vm740, %v1834, %v1838
        %1849 = vst [vmem:[#allocation4 + $0x90] sm:$0xff] %v1840
        %1850 = vst [vmem:[#allocation4 + $0x98] sm:$0xf] %v1841
        %1851 = vst [vmem:[#allocation4 + $0x9c] sm:$0xff] %v1843
        %1852 = vst [vmem:[#allocation4 + $0xa4] sm:$0xf] %v1844
        %v1853 = vld [vmem:[#allocation3 + $0x4] sm:$0xff]
        %v1854 = vld [vmem:[#allocation3 + $0xc] sm:$0xff]
        %v1855 = vld [vmem:[#allocation3 + $0x18] sm:$0xff]
        %v1856 = vld [vmem:[#allocation3 + $0x20] sm:$0xff]
        %1861 = vrot.lane.b32.xlu0 %v1853, 110
        %v1862 = vpop.permute.xlu0 %1861
        %1863 = vrot.lane.b32.xlu0 %v1854, 110
        %v1864 = vpop.permute.xlu0 %1863
        %1865 = vrot.lane.b32.xlu0 %v1855, 110
        %v1866 = vpop.permute.xlu0 %1865
        %1867 = vrot.lane.b32.xlu0 %v1856, 110
        %v1868 = vpop.permute.xlu0 %1867
        %v1869 = vrot.slane %v1862, 4
        %v1870 = vrot.slane %v1864, 4
        %v1871 = vrot.slane %v1866, 4
        %v1872 = vrot.slane %v1868, 4
        %v1873 = vsel %vm555, %v1869, %v1870
        %v1874 = vsel %vm775, %v1862, %v1873
        %v1875 = vsel %vm775, %v1864, %v1870
        %v1876 = vsel %vm555, %v1871, %v1872
        %v1877 = vsel %vm775, %v1866, %v1876
        %v1878 = vsel %vm775, %v1868, %v1872
        %1883 = vst [vmem:[#allocation4 + $0xa8] sm:$0xff] %v1874
        %1884 = vst [vmem:[#allocation4 + $0xb0] sm:$0xf] %v1875
        %1885 = vst [vmem:[#allocation4 + $0xb4] sm:$0xff] %v1877
        %1886 = vst [vmem:[#allocation4 + $0xbc] sm:$0xf] %v1878
        %v1887 = vld [vmem:[#allocation3 + $0x4] sm:$0xff]
        %v1888 = vld [vmem:[#allocation3 + $0xc] sm:$0xff]
        %v1889 = vld [vmem:[#allocation3 + $0x18] sm:$0xff]
        %v1890 = vld [vmem:[#allocation3 + $0x20] sm:$0xff]
        %1895 = vrot.lane.b32.xlu0 %v1887, 109
        %v1896 = vpop.permute.xlu0 %1895
        %1897 = vrot.lane.b32.xlu0 %v1888, 109
        %v1898 = vpop.permute.xlu0 %1897
        %1899 = vrot.lane.b32.xlu0 %v1889, 109
        %v1900 = vpop.permute.xlu0 %1899
        %1901 = vrot.lane.b32.xlu0 %v1890, 109
        %v1902 = vpop.permute.xlu0 %1901
        %v1903 = vrot.slane %v1896, 4
        %v1904 = vrot.slane %v1898, 4
        %v1905 = vrot.slane %v1900, 4
        %v1906 = vrot.slane %v1902, 4
        %v1907 = vsel %vm555, %v1903, %v1904
        %v1908 = vsel %vm810, %v1896, %v1907
        %v1909 = vsel %vm810, %v1898, %v1904
        %v1910 = vsel %vm555, %v1905, %v1906
        %v1911 = vsel %vm810, %v1900, %v1910
        %v1912 = vsel %vm810, %v1902, %v1906
        %1917 = vst [vmem:[#allocation4 + $0xc0] sm:$0xff] %v1908
        %1918 = vst [vmem:[#allocation4 + $0xc8] sm:$0xf] %v1909
        %1919 = vst [vmem:[#allocation4 + $0xcc] sm:$0xff] %v1911
        %1920 = vst [vmem:[#allocation4 + $0xd4] sm:$0xf] %v1912
        %v1921 = vld [vmem:[%s8] sm:$0xff]
        %v1922 = vld [vmem:[%s8 + $0x8] sm:$0xff]
        %v1923 = vld [vmem:[#allocation4] sm:$0xff]
        %v1924 = vld [vmem:[#allocation4 + $0x8] sm:$0xf]
        %v1925 = vld [vmem:[#allocation4 + $0xc] sm:$0xff]
        %v1926 = vld [vmem:[#allocation4 + $0x14] sm:$0xf]
        %v1927 = vld [vmem:[#allocation4 + $0x18] sm:$0xff]
        %v1928 = vld [vmem:[#allocation4 + $0x20] sm:$0xf]
        %v1929 = vld [vmem:[#allocation4 + $0x24] sm:$0xff]
        %v1930 = vld [vmem:[#allocation4 + $0x2c] sm:$0xf]
        %v1931 = vld [vmem:[#allocation4 + $0x30] sm:$0xff]
        %v1932 = vld [vmem:[#allocation4 + $0x38] sm:$0xf]
        %v1933 = vld [vmem:[#allocation4 + $0x3c] sm:$0xff]
        %v1934 = vld [vmem:[#allocation4 + $0x44] sm:$0xf]
        %v1935 = vld [vmem:[#allocation4 + $0x48] sm:$0xff]
        %v1936 = vld [vmem:[#allocation4 + $0x50] sm:$0xf]
        %v1937 = vld [vmem:[#allocation4 + $0x54] sm:$0xff]
        %v1938 = vld [vmem:[#allocation4 + $0x5c] sm:$0xf]
        %v1939 = vld [vmem:[#allocation4 + $0x60] sm:$0xff]
        %v1940 = vld [vmem:[#allocation4 + $0x68] sm:$0xf]
        %v1941 = vld [vmem:[#allocation4 + $0x6c] sm:$0xff]
        %v1942 = vld [vmem:[#allocation4 + $0x74] sm:$0xf]
        %v1943 = vld [vmem:[#allocation4 + $0x78] sm:$0xff]
        %v1944 = vld [vmem:[#allocation4 + $0x80] sm:$0xf]
        %v1945 = vld [vmem:[#allocation4 + $0x84] sm:$0xff]
        %v1946 = vld [vmem:[#allocation4 + $0x8c] sm:$0xf]
        %v1947 = vld [vmem:[#allocation4 + $0x90] sm:$0xff]
        %v1948 = vld [vmem:[#allocation4 + $0x98] sm:$0xf]
        %v1949 = vld [vmem:[#allocation4 + $0x9c] sm:$0xff]
        %v1950 = vld [vmem:[#allocation4 + $0xa4] sm:$0xf]
        %v1951 = vld [vmem:[#allocation4 + $0xa8] sm:$0xff]
        %v1952 = vld [vmem:[#allocation4 + $0xb0] sm:$0xf]
        %v1953 = vld [vmem:[#allocation4 + $0xb4] sm:$0xff]
        %v1954 = vld [vmem:[#allocation4 + $0xbc] sm:$0xf]
        %v1955 = vld [vmem:[#allocation4 + $0xc0] sm:$0xff]
        %v1956 = vld [vmem:[#allocation4 + $0xc8] sm:$0xf]
        %v1957 = vld [vmem:[#allocation4 + $0xcc] sm:$0xff]
        %v1958 = vld [vmem:[#allocation4 + $0xd4] sm:$0xf]
        %v1959 = vld [vmem:[%s9] sm:$0xff]
        %v1960 = vld [vmem:[%s9 + $0x8] sm:$0xff]
        %1962 = vset.pattern.permute.xlu0 0
        %1963 = vperm.xlu0 %1962, %v1959
        %v1964 = vpop.permute.xlu0 %1963
        %1967 = vset.pattern.permute.xlu0 0
        %1968 = vperm.xlu0 %1967, %v1960
        %v1969 = vpop.permute.xlu0 %1968
        %v1973 = vunpack.c.l.b16 %v1921
        %v1974 = vunpack.c.h.b16 %v1921
        %v1975 = vunpack.c.l.b16 %v1922
        %v1976 = vunpack.c.h.b16 %v1922
        %v1977 = vpack.c.b16 %v1975, %v1973
        %v1978 = vpack.c.b16 %v1976, %v1974
        %v2016 = vunpack.c.l.b16 %v1923
        %v2017 = vunpack.c.h.b16 %v1923
        %v2018 = vunpack.c.l.b16 %v1924
        %v2019 = vunpack.c.l.b16 %v1925
        %v2020 = vunpack.c.h.b16 %v1925
        %v2021 = vunpack.c.l.b16 %v1926
        %v2022 = vunpack.c.l.b16 %v1927
        %v2023 = vunpack.c.h.b16 %v1927
        %v2024 = vunpack.c.l.b16 %v1928
        %v2025 = vunpack.c.l.b16 %v1929
        %v2026 = vunpack.c.h.b16 %v1929
        %v2027 = vunpack.c.l.b16 %v1930
        %v2028 = vunpack.c.l.b16 %v1931
        %v2029 = vunpack.c.h.b16 %v1931
        %v2030 = vunpack.c.l.b16 %v1932
        %v2031 = vunpack.c.l.b16 %v1933
        %v2032 = vunpack.c.h.b16 %v1933
        %v2033 = vunpack.c.l.b16 %v1934
        %v2034 = vunpack.c.l.b16 %v1935
        %v2035 = vunpack.c.h.b16 %v1935
        %v2036 = vunpack.c.l.b16 %v1936
        %v2037 = vunpack.c.l.b16 %v1937
        %v2038 = vunpack.c.h.b16 %v1937
        %v2039 = vunpack.c.l.b16 %v1938
        %v2040 = vunpack.c.l.b16 %v1939
        %v2041 = vunpack.c.h.b16 %v1939
        %v2042 = vunpack.c.l.b16 %v1940
        %v2043 = vunpack.c.l.b16 %v1941
        %v2044 = vunpack.c.h.b16 %v1941
        %v2045 = vunpack.c.l.b16 %v1942
        %v2046 = vunpack.c.l.b16 %v1943
        %v2047 = vunpack.c.h.b16 %v1943
        %v2048 = vunpack.c.l.b16 %v1944
        %v2049 = vunpack.c.l.b16 %v1945
        %v2050 = vunpack.c.h.b16 %v1945
        %v2051 = vunpack.c.l.b16 %v1946
        %v2052 = vunpack.c.l.b16 %v1947
        %v2053 = vunpack.c.h.b16 %v1947
        %v2054 = vunpack.c.l.b16 %v1948
        %v2055 = vunpack.c.l.b16 %v1949
        %v2056 = vunpack.c.h.b16 %v1949
        %v2057 = vunpack.c.l.b16 %v1950
        %v2058 = vunpack.c.l.b16 %v1951
        %v2059 = vunpack.c.h.b16 %v1951
        %v2060 = vunpack.c.l.b16 %v1952
        %v2061 = vunpack.c.l.b16 %v1953
        %v2062 = vunpack.c.h.b16 %v1953
        %v2063 = vunpack.c.l.b16 %v1954
        %v2064 = vunpack.c.l.b16 %v1955
        %v2065 = vunpack.c.h.b16 %v1955
        %v2066 = vunpack.c.l.b16 %v1956
        %v2067 = vunpack.c.l.b16 %v1957
        %v2068 = vunpack.c.h.b16 %v1957
        %v2069 = vunpack.c.l.b16 %v1958
        %v2070 = vpack.c.b16 %v2019, %v2016
        %v2071 = vpack.c.b16 %v2020, %v2017
        %v2072 = vpack.c.b16 %v2021, %v2018
        %v2073 = vpack.c.b16 %v2025, %v2022
        %v2074 = vpack.c.b16 %v2026, %v2023
        %v2075 = vpack.c.b16 %v2027, %v2024
        %v2076 = vpack.c.b16 %v2031, %v2028
        %v2077 = vpack.c.b16 %v2032, %v2029
        %v2078 = vpack.c.b16 %v2033, %v2030
        %v2079 = vpack.c.b16 %v2037, %v2034
        %v2080 = vpack.c.b16 %v2038, %v2035
        %v2081 = vpack.c.b16 %v2039, %v2036
        %v2082 = vpack.c.b16 %v2043, %v2040
        %v2083 = vpack.c.b16 %v2044, %v2041
        %v2084 = vpack.c.b16 %v2045, %v2042
        %v2085 = vpack.c.b16 %v2049, %v2046
        %v2086 = vpack.c.b16 %v2050, %v2047
        %v2087 = vpack.c.b16 %v2051, %v2048
        %v2088 = vpack.c.b16 %v2055, %v2052
        %v2089 = vpack.c.b16 %v2056, %v2053
        %v2090 = vpack.c.b16 %v2057, %v2054
        %v2091 = vpack.c.b16 %v2061, %v2058
        %v2092 = vpack.c.b16 %v2062, %v2059
        %v2093 = vpack.c.b16 %v2063, %v2060
        %v2094 = vpack.c.b16 %v2067, %v2064
        %v2095 = vpack.c.b16 %v2068, %v2065
        %v2096 = vpack.c.b16 %v2069, %v2066
        %v2125 = vsel %vm1027, %v1978, 0
        %2127 = vmatprep.subr.bf16.mxu0 %v2092
        %2128 = vmatpush1.bf16.msra.mxu0 %v2091
        %2129 = vmatprep.subr.bf16.mxu0 %v2089
        %2130 = vmatpush1.bf16.msra.mxu0 %v2088
        %2131 = vmatprep.subr.bf16.mxu0 %v2086
        %2132 = vmatpush1.bf16.msra.mxu0 %v2085
        %2133 = vmatprep.subr.bf16.mxu0 %v2083
        %2134 = vmatpush1.bf16.msra.mxu0 %v2082
        %2135 = vmatprep.subr.bf16.mxu0 %v2080
        %2136 = vmatpush1.bf16.msra.mxu0 %v2079
        %2137 = vmatprep.subr.bf16.mxu0 %v2077
        %2138 = vmatpush1.bf16.msra.mxu0 %v2076
        %2139 = vmatprep.subr.bf16.mxu0 %v2074
        %2140 = vmatpush1.bf16.msra.mxu0 %v2073
        %2141 = vmatprep.subr.bf16.mxu0 %v2071
        %2142 = vmatpush1.bf16.msra.mxu0 %v2070
        %2143 = vmatprep.subr.bf16.mxu0 0
        %2144 = vmatpush2.bf16.msra.mxu0 0
        %2145 = vmatprep.subr.bf16.mxu0 0
        %2146 = vmatpush2.bf16.msra.mxu0 0
        %2147 = vmatprep.subr.bf16.mxu0 0
        %2148 = vmatpush2.bf16.msra.mxu0 0
        %2149 = vmatprep.subr.bf16.mxu0 0
        %2150 = vmatpush2.bf16.msra.mxu0 0
        %2151 = vmatprep.subr.bf16.mxu0 0
        %2152 = vmatpush2.bf16.msra.mxu0 0
        %2153 = vmatprep.subr.bf16.mxu0 0
        %2154 = vmatpush2.bf16.msra.mxu0 0
        %2155 = vmatprep.subr.bf16.mxu0 0
        %2156 = vmatpush2.bf16.msra.mxu0 0
        %2157 = vmatprep.subr.bf16.mxu0 %v2095
        %2158 = vmatpush2.bf16.msra.mxu0 %v2094
        %2159 = vmatprep.mubr.bf16.mxu0 %v2125
        %2160 = vmatmul.mubr.bf16.gmra.mxu0 %v1977
        %v2161 = vpop.f32.mrf.mxu0
        %v2162 = vadd.f32 %v1964, %v2161
        %v2163 = vpop.f32.mrf.mxu0
        %v2164 = vadd.f32 %v1964, %v2163
        %v2165 = vpop.f32.mrf.mxu0
        %v2166 = vadd.f32 %v1969, %v2165
        %v2167 = vpop.f32.mrf.mxu0
        %v2168 = vadd.f32 %v1969, %v2167
        %2169 = vdwg.mxu0
        %2170 = vmatprep.subr.bf16.mxu0 0
        %2171 = vmatpush1.bf16.msra.mxu0 %v2093
        %2172 = vmatprep.subr.bf16.mxu0 0
        %2173 = vmatpush1.bf16.msra.mxu0 %v2090
        %2174 = vmatprep.subr.bf16.mxu0 0
        %2175 = vmatpush1.bf16.msra.mxu0 %v2087
        %2176 = vmatprep.subr.bf16.mxu0 0
        %2177 = vmatpush1.bf16.msra.mxu0 %v2084
        %2178 = vmatprep.subr.bf16.mxu0 0
        %2179 = vmatpush1.bf16.msra.mxu0 %v2081
        %2180 = vmatprep.subr.bf16.mxu0 0
        %2181 = vmatpush1.bf16.msra.mxu0 %v2078
        %2182 = vmatprep.subr.bf16.mxu0 0
        %2183 = vmatpush1.bf16.msra.mxu0 %v2075
        %2184 = vmatprep.subr.bf16.mxu0 0
        %2185 = vmatpush1.bf16.msra.mxu0 %v2072
        %2186 = vmatprep.subr.bf16.mxu0 0
        %2187 = vmatpush2.bf16.msra.mxu0 0
        %2188 = vmatprep.subr.bf16.mxu0 0
        %2189 = vmatpush2.bf16.msra.mxu0 0
        %2190 = vmatprep.subr.bf16.mxu0 0
        %2191 = vmatpush2.bf16.msra.mxu0 0
        %2192 = vmatprep.subr.bf16.mxu0 0
        %2193 = vmatpush2.bf16.msra.mxu0 0
        %2194 = vmatprep.subr.bf16.mxu0 0
        %2195 = vmatpush2.bf16.msra.mxu0 0
        %2196 = vmatprep.subr.bf16.mxu0 0
        %2197 = vmatpush2.bf16.msra.mxu0 0
        %2198 = vmatprep.subr.bf16.mxu0 0
        %2199 = vmatpush2.bf16.msra.mxu0 0
        %2200 = vmatprep.subr.bf16.mxu0 0
        %2201 = vmatpush2.bf16.msra.mxu0 %v2096
        %2202 = vmatprep.mubr.bf16.mxu0 %v2125
        %2203 = vmatmul.mubr.bf16.gmra.mxu0 %v1977
        %v2204 = vpop.f32.mrf.mxu0
        %v2205 = vadd.f32 %v1964, %v2204
        %v2206 = vpop.f32.mrf.mxu0
        %v2207 = vpop.f32.mrf.mxu0
        %v2208 = vadd.f32 %v1969, %v2207
        %v2209 = vpop.f32.mrf.mxu0
        %2210 = vdwg.mxu0
        %v2211 = vld [vmem:[%s14] sm:$0xff]
        %v2212 = vld [vmem:[%s14 + $0x8] sm:$0xff]
        %v2213 = vld [vmem:[%s10] sm:$0xff]
        %v2214 = vld [vmem:[%s10 + $0x8] sm:$0xff]
        %v2215 = vld [vmem:[%s11] sm:$0xff]
        %v2216 = vld [vmem:[%s11 + $0x8] sm:$0xff]
        %v2217 = vmul.f32 %v2162, %v1125
        %v2218 = vmul.f32 %v2164, %v1129
        %v2219 = vmul.f32 %v2205, %v1133
        %v2220 = vmul.f32 %v2166, %v1125
        %v2221 = vmul.f32 %v2168, %v1129
        %v2222 = vmul.f32 %v2208, %v1133
        %v2224 = vsel %vm1027, %v2211, 0
        %v2227 = vsel %vm1027, %v2212, 0
        %2229 = vmatprep.subr.mxu0 0.0
        %2230 = vmatpush1.msra.mxu0 0.0
        %2231 = vmatprep.subr.mxu0 0.0
        %2232 = vmatpush1.msra.mxu0 0.0
        %2233 = vmatprep.subr.mxu0 0.0
        %2234 = vmatpush1.msra.mxu0 0.0
        %2235 = vmatprep.subr.mxu0 0.0
        %2236 = vmatpush1.msra.mxu0 0.0
        %2237 = vmatprep.subr.mxu0 0.0
        %2238 = vmatpush1.msra.mxu0 0.0
        %2239 = vmatprep.subr.mxu0 0.0
        %2240 = vmatpush1.msra.mxu0 0.0
        %2241 = vmatprep.subr.mxu0 0.0
        %2242 = vmatpush1.msra.mxu0 0.0
        %2243 = vmatprep.subr.mxu0 0.0
        %2244 = vmatpush1.msra.mxu0 0.0
        %2245 = vmatprep.subr.mxu0 0.0
        %2246 = vmatpush1.msra.mxu0 0.0
        %2247 = vmatprep.subr.mxu0 0.0
        %2248 = vmatpush1.msra.mxu0 0.0
        %2249 = vmatprep.subr.mxu0 0.0
        %2250 = vmatpush1.msra.mxu0 0.0
        %2251 = vmatprep.subr.mxu0 0.0
        %2252 = vmatpush1.msra.mxu0 0.0
        %2253 = vmatprep.subr.mxu0 0.0
        %2254 = vmatpush1.msra.mxu0 0.0
        %2255 = vmatprep.subr.mxu0 0.0
        %2256 = vmatpush1.msra.mxu0 0.0
        %2257 = vmatprep.subr.mxu0 %v2221
        %2258 = vmatpush1.msra.mxu0 %v2220
        %2259 = vmatprep.subr.mxu0 %v2218
        %2260 = vmatpush1.msra.mxu0 %v2217
        %2261 = vmatprep.subr.mxu0 0.0
        %2262 = vmatpush2.msra.mxu0 0.0
        %2263 = vmatprep.subr.mxu0 0.0
        %2264 = vmatpush2.msra.mxu0 0.0
        %2265 = vmatprep.subr.mxu0 0.0
        %2266 = vmatpush2.msra.mxu0 0.0
        %2267 = vmatprep.subr.mxu0 0.0
        %2268 = vmatpush2.msra.mxu0 0.0
        %2269 = vmatprep.subr.mxu0 0.0
        %2270 = vmatpush2.msra.mxu0 0.0
        %2271 = vmatprep.subr.mxu0 0.0
        %2272 = vmatpush2.msra.mxu0 0.0
        %2273 = vmatprep.subr.mxu0 0.0
        %2274 = vmatpush2.msra.mxu0 0.0
        %2275 = vmatprep.subr.mxu0 0.0
        %2276 = vmatpush2.msra.mxu0 0.0
        %2277 = vmatprep.subr.mxu0 0.0
        %2278 = vmatpush2.msra.mxu0 0.0
        %2279 = vmatprep.subr.mxu0 0.0
        %2280 = vmatpush2.msra.mxu0 0.0
        %2281 = vmatprep.subr.mxu0 0.0
        %2282 = vmatpush2.msra.mxu0 0.0
        %2283 = vmatprep.subr.mxu0 0.0
        %2284 = vmatpush2.msra.mxu0 0.0
        %2285 = vmatprep.subr.mxu0 0.0
        %2286 = vmatpush2.msra.mxu0 0.0
        %2287 = vmatprep.subr.mxu0 0.0
        %2288 = vmatpush2.msra.mxu0 0.0
        %2289 = vmatprep.subr.mxu0 0.0
        %2290 = vmatpush2.msra.mxu0 0.0
        %2291 = vmatprep.subr.mxu0 0.0
        %2292 = vmatpush2.msra.mxu0 0.0
        %2293 = vmatprep.mubr.f32.mxu0 0.0
        %2294 = vmatmul.mubr.f32.gmra.mxu0 %v2224
        %v2295 = vpop.f32.mrf.mxu0
        %v2296 = vadd.f32 0.0, %v2295
        %v2297 = vpop.f32.mrf.mxu0
        %v2298 = vadd.f32 0.0, %v2297
        %2299 = vmatprep.mubr.f32.mxu0 0.0
        %2300 = vmatmul.mubr.f32.gmra.mxu0 %v2227
        %v2301 = vpop.f32.mrf.mxu0
        %v2302 = vadd.f32 0.0, %v2301
        %v2303 = vpop.f32.mrf.mxu0
        %v2304 = vadd.f32 0.0, %v2303
        %2305 = vdwg.mxu0
        %2306 = vmatprep.subr.mxu0 0.0
        %2307 = vmatpush1.msra.mxu0 0.0
        %2308 = vmatprep.subr.mxu0 0.0
        %2309 = vmatpush1.msra.mxu0 0.0
        %2310 = vmatprep.subr.mxu0 0.0
        %2311 = vmatpush1.msra.mxu0 0.0
        %2312 = vmatprep.subr.mxu0 0.0
        %2313 = vmatpush1.msra.mxu0 0.0
        %2314 = vmatprep.subr.mxu0 0.0
        %2315 = vmatpush1.msra.mxu0 0.0
        %2316 = vmatprep.subr.mxu0 0.0
        %2317 = vmatpush1.msra.mxu0 0.0
        %2318 = vmatprep.subr.mxu0 0.0
        %2319 = vmatpush1.msra.mxu0 0.0
        %2320 = vmatprep.subr.mxu0 0.0
        %2321 = vmatpush1.msra.mxu0 0.0
        %2322 = vmatprep.subr.mxu0 0.0
        %2323 = vmatpush1.msra.mxu0 0.0
        %2324 = vmatprep.subr.mxu0 0.0
        %2325 = vmatpush1.msra.mxu0 0.0
        %2326 = vmatprep.subr.mxu0 0.0
        %2327 = vmatpush1.msra.mxu0 0.0
        %2328 = vmatprep.subr.mxu0 0.0
        %2329 = vmatpush1.msra.mxu0 0.0
        %2330 = vmatprep.subr.mxu0 0.0
        %2331 = vmatpush1.msra.mxu0 0.0
        %2332 = vmatprep.subr.mxu0 0.0
        %2333 = vmatpush1.msra.mxu0 0.0
        %2334 = vmatprep.subr.mxu0 0.0
        %2335 = vmatpush1.msra.mxu0 %v2222
        %2336 = vmatprep.subr.mxu0 0.0
        %2337 = vmatpush1.msra.mxu0 %v2219
        %2338 = vmatprep.subr.mxu0 0.0
        %2339 = vmatpush2.msra.mxu0 0.0
        %2340 = vmatprep.subr.mxu0 0.0
        %2341 = vmatpush2.msra.mxu0 0.0
        %2342 = vmatprep.subr.mxu0 0.0
        %2343 = vmatpush2.msra.mxu0 0.0
        %2344 = vmatprep.subr.mxu0 0.0
        %2345 = vmatpush2.msra.mxu0 0.0
        %2346 = vmatprep.subr.mxu0 0.0
        %2347 = vmatpush2.msra.mxu0 0.0
        %2348 = vmatprep.subr.mxu0 0.0
        %2349 = vmatpush2.msra.mxu0 0.0
        %2350 = vmatprep.subr.mxu0 0.0
        %2351 = vmatpush2.msra.mxu0 0.0
        %2352 = vmatprep.subr.mxu0 0.0
        %2353 = vmatpush2.msra.mxu0 0.0
        %2354 = vmatprep.subr.mxu0 0.0
        %2355 = vmatpush2.msra.mxu0 0.0
        %2356 = vmatprep.subr.mxu0 0.0
        %2357 = vmatpush2.msra.mxu0 0.0
        %2358 = vmatprep.subr.mxu0 0.0
        %2359 = vmatpush2.msra.mxu0 0.0
        %2360 = vmatprep.subr.mxu0 0.0
        %2361 = vmatpush2.msra.mxu0 0.0
        %2362 = vmatprep.subr.mxu0 0.0
        %2363 = vmatpush2.msra.mxu0 0.0
        %2364 = vmatprep.subr.mxu0 0.0
        %2365 = vmatpush2.msra.mxu0 0.0
        %2366 = vmatprep.subr.mxu0 0.0
        %2367 = vmatpush2.msra.mxu0 0.0
        %2368 = vmatprep.subr.mxu0 0.0
        %2369 = vmatpush2.msra.mxu0 0.0
        %2370 = vmatprep.mubr.f32.mxu0 0.0
        %2371 = vmatmul.mubr.f32.gmra.mxu0 %v2224
        %v2372 = vpop.f32.mrf.mxu0
        %v2373 = vadd.f32 0.0, %v2372
        %v2374 = vpop.f32.mrf.mxu0
        %2375 = vmatprep.mubr.f32.mxu0 0.0
        %2376 = vmatmul.mubr.f32.gmra.mxu0 %v2227
        %v2377 = vpop.f32.mrf.mxu0
        %v2378 = vadd.f32 0.0, %v2377
        %v2379 = vpop.f32.mrf.mxu0
        %2380 = vdwg.mxu0
        %v2381 = vadd.f32 %v2296, %v2298
        %v2382 = vadd.f32 %v2381, %v2373
        %2383 = vadd.xlane.f32.xlu0 %v2382
        %v2384 = vpop.xlane.xlu0 %2383
        %v2385 = vadd.f32 %v2302, %v2304
        %v2386 = vadd.f32 %v2385, %v2378
        %2387 = vadd.xlane.f32.xlu0 %v2386
        %v2388 = vpop.xlane.xlu0 %2387
        %v2389 = vsub.f32 %v2162, %v2384
        %v2390 = vsub.f32 %v2164, %v2384
        %v2391 = vsub.f32 %v2205, %v2384
        %v2392 = vsub.f32 %v2166, %v2388
        %v2393 = vsub.f32 %v2168, %v2388
        %v2394 = vsub.f32 %v2208, %v2388
        %v2395 = vmul.f32 %v2389, %v1125
        %v2396 = vmul.f32 %v2390, %v1129
        %v2397 = vmul.f32 %v2391, %v1133
        %v2398 = vmul.f32 %v2392, %v1125
        %v2399 = vmul.f32 %v2393, %v1129
        %v2400 = vmul.f32 %v2394, %v1133
        %v2401 = vmul.f32 %v2395, %v2395
        %v2402 = vmul.f32 %v2396, %v2396
        %v2403 = vmul.f32 %v2397, %v2397
        %v2404 = vmul.f32 %v2398, %v2398
        %v2405 = vmul.f32 %v2399, %v2399
        %v2406 = vmul.f32 %v2400, %v2400
        %2407 = vmatprep.subr.mxu0 0.0
        %2408 = vmatpush1.msra.mxu0 0.0
        %2409 = vmatprep.subr.mxu0 0.0
        %2410 = vmatpush1.msra.mxu0 0.0
        %2411 = vmatprep.subr.mxu0 0.0
        %2412 = vmatpush1.msra.mxu0 0.0
        %2413 = vmatprep.subr.mxu0 0.0
        %2414 = vmatpush1.msra.mxu0 0.0
        %2415 = vmatprep.subr.mxu0 0.0
        %2416 = vmatpush1.msra.mxu0 0.0
        %2417 = vmatprep.subr.mxu0 0.0
        %2418 = vmatpush1.msra.mxu0 0.0
        %2419 = vmatprep.subr.mxu0 0.0
        %2420 = vmatpush1.msra.mxu0 0.0
        %2421 = vmatprep.subr.mxu0 0.0
        %2422 = vmatpush1.msra.mxu0 0.0
        %2423 = vmatprep.subr.mxu0 0.0
        %2424 = vmatpush1.msra.mxu0 0.0
        %2425 = vmatprep.subr.mxu0 0.0
        %2426 = vmatpush1.msra.mxu0 0.0
        %2427 = vmatprep.subr.mxu0 0.0
        %2428 = vmatpush1.msra.mxu0 0.0
        %2429 = vmatprep.subr.mxu0 0.0
        %2430 = vmatpush1.msra.mxu0 0.0
        %2431 = vmatprep.subr.mxu0 0.0
        %2432 = vmatpush1.msra.mxu0 0.0
        %2433 = vmatprep.subr.mxu0 0.0
        %2434 = vmatpush1.msra.mxu0 0.0
        %2435 = vmatprep.subr.mxu0 %v2405
        %2436 = vmatpush1.msra.mxu0 %v2404
        %2437 = vmatprep.subr.mxu0 %v2402
        %2438 = vmatpush1.msra.mxu0 %v2401
        %2439 = vmatprep.subr.mxu0 0.0
        %2440 = vmatpush2.msra.mxu0 0.0
        %2441 = vmatprep.subr.mxu0 0.0
        %2442 = vmatpush2.msra.mxu0 0.0
        %2443 = vmatprep.subr.mxu0 0.0
        %2444 = vmatpush2.msra.mxu0 0.0
        %2445 = vmatprep.subr.mxu0 0.0
        %2446 = vmatpush2.msra.mxu0 0.0
        %2447 = vmatprep.subr.mxu0 0.0
        %2448 = vmatpush2.msra.mxu0 0.0
        %2449 = vmatprep.subr.mxu0 0.0
        %2450 = vmatpush2.msra.mxu0 0.0
        %2451 = vmatprep.subr.mxu0 0.0
        %2452 = vmatpush2.msra.mxu0 0.0
        %2453 = vmatprep.subr.mxu0 0.0
        %2454 = vmatpush2.msra.mxu0 0.0
        %2455 = vmatprep.subr.mxu0 0.0
        %2456 = vmatpush2.msra.mxu0 0.0
        %2457 = vmatprep.subr.mxu0 0.0
        %2458 = vmatpush2.msra.mxu0 0.0
        %2459 = vmatprep.subr.mxu0 0.0
        %2460 = vmatpush2.msra.mxu0 0.0
        %2461 = vmatprep.subr.mxu0 0.0
        %2462 = vmatpush2.msra.mxu0 0.0
        %2463 = vmatprep.subr.mxu0 0.0
        %2464 = vmatpush2.msra.mxu0 0.0
        %2465 = vmatprep.subr.mxu0 0.0
        %2466 = vmatpush2.msra.mxu0 0.0
        %2467 = vmatprep.subr.mxu0 0.0
        %2468 = vmatpush2.msra.mxu0 0.0
        %2469 = vmatprep.subr.mxu0 0.0
        %2470 = vmatpush2.msra.mxu0 0.0
        %2471 = vmatprep.mubr.f32.mxu0 0.0
        %2472 = vmatmul.mubr.f32.gmra.mxu0 %v2224
        %v2473 = vpop.f32.mrf.mxu0
        %v2474 = vadd.f32 0.0, %v2473
        %v2475 = vpop.f32.mrf.mxu0
        %v2476 = vadd.f32 0.0, %v2475
        %2477 = vmatprep.mubr.f32.mxu0 0.0
        %2478 = vmatmul.mubr.f32.gmra.mxu0 %v2227
        %v2479 = vpop.f32.mrf.mxu0
        %v2480 = vadd.f32 0.0, %v2479
        %v2481 = vpop.f32.mrf.mxu0
        %v2482 = vadd.f32 0.0, %v2481
        %2483 = vdwg.mxu0
        %2484 = vmatprep.subr.mxu0 0.0
        %2485 = vmatpush1.msra.mxu0 0.0
        %2486 = vmatprep.subr.mxu0 0.0
        %2487 = vmatpush1.msra.mxu0 0.0
        %2488 = vmatprep.subr.mxu0 0.0
        %2489 = vmatpush1.msra.mxu0 0.0
        %2490 = vmatprep.subr.mxu0 0.0
        %2491 = vmatpush1.msra.mxu0 0.0
        %2492 = vmatprep.subr.mxu0 0.0
        %2493 = vmatpush1.msra.mxu0 0.0
        %2494 = vmatprep.subr.mxu0 0.0
        %2495 = vmatpush1.msra.mxu0 0.0
        %2496 = vmatprep.subr.mxu0 0.0
        %2497 = vmatpush1.msra.mxu0 0.0
        %2498 = vmatprep.subr.mxu0 0.0
        %2499 = vmatpush1.msra.mxu0 0.0
        %2500 = vmatprep.subr.mxu0 0.0
        %2501 = vmatpush1.msra.mxu0 0.0
        %2502 = vmatprep.subr.mxu0 0.0
        %2503 = vmatpush1.msra.mxu0 0.0
        %2504 = vmatprep.subr.mxu0 0.0
        %2505 = vmatpush1.msra.mxu0 0.0
        %2506 = vmatprep.subr.mxu0 0.0
        %2507 = vmatpush1.msra.mxu0 0.0
        %2508 = vmatprep.subr.mxu0 0.0
        %2509 = vmatpush1.msra.mxu0 0.0
        %2510 = vmatprep.subr.mxu0 0.0
        %2511 = vmatpush1.msra.mxu0 0.0
        %2512 = vmatprep.subr.mxu0 0.0
        %2513 = vmatpush1.msra.mxu0 %v2406
        %2514 = vmatprep.subr.mxu0 0.0
        %2515 = vmatpush1.msra.mxu0 %v2403
        %2516 = vmatprep.subr.mxu0 0.0
        %2517 = vmatpush2.msra.mxu0 0.0
        %2518 = vmatprep.subr.mxu0 0.0
        %2519 = vmatpush2.msra.mxu0 0.0
        %2520 = vmatprep.subr.mxu0 0.0
        %2521 = vmatpush2.msra.mxu0 0.0
        %2522 = vmatprep.subr.mxu0 0.0
        %2523 = vmatpush2.msra.mxu0 0.0
        %2524 = vmatprep.subr.mxu0 0.0
        %2525 = vmatpush2.msra.mxu0 0.0
        %2526 = vmatprep.subr.mxu0 0.0
        %2527 = vmatpush2.msra.mxu0 0.0
        %2528 = vmatprep.subr.mxu0 0.0
        %2529 = vmatpush2.msra.mxu0 0.0
        %2530 = vmatprep.subr.mxu0 0.0
        %2531 = vmatpush2.msra.mxu0 0.0
        %2532 = vmatprep.subr.mxu0 0.0
        %2533 = vmatpush2.msra.mxu0 0.0
        %2534 = vmatprep.subr.mxu0 0.0
        %2535 = vmatpush2.msra.mxu0 0.0
        %2536 = vmatprep.subr.mxu0 0.0
        %2537 = vmatpush2.msra.mxu0 0.0
        %2538 = vmatprep.subr.mxu0 0.0
        %2539 = vmatpush2.msra.mxu0 0.0
        %2540 = vmatprep.subr.mxu0 0.0
        %2541 = vmatpush2.msra.mxu0 0.0
        %2542 = vmatprep.subr.mxu0 0.0
        %2543 = vmatpush2.msra.mxu0 0.0
        %2544 = vmatprep.subr.mxu0 0.0
        %2545 = vmatpush2.msra.mxu0 0.0
        %2546 = vmatprep.subr.mxu0 0.0
        %2547 = vmatpush2.msra.mxu0 0.0
        %2548 = vmatprep.mubr.f32.mxu0 0.0
        %2549 = vmatmul.mubr.f32.gmra.mxu0 %v2224
        %v2550 = vpop.f32.mrf.mxu0
        %v2551 = vadd.f32 0.0, %v2550
        %v2552 = vpop.f32.mrf.mxu0
        %2553 = vmatprep.mubr.f32.mxu0 0.0
        %2554 = vmatmul.mubr.f32.gmra.mxu0 %v2227
        %v2555 = vpop.f32.mrf.mxu0
        %v2556 = vadd.f32 0.0, %v2555
        %v2557 = vpop.f32.mrf.mxu0
        %2558 = vdwg.mxu0
        %v2559 = vadd.f32 %v2474, %v2476
        %v2560 = vadd.f32 %v2559, %v2551
        %2561 = vadd.xlane.f32.xlu0 %v2560
        %v2562 = vpop.xlane.xlu0 %2561
        %v2563 = vadd.f32 %v2480, %v2482
        %v2564 = vadd.f32 %v2563, %v2556
        %2565 = vadd.xlane.f32.xlu0 %v2564
        %v2566 = vpop.xlane.xlu0 %2565
        %v2567 = vadd.f32 %v2562, 1e-05
        %v2568 = vadd.f32 %v2566, 1e-05
        %v2569 = vrsqrt.pop %v2567
        %v2570 = vrsqrt.pop %v2568
        %v2571 = vmul.f32 %v2395, %v2569
        %v2572 = vmul.f32 %v2396, %v2569
        %v2573 = vmul.f32 %v2397, %v2569
        %v2574 = vmul.f32 %v2398, %v2570
        %v2575 = vmul.f32 %v2399, %v2570
        %v2576 = vmul.f32 %v2400, %v2570
        %2578 = vset.pattern.permute.xlu0 0
        %2579 = vperm.xlu0 %2578, %v2213
        %v2580 = vpop.permute.xlu0 %2579
        %2583 = vset.pattern.permute.xlu0 0
        %2584 = vperm.xlu0 %2583, %v2214
        %v2585 = vpop.permute.xlu0 %2584
        %v2587 = vmul.f32 %v2571, %v2580
        %v2588 = vmul.f32 %v2572, %v2580
        %v2589 = vmul.f32 %v2573, %v2580
        %v2590 = vmul.f32 %v2574, %v2585
        %v2591 = vmul.f32 %v2575, %v2585
        %v2592 = vmul.f32 %v2576, %v2585
        %2594 = vset.pattern.permute.xlu0 0
        %2595 = vperm.xlu0 %2594, %v2215
        %v2596 = vpop.permute.xlu0 %2595
        %2599 = vset.pattern.permute.xlu0 0
        %2600 = vperm.xlu0 %2599, %v2216
        %v2601 = vpop.permute.xlu0 %2600
        %v2603 = vadd.f32 %v2587, %v2596
        %v2604 = vadd.f32 %v2588, %v2596
        %v2605 = vadd.f32 %v2589, %v2596
        %v2606 = vadd.f32 %v2590, %v2601
        %v2607 = vadd.f32 %v2591, %v2601
        %v2608 = vadd.f32 %v2592, %v2601
        %v2609 = vxor.u32 %v2603, 2147483648
        %v2610 = vxor.u32 %v2604, 2147483648
        %v2611 = vxor.u32 %v2605, 2147483648
        %v2612 = vxor.u32 %v2606, 2147483648
        %v2613 = vxor.u32 %v2607, 2147483648
        %v2614 = vxor.u32 %v2608, 2147483648
        %v2615 = vmul.f32 %v2609, 1.442695
        %v2616 = vpow.pop %v2615
        %v2617 = vmul.f32 %v2610, 1.442695
        %v2618 = vpow.pop %v2617
        %v2619 = vmul.f32 %v2611, 1.442695
        %v2620 = vpow.pop %v2619
        %v2621 = vmul.f32 %v2612, 1.442695
        %v2622 = vpow.pop %v2621
        %v2623 = vmul.f32 %v2613, 1.442695
        %v2624 = vpow.pop %v2623
        %v2625 = vmul.f32 %v2614, 1.442695
        %v2626 = vpow.pop %v2625
        %v2627 = vadd.f32 %v2616, 1.0
        %v2628 = vadd.f32 %v2618, 1.0
        %v2629 = vadd.f32 %v2620, 1.0
        %v2630 = vadd.f32 %v2622, 1.0
        %v2631 = vadd.f32 %v2624, 1.0
        %v2632 = vadd.f32 %v2626, 1.0
        %v2633 = vrcp.pop %v2627
        %v2634 = vmul.f32 1.0, %v2633
        %v2635 = vrcp.pop %v2628
        %v2636 = vmul.f32 1.0, %v2635
        %v2637 = vrcp.pop %v2629
        %v2638 = vmul.f32 1.0, %v2637
        %v2639 = vrcp.pop %v2630
        %v2640 = vmul.f32 1.0, %v2639
        %v2641 = vrcp.pop %v2631
        %v2642 = vmul.f32 1.0, %v2641
        %v2643 = vrcp.pop %v2632
        %v2644 = vmul.f32 1.0, %v2643
        %v2645 = vmul.f32 %v2603, %v2634
        %v2646 = vmul.f32 %v2604, %v2636
        %v2647 = vmul.f32 %v2605, %v2638
        %v2648 = vmul.f32 %v2606, %v2640
        %v2649 = vmul.f32 %v2607, %v2642
        %v2650 = vmul.f32 %v2608, %v2644
        %v2651 = vld [vmem:[#allocation2 + $0x60] sm:$0xff]
        %v2652 = vld [vmem:[#allocation2 + $0x68] sm:$0xf]
        %v2653 = vld [vmem:[#allocation2 + $0x6c] sm:$0xff]
        %v2654 = vld [vmem:[#allocation2 + $0x74] sm:$0xf]
        %v2655 = vld [vmem:[%s12] sm:$0xf]
        %v2656 = vld [vmem:[%s12 + $0x4] sm:$0xf]
        %v2657 = vld [vmem:[%s13] sm:$0xff]
        %v2658 = vld [vmem:[%s13 + $0x8] sm:$0xff]
        %2660 = vset.pattern.permute.xlu0 0
        %2661 = vperm.xlu0 %2660, %v2657
        %v2662 = vpop.permute.xlu0 %2661
        %2665 = vset.pattern.permute.xlu0 0
        %2666 = vperm.xlu0 %2665, %v2658
        %v2667 = vpop.permute.xlu0 %2666
        %v2671 = vunpack.c.l.b16 %v2655
        %v2672 = vunpack.c.l.b16 %v2656
        %v2673 = vpack.c.b16 %v2672, %v2671
        %v2678 = vunpack.c.l.b16 %v2651
        %v2679 = vunpack.c.h.b16 %v2651
        %v2680 = vunpack.c.l.b16 %v2652
        %v2681 = vunpack.c.l.b16 %v2653
        %v2682 = vunpack.c.h.b16 %v2653
        %v2683 = vunpack.c.l.b16 %v2654
        %v2684 = vpack.c.b16 %v2681, %v2678
        %v2685 = vpack.c.b16 %v2682, %v2679
        %v2686 = vpack.c.b16 %v2683, %v2680
        %v2691 = vsel %vm1027, %v2673, 0
        %2693 = vmatprep.subr.bf16.mxu0 0
        %2694 = vmatpush1.bf16.msra.mxu0 0
        %2695 = vmatprep.subr.bf16.mxu0 0
        %2696 = vmatpush1.bf16.msra.mxu0 0
        %2697 = vmatprep.subr.bf16.mxu0 0
        %2698 = vmatpush1.bf16.msra.mxu0 0
        %2699 = vmatprep.subr.bf16.mxu0 0
        %2700 = vmatpush1.bf16.msra.mxu0 0
        %2701 = vmatprep.subr.bf16.mxu0 0
        %2702 = vmatpush1.bf16.msra.mxu0 0
        %2703 = vmatprep.subr.bf16.mxu0 0
        %2704 = vmatpush1.bf16.msra.mxu0 0
        %2705 = vmatprep.subr.bf16.mxu0 0
        %2706 = vmatpush1.bf16.msra.mxu0 0
        %2707 = vmatprep.subr.bf16.mxu0 %v2685
        %2708 = vmatpush1.bf16.msra.mxu0 %v2684
        %2709 = vmatprep.subr.bf16.mxu0 0
        %2710 = vmatpush2.bf16.msra.mxu0 0
        %2711 = vmatprep.subr.bf16.mxu0 0
        %2712 = vmatpush2.bf16.msra.mxu0 0
        %2713 = vmatprep.subr.bf16.mxu0 0
        %2714 = vmatpush2.bf16.msra.mxu0 0
        %2715 = vmatprep.subr.bf16.mxu0 0
        %2716 = vmatpush2.bf16.msra.mxu0 0
        %2717 = vmatprep.subr.bf16.mxu0 0
        %2718 = vmatpush2.bf16.msra.mxu0 0
        %2719 = vmatprep.subr.bf16.mxu0 0
        %2720 = vmatpush2.bf16.msra.mxu0 0
        %2721 = vmatprep.subr.bf16.mxu0 0
        %2722 = vmatpush2.bf16.msra.mxu0 0
        %2723 = vmatprep.subr.bf16.mxu0 0
        %2724 = vmatpush2.bf16.msra.mxu0 0
        %2725 = vmatprep.mubr.bf16.mxu0 0
        %2726 = vmatmul.mubr.bf16.gmra.mxu0 %v2691
        %v2727 = vpop.f32.mrf.mxu0
        %v2728 = vadd.f32 %v2662, %v2727
        %v2729 = vpop.f32.mrf.mxu0
        %v2730 = vadd.f32 %v2662, %v2729
        %v2731 = vpop.f32.mrf.mxu0
        %v2732 = vadd.f32 %v2667, %v2731
        %v2733 = vpop.f32.mrf.mxu0
        %v2734 = vadd.f32 %v2667, %v2733
        %2735 = vdwg.mxu0
        %2736 = vmatprep.subr.bf16.mxu0 0
        %2737 = vmatpush1.bf16.msra.mxu0 0
        %2738 = vmatprep.subr.bf16.mxu0 0
        %2739 = vmatpush1.bf16.msra.mxu0 0
        %2740 = vmatprep.subr.bf16.mxu0 0
        %2741 = vmatpush1.bf16.msra.mxu0 0
        %2742 = vmatprep.subr.bf16.mxu0 0
        %2743 = vmatpush1.bf16.msra.mxu0 0
        %2744 = vmatprep.subr.bf16.mxu0 0
        %2745 = vmatpush1.bf16.msra.mxu0 0
        %2746 = vmatprep.subr.bf16.mxu0 0
        %2747 = vmatpush1.bf16.msra.mxu0 0
        %2748 = vmatprep.subr.bf16.mxu0 0
        %2749 = vmatpush1.bf16.msra.mxu0 0
        %2750 = vmatprep.subr.bf16.mxu0 0
        %2751 = vmatpush1.bf16.msra.mxu0 %v2686
        %2752 = vmatprep.subr.bf16.mxu0 0
        %2753 = vmatpush2.bf16.msra.mxu0 0
        %2754 = vmatprep.subr.bf16.mxu0 0
        %2755 = vmatpush2.bf16.msra.mxu0 0
        %2756 = vmatprep.subr.bf16.mxu0 0
        %2757 = vmatpush2.bf16.msra.mxu0 0
        %2758 = vmatprep.subr.bf16.mxu0 0
        %2759 = vmatpush2.bf16.msra.mxu0 0
        %2760 = vmatprep.subr.bf16.mxu0 0
        %2761 = vmatpush2.bf16.msra.mxu0 0
        %2762 = vmatprep.subr.bf16.mxu0 0
        %2763 = vmatpush2.bf16.msra.mxu0 0
        %2764 = vmatprep.subr.bf16.mxu0 0
        %2765 = vmatpush2.bf16.msra.mxu0 0
        %2766 = vmatprep.subr.bf16.mxu0 0
        %2767 = vmatpush2.bf16.msra.mxu0 0
        %2768 = vmatprep.mubr.bf16.mxu0 0
        %2769 = vmatmul.mubr.bf16.gmra.mxu0 %v2691
        %v2770 = vpop.f32.mrf.mxu0
        %v2771 = vadd.f32 %v2662, %v2770
        %v2772 = vpop.f32.mrf.mxu0
        %v2773 = vpop.f32.mrf.mxu0
        %v2774 = vadd.f32 %v2667, %v2773
        %v2775 = vpop.f32.mrf.mxu0
        %2776 = vdwg.mxu0
        %v2777 = vadd.f32 %v2645, %v2728
        %v2778 = vadd.f32 %v2646, %v2730
        %v2779 = vadd.f32 %v2647, %v2771
        %v2780 = vadd.f32 %v2648, %v2732
        %v2781 = vadd.f32 %v2649, %v2734
        %v2782 = vadd.f32 %v2650, %v2774
        %2783 = vst [vmem:[%s517] sm:$0xff] %v2777
        %2784 = vst [vmem:[%s517 + $0x8] sm:$0xff] %v2778
        %2785 = vst [vmem:[%s517 + $0x10] sm:$0xff] %v2779
        %2786 = vst [vmem:[%s517 + $0x18] sm:$0xff] %v2780
        %2787 = vst [vmem:[%s517 + $0x20] sm:$0xff] %v2781
        %2788 = vst [vmem:[%s517 + $0x28] sm:$0xff] %v2782
        %s2789 = sand.u32 %s367, 1
        %s2790 = scalar_lea.sflag [#allocation6], %s2789
        %s2791 = sand.u32 %s367, 1
        %s2792 = smul.addr %s2791, 48
        %s2793 = scalar_lea.vmem [#allocation5], %s2792
        // Predicated region
        $region81: #{tpu_custom_call.1} parent=79 // pred_check
          %p2794 = pneg %p377
        $region82: #{tpu_custom_call.1} parent=79 // pred_check_branch
          %2796 = sbr.rel (%p2794) target = $region84
        $region83: #{tpu_custom_call.1} parent=79 // pred_region
          %s2798 = ssub.s32 768, 768
          %2799 = vsyncadd %s2790, %s2798
          %s2800 = smul.addr %s29, 6
          %s2801 = smul.addr %s2800, 128
          %s2802 = scalar_lea.hbm %s15, %s2801
          %s2803 = sshll.u32 %s2793, 4
          %s2804 = int_to_ptr.vmem [resolvable:$true] %s2803
          %2809 = dma.vmem_to_hbm [thread:$0]  %s2804, 768, %s2802, %s2790, 384, 384, 24
        $region84: #{tpu_custom_call.1} parent=79 // pred_fallthru
          _
      $region80: #{tpu_custom_call.1} parent=5 // pred_fallthru
        _
      %p2810 = scmp.le.s32.totalorder 2, %s24
      // Predicated region
      $region85: #{tpu_custom_call.1} parent=5 // pred_check
        %p2811 = pneg %p2810
      $region86: #{tpu_custom_call.1} parent=5 // pred_check_branch
        %2813 = sbr.rel (%p2811) target = $region88
      $region87: #{tpu_custom_call.1} parent=5 // pred_region
        %s2814 = ssub.s32 %s24, 2
        // Predicated region
        $region89: #{tpu_custom_call.1} parent=87 // pred_check
          %p2815 = pneg %p383
        $region90: #{tpu_custom_call.1} parent=87 // pred_check_branch
          %2817 = sbr.rel (%p2815) target = $region92
        $region91: #{tpu_custom_call.1} parent=87 // pred_region
          %s2818 = sand.u32 %s368, 1
          %s2819 = scalar_lea.sflag [#allocation6], %s2818
          %s2820 = sand.u32 %s368, 1
          %s2821 = smul.addr %s2820, 48
          %s2822 = scalar_lea.vmem [#allocation5], %s2821
          %2823 = dma.done %s2819, 768
        $region92: #{tpu_custom_call.1} parent=87 // pred_fallthru
          _
      $region88: #{tpu_custom_call.1} parent=5 // pred_fallthru
        _
    $region6: #{tpu_custom_call.1} parent=1 // loop_footer
      %s28 = sadd.s32 1, %s24
    $region7: #{tpu_custom_call.1} parent=1 // loop_footer_branch
      %23 = sbr.rel target = $region3
    $region8: #{tpu_custom_call.1} parent=1 // loop_exit
      _
    %2824 = vsyncpa [#allocation6], 1
    %s2825 = scalar_lea.sflag [#allocation6], 1
    %2826 = vsyncpa %s2825, 1

</llo_original>
